<compile_context>
chip_gen: v5e
topology: v5e:2x2
jax: 0.10.0
libtpu: 0.0.40
codegen_flags: <defaults>
</compile_context>

<pallas_src>
import jax
import jax.numpy as jnp
from jax.experimental import pallas as pl
from jax.experimental.pallas import tpu as pltpu

_EH = 384   # edge-MLP hidden: 300 padded to 3*128
_EO = 128   # edge-MLP output: 2 padded to 128 (lane dense)
_NH = 128   # node-MLP hidden: 32 padded to 128
_NO = 128   # node-MLP output: 2 padded to 128 (lane dense)

# Keep the per-step working set comfortably inside v7x's 32 MiB scoped-VMEM
# default (64 MiB physical); v5e/v6e have more headroom but the same cap is
# safe everywhere.
_VMEM_BUDGET_BYTES = 20 * 1024 * 1024


def _gnn_kernel(xe_ref, dst_ref, x_ref,
                w1_ref, b1_ref, w2_ref, b2_ref, w3_ref, b3_ref, w4_ref, b4_ref,
                nw1a_ref, nw1b_ref, nb1_ref, nw2_ref, nb2_ref, nw3_ref, nb3_ref,
                out_ref, acc_ref, iota_ref):
    f32 = jnp.float32
    bf16 = jnp.bfloat16
    e = pl.program_id(0)

    @pl.when(e == 0)
    def _init():
        acc_ref[...] = jnp.zeros_like(acc_ref)
        # Grid-invariant node iota, hoisted out of the per-tile loop.
        iota_ref[...] = jax.lax.broadcasted_iota(jnp.int32, iota_ref.shape, 0)

    # ---- Edge MLP on this edge tile: 8 -> 384 -> 384 -> 384 -> 128 (padded).
    # All matmuls use bf16 operands with f32 MXU accumulation; biases/ReLUs f32.
    h = jnp.dot(xe_ref[...], w1_ref[...], preferred_element_type=f32) + b1_ref[...]
    h = jnp.maximum(h, 0.0)
    h = jnp.dot(h.astype(bf16), w2_ref[...], preferred_element_type=f32) + b2_ref[...]
    h = jnp.maximum(h, 0.0)
    h = jnp.dot(h.astype(bf16), w3_ref[...], preferred_element_type=f32) + b3_ref[...]
    h = jnp.maximum(h, 0.0)
    msg = jnp.dot(h.astype(bf16), w4_ref[...], preferred_element_type=f32) + b4_ref[...]

    # ---- scatter-add over destination nodes (f32 accumulation) ----
    # Per-tile one-hot built in vregs from the streamed dst ids; 0/1 values are
    # exact in bf16, so the scatter matmul is also a bf16 MXU pass.  Padded
    # edges carry a sentinel id == n_pad and never match the node iota.
    onehot = (iota_ref[...] == dst_ref[...]).astype(bf16)            # [n_pad, TE]
    acc_ref[...] += jnp.dot(onehot, msg.astype(bf16),
                            preferred_element_type=f32)

    # ---- Node MLP finalize phase: 8 -> 128 -> 128 -> 128 (padded), f32 ----
    @pl.when(e == pl.num_programs(0) - 1)
    def _finalize():
        g = (jnp.dot(x_ref[...], nw1a_ref[...], preferred_element_type=f32)
             + jnp.dot(acc_ref[...], nw1b_ref[...], preferred_element_type=f32)
             + nb1_ref[...])
        g = jnp.maximum(g, 0.0)
        g = jnp.maximum(
            jnp.dot(g, nw2_ref[...], preferred_element_type=f32) + nb2_ref[...], 0.0)
        out_ref[...] = (jnp.dot(g, nw3_ref[...], preferred_element_type=f32)
                        + nb3_ref[...])


def _linear_params(key, fan_in, fan_out):
    """PyTorch nn.Linear default init: U(-1/sqrt(fan_in), 1/sqrt(fan_in))."""
    kw, kb = jax.random.split(key)
    bound = 1.0 / jnp.sqrt(jnp.float32(fan_in))
    w = jax.random.uniform(kw, (fan_in, fan_out), jnp.float32, -bound, bound)
    b = jax.random.uniform(kb, (1, fan_out), jnp.float32, -bound, bound)
    return w, b


def init_params(key):
    keys = jax.random.split(key, 7)
    params = {}
    # EdgeModel.mlp: Linear(6,300), Linear(300,300), Linear(300,300), Linear(300,2)
    params["e1"] = _linear_params(keys[0], 6, 300)
    params["e2"] = _linear_params(keys[1], 300, 300)
    params["e3"] = _linear_params(keys[2], 300, 300)
    params["e4"] = _linear_params(keys[3], 300, 2)
    # NodeModel.mlp: Linear(5,32), Linear(32,32), Linear(32,2)
    params["n1"] = _linear_params(keys[4], 5, 32)
    params["n2"] = _linear_params(keys[5], 32, 32)
    params["n3"] = _linear_params(keys[6], 32, 2)
    return params


def _pad2(a, rows, cols, dtype=None):
    """Zero-pad a 2-D array to [rows, cols] (optionally casting)."""
    dtype = a.dtype if dtype is None else dtype
    out = jnp.zeros((rows, cols), dtype)
    return out.at[:a.shape[0], :a.shape[1]].set(a.astype(dtype))


def _round_up(v, m):
    return ((v + m - 1) // m) * m


def _fit_tile_e(tile_e, n_pad):
    """Clamp tile_e (multiple of 128) so the live VMEM working set stays small."""
    def live_bytes(te):
        stream = 2 * te * (8 * 2 + 4)                  # xe (bf16) + dst ids, double-buffered
        acts = 3 * te * _EH * 4                        # live f32 activation slabs
        scatter = n_pad * te * (2 + 4)                 # bf16 one-hot + int32 iota scratch
        resident = (n_pad * (_EO + _NO + 8) * 4        # acc + out + x
                    + 2 * (2 * _EH * _EH + _EH * (_EO + 8)) * 2   # bf16 weights, dbl-buffered
                    + 8 * _EH * 4 + 4 * _NH * _NH * 4)            # biases + node weights
        return stream + acts + scatter + resident

    te = max(128, (tile_e // 128) * 128)
    while te > 128 and live_bytes(te) > _VMEM_BUDGET_BYTES:
        te -= 128
    return te


def particle_gnn_forward(x, edge_index, params, *, tile_e=1024):
    """x: [N, 3] f32, edge_index: [2, E] int (row 0 = src, row 1 = dst)."""
    assert tile_e % 128 == 0, "tile_e must be a multiple of 128 (lane width)"
    n = x.shape[0]
    num_e = edge_index.shape[1]
    src = edge_index[0].astype(jnp.int32)
    dst = edge_index[1].astype(jnp.int32)

    n_pad = _round_up(max(n, 8), 8)
    tile_e = _fit_tile_e(tile_e, n_pad)
    e_pad = _round_up(max(num_e, tile_e), tile_e)

    # Wrapper glue: gather + concat once -> single [E, 8] bf16 operand (K=6 real).
    xe = jnp.concatenate([jnp.take(x, dst, axis=0),    # x_i = x[dst]
                          jnp.take(x, src, axis=0)],   # x_j = x[src]
                         axis=1)
    xe_p = _pad2(xe, e_pad, 8, jnp.bfloat16)
    # dst ids along the lane axis; padded edges -> sentinel n_pad (dropped).
    dst_p = jnp.full((1, e_pad), n_pad, jnp.int32).at[0, :num_e].set(dst)
    x_p = _pad2(x, n_pad, 8)

    (w1, b1), (w2, b2), (w3, b3), (w4, b4) = (
        params["e1"], params["e2"], params["e3"], params["e4"])
    (nw1, nb1), (nw2, nb2), (nw3, nb3) = (
        params["n1"], params["n2"], params["n3"])

    # Pad 300 -> 384, 2/32 -> 128; zero padding keeps the math exact.
    # All edge-MLP weights are bf16 (f32 MXU accumulation); biases stay f32.
    w1_p = _pad2(w1, 8, _EH, jnp.bfloat16)
    b1_p = _pad2(b1, 1, _EH)
    w2_p = _pad2(w2, _EH, _EH, jnp.bfloat16)
    b2_p = _pad2(b2, 1, _EH)
    w3_p = _pad2(w3, _EH, _EH, jnp.bfloat16)
    b3_p = _pad2(b3, 1, _EH)
    w4_p = _pad2(w4, _EH, _EO, jnp.bfloat16)
    b4_p = _pad2(b4, 1, _EO)

    nw1a_p = _pad2(nw1[:3], 8, _NH)              # acts on x
    nw1b_p = _pad2(nw1[3:], _EO, _NH)            # acts on aggregated edge_attr
    nb1_p = _pad2(nb1, 1, _NH)
    nw2_p = _pad2(nw2, _NH, _NH)
    nb2_p = _pad2(nb2, 1, _NH)
    nw3_p = _pad2(nw3, _NH, _NO)
    nb3_p = _pad2(nb3, 1, _NO)

    weights = [w1_p, b1_p, w2_p, b2_p, w3_p, b3_p, w4_p, b4_p,
               nw1a_p, nw1b_p, nb1_p, nw2_p, nb2_p, nw3_p, nb3_p]

    def edge_map(e):
        return (e, 0)

    def lane_map(e):
        return (0, e)

    def const_map(e):
        return (0, 0)

    weight_specs = [pl.BlockSpec(w.shape, const_map) for w in weights]

    flops = int(
        2 * e_pad * (8 * _EH + 2 * _EH * _EH + _EH * _EO)                 # edge MLP
        + 2 * n_pad * e_pad * _EO                                         # scatter matmul
        + 2 * n_pad * (8 * _NH + _EO * _NH + _NH * _NH + _NH * _NO))      # node MLP
    bytes_accessed = int(
        xe_p.size * xe_p.dtype.itemsize + dst_p.size * 4 + x_p.size * 4
        + n_pad * _NO * 4
        + sum(w.size * w.dtype.itemsize for w in weights))

    out = pl.pallas_call(
        _gnn_kernel,
        out_shape=jax.ShapeDtypeStruct((n_pad, _NO), jnp.float32),
        grid_spec=pltpu.PrefetchScalarGridSpec(
            num_scalar_prefetch=0,
            grid=(e_pad // tile_e,),
            in_specs=[pl.BlockSpec((tile_e, 8), edge_map),     # [x_dst || x_src] tiles (bf16)
                      pl.BlockSpec((1, tile_e), lane_map),     # dst ids (lane axis)
                      pl.BlockSpec((n_pad, 8), const_map)]     # node features (resident)
                     + weight_specs,                            # weights (resident)
            out_specs=pl.BlockSpec((n_pad, _NO), const_map),
            scratch_shapes=[pltpu.VMEM((n_pad, _EO), jnp.float32),     # edge_attr accumulator
                            pltpu.VMEM((n_pad, tile_e), jnp.int32)]),  # hoisted node iota
        compiler_params=pltpu.CompilerParams(
            dimension_semantics=("arbitrary",)),               # edge axis is a reduction
        cost_estimate=pl.CostEstimate(flops=flops, transcendentals=0,
                                      bytes_accessed=bytes_accessed),
    )(xe_p, dst_p, x_p, *weights)

    return out[:n, :2]


def particle_gnn_reference(x, edge_index, params):
    """Pure-JAX reference (f32 math, bf16-quantized edge-MLP weights like the kernel)."""
    src, dst = edge_index[0], edge_index[1]
    (w1, b1), (w2, b2), (w3, b3), (w4, b4) = (
        params["e1"], params["e2"], params["e3"], params["e4"])
    (nw1, nb1), (nw2, nb2), (nw3, nb3) = (
        params["n1"], params["n2"], params["n3"])

    def q(w):
        return w.astype(jnp.bfloat16).astype(jnp.float32)

    h = jnp.concatenate([x[dst], x[src]], axis=1)   # cat([x_i, x_j])
    h = jax.nn.relu(h @ q(w1) + b1)
    h = jax.nn.relu(h @ q(w2) + b2)
    h = jax.nn.relu(h @ q(w3) + b3)
    msg = h @ q(w4) + b4
    edge_attr = jax.ops.segment_sum(msg, dst, num_segments=x.shape[0])
    g = jnp.concatenate([x, edge_attr], axis=1)
    g = jax.nn.relu(g @ nw1 + nb1)
    g = jax.nn.relu(g @ nw2 + nb2)
    return g @ nw3 + nb3


if __name__ == "__main__":
    key = jax.random.PRNGKey(0)
    k_param, k_x, k_x2, k_src, k_dst = jax.random.split(key, 5)

    params = init_params(k_param)

    # --- test 1: the module's create_sample_data(num_particles=3) graph ---
    num_particles = 3
    x = jax.random.uniform(k_x, (num_particles, 3), jnp.float32)
    edge_index = jnp.array([[0, 0, 1, 1, 2, 2],
                            [1, 2, 0, 2, 0, 1]], dtype=jnp.int32)

    out = jax.block_until_ready(
        particle_gnn_forward(x, edge_index, params, tile_e=128))
    ref = particle_gnn_reference(x, edge_index, params)
    assert out.shape == (num_particles, 2)
    # tolerance reflects bf16 activations/weights in the edge MLP + scatter
    assert jnp.allclose(out, ref, atol=3e-2, rtol=3e-2), (out, ref)

    # --- test 2: larger random graph, exercises multi-tile accumulation ---
    n2, e2 = 64, 2048
    x2 = jax.random.uniform(k_x2, (n2, 3), jnp.float32)
    src2 = jax.random.randint(k_src, (e2,), 0, n2, dtype=jnp.int32)
    dst2 = jax.random.randint(k_dst, (e2,), 0, n2, dtype=jnp.int32)
    edge_index2 = jnp.stack([src2, dst2])

    out2 = jax.block_until_ready(
        particle_gnn_forward(x2, edge_index2, params, tile_e=1024))
    ref2 = particle_gnn_reference(x2, edge_index2, params)
    assert out2.shape == (n2, 2)
    assert jnp.allclose(out2, ref2, atol=1e-1, rtol=5e-2), (
        float(jnp.max(jnp.abs(out2 - ref2))),)

    print("KERNEL_OK")
</pallas_src>

<mosaic_0001>
module attributes {stable_mosaic.version = 11 : i64} {
  func.func @_gnn_kernel(%arg0: i32, %arg1: memref<128x8xbf16, #tpu.memory_space<vmem>>, %arg2: memref<1x128xi32, #tpu.memory_space<vmem>>, %arg3: memref<8x8xf32, #tpu.memory_space<vmem>>, %arg4: memref<8x384xbf16, #tpu.memory_space<vmem>>, %arg5: memref<1x384xf32, #tpu.memory_space<vmem>>, %arg6: memref<384x384xbf16, #tpu.memory_space<vmem>>, %arg7: memref<1x384xf32, #tpu.memory_space<vmem>>, %arg8: memref<384x384xbf16, #tpu.memory_space<vmem>>, %arg9: memref<1x384xf32, #tpu.memory_space<vmem>>, %arg10: memref<384x128xbf16, #tpu.memory_space<vmem>>, %arg11: memref<1x128xf32, #tpu.memory_space<vmem>>, %arg12: memref<8x128xf32, #tpu.memory_space<vmem>>, %arg13: memref<128x128xf32, #tpu.memory_space<vmem>>, %arg14: memref<1x128xf32, #tpu.memory_space<vmem>>, %arg15: memref<128x128xf32, #tpu.memory_space<vmem>>, %arg16: memref<1x128xf32, #tpu.memory_space<vmem>>, %arg17: memref<128x128xf32, #tpu.memory_space<vmem>>, %arg18: memref<1x128xf32, #tpu.memory_space<vmem>>, %arg19: memref<8x128xf32, #tpu.memory_space<vmem>>, %arg20: memref<8x128xf32, #tpu.memory_space<vmem>>, %arg21: memref<8x128xi32, #tpu.memory_space<vmem>>) attributes {dimension_semantics = [#tpu.dimension_semantics<arbitrary>], iteration_bounds = array<i64: 1>, scalar_prefetch = 0 : i64, scratch_operands = 2 : i64, tpu.core_type = #tpu.core_type<tc>, window_params = [{transform_indices = @transform_0, window_bounds = array<i64: 128, 8>}, {transform_indices = @transform_1, window_bounds = array<i64: 1, 128>}, {pipeline_mode = #tpu.pipeline_mode<synchronous>, transform_indices = @transform_2, window_bounds = array<i64: 8, 8>}, {pipeline_mode = #tpu.pipeline_mode<synchronous>, transform_indices = @transform_3, window_bounds = array<i64: 8, 384>}, {pipeline_mode = #tpu.pipeline_mode<synchronous>, transform_indices = @transform_4, window_bounds = array<i64: 1, 384>}, {pipeline_mode = #tpu.pipeline_mode<synchronous>, transform_indices = @transform_5, window_bounds = array<i64: 384, 384>}, {pipeline_mode = #tpu.pipeline_mode<synchronous>, transform_indices = @transform_6, window_bounds = array<i64: 1, 384>}, {pipeline_mode = #tpu.pipeline_mode<synchronous>, transform_indices = @transform_7, window_bounds = array<i64: 384, 384>}, {pipeline_mode = #tpu.pipeline_mode<synchronous>, transform_indices = @transform_8, window_bounds = array<i64: 1, 384>}, {pipeline_mode = #tpu.pipeline_mode<synchronous>, transform_indices = @transform_9, window_bounds = array<i64: 384, 128>}, {pipeline_mode = #tpu.pipeline_mode<synchronous>, transform_indices = @transform_10, window_bounds = array<i64: 1, 128>}, {pipeline_mode = #tpu.pipeline_mode<synchronous>, transform_indices = @transform_11, window_bounds = array<i64: 8, 128>}, {pipeline_mode = #tpu.pipeline_mode<synchronous>, transform_indices = @transform_12, window_bounds = array<i64: 128, 128>}, {pipeline_mode = #tpu.pipeline_mode<synchronous>, transform_indices = @transform_13, window_bounds = array<i64: 1, 128>}, {pipeline_mode = #tpu.pipeline_mode<synchronous>, transform_indices = @transform_14, window_bounds = array<i64: 128, 128>}, {pipeline_mode = #tpu.pipeline_mode<synchronous>, transform_indices = @transform_15, window_bounds = array<i64: 1, 128>}, {pipeline_mode = #tpu.pipeline_mode<synchronous>, transform_indices = @transform_16, window_bounds = array<i64: 128, 128>}, {pipeline_mode = #tpu.pipeline_mode<synchronous>, transform_indices = @transform_17, window_bounds = array<i64: 1, 128>}, {pipeline_mode = #tpu.pipeline_mode<synchronous>, transform_indices = @transform_18, window_bounds = array<i64: 8, 128>}]} {
    %c0_i32 = arith.constant 0 : i32
    %0 = arith.cmpi eq, %arg0, %c0_i32 : i32
    %1 = arith.extui %0 : i1 to i32
    %c0_i32_0 = arith.constant 0 : i32
    %2 = arith.cmpi ne, %1, %c0_i32_0 : i32
    scf.if %2 {
      %cst_35 = arith.constant 0.000000e+00 : f32
      %48 = vector.broadcast %cst_35 : f32 to vector<8x128xf32>
      %c0_36 = arith.constant 0 : index
      %c0_37 = arith.constant 0 : index
      %49 = vector.load %arg20[%c0_36, %c0_37] : memref<8x128xf32, #tpu.memory_space<vmem>>, vector<8x128xf32>
      tpu.vector_store %arg20[%c0_36, %c0_37], %48 {strides = array<i32>} : memref<8x128xf32, #tpu.memory_space<vmem>>, vector<8x128xf32>,
      %50 = tpu.iota {dimensions = array<i32: 0>} : vector<8x128xi32>
      %c0_38 = arith.constant 0 : index
      %c0_39 = arith.constant 0 : index
      %51 = vector.load %arg21[%c0_38, %c0_39] : memref<8x128xi32, #tpu.memory_space<vmem>>, vector<8x128xi32>
      tpu.vector_store %arg21[%c0_38, %c0_39], %50 {strides = array<i32>} : memref<8x128xi32, #tpu.memory_space<vmem>>, vector<8x128xi32>,
    } else {
    }
    %c0 = arith.constant 0 : index
    %c0_1 = arith.constant 0 : index
    %3 = vector.load %arg1[%c0, %c0_1] : memref<128x8xbf16, #tpu.memory_space<vmem>>, vector<128x8xbf16>
    %c0_2 = arith.constant 0 : index
    %c0_3 = arith.constant 0 : index
    %4 = vector.load %arg4[%c0_2, %c0_3] : memref<8x384xbf16, #tpu.memory_space<vmem>>, vector<8x384xbf16>
    %cst = arith.constant dense<0.000000e+00> : vector<128x384xf32>
    %5 = tpu.matmul %3, %4, %cst {dimension_numbers = #tpu.dot_dimension_numbers<[1], [0], [0], [1], [0, 0, 1, 1], [], []>} : vector<128x8xbf16>, vector<8x384xbf16>, vector<128x384xf32> -> vector<128x384xf32>
    %c0_4 = arith.constant 0 : index
    %c0_5 = arith.constant 0 : index
    %6 = vector.load %arg5[%c0_4, %c0_5] : memref<1x384xf32, #tpu.memory_space<vmem>>, vector<1x384xf32>
    %7 = vector.broadcast %6 : vector<1x384xf32> to vector<128x384xf32>
    %8 = arith.addf %5, %7 : vector<128x384xf32>
    %cst_6 = arith.constant 0.000000e+00 : f32
    %9 = vector.broadcast %cst_6 : f32 to vector<128x384xf32>
    %10 = arith.maximumf %8, %9 : vector<128x384xf32>
    %11 = arith.truncf %10 : vector<128x384xf32> to vector<128x384xbf16>
    %c0_7 = arith.constant 0 : index
    %c0_8 = arith.constant 0 : index
    %12 = vector.load %arg6[%c0_7, %c0_8] : memref<384x384xbf16, #tpu.memory_space<vmem>>, vector<384x384xbf16>
    %cst_9 = arith.constant dense<0.000000e+00> : vector<128x384xf32>
    %13 = tpu.matmul %11, %12, %cst_9 {dimension_numbers = #tpu.dot_dimension_numbers<[1], [0], [0], [1], [0, 0, 1, 1], [], []>} : vector<128x384xbf16>, vector<384x384xbf16>, vector<128x384xf32> -> vector<128x384xf32>
    %c0_10 = arith.constant 0 : index
    %c0_11 = arith.constant 0 : index
    %14 = vector.load %arg7[%c0_10, %c0_11] : memref<1x384xf32, #tpu.memory_space<vmem>>, vector<1x384xf32>
    %15 = vector.broadcast %14 : vector<1x384xf32> to vector<128x384xf32>
    %16 = arith.addf %13, %15 : vector<128x384xf32>
    %cst_12 = arith.constant 0.000000e+00 : f32
    %17 = vector.broadcast %cst_12 : f32 to vector<128x384xf32>
    %18 = arith.maximumf %16, %17 : vector<128x384xf32>
    %19 = arith.truncf %18 : vector<128x384xf32> to vector<128x384xbf16>
    %c0_13 = arith.constant 0 : index
    %c0_14 = arith.constant 0 : index
    %20 = vector.load %arg8[%c0_13, %c0_14] : memref<384x384xbf16, #tpu.memory_space<vmem>>, vector<384x384xbf16>
    %cst_15 = arith.constant dense<0.000000e+00> : vector<128x384xf32>
    %21 = tpu.matmul %19, %20, %cst_15 {dimension_numbers = #tpu.dot_dimension_numbers<[1], [0], [0], [1], [0, 0, 1, 1], [], []>} : vector<128x384xbf16>, vector<384x384xbf16>, vector<128x384xf32> -> vector<128x384xf32>
    %c0_16 = arith.constant 0 : index
    %c0_17 = arith.constant 0 : index
    %22 = vector.load %arg9[%c0_16, %c0_17] : memref<1x384xf32, #tpu.memory_space<vmem>>, vector<1x384xf32>
    %23 = vector.broadcast %22 : vector<1x384xf32> to vector<128x384xf32>
    %24 = arith.addf %21, %23 : vector<128x384xf32>
    %cst_18 = arith.constant 0.000000e+00 : f32
    %25 = vector.broadcast %cst_18 : f32 to vector<128x384xf32>
    %26 = arith.maximumf %24, %25 : vector<128x384xf32>
    %27 = arith.truncf %26 : vector<128x384xf32> to vector<128x384xbf16>
    %c0_19 = arith.constant 0 : index
    %c0_20 = arith.constant 0 : index
    %28 = vector.load %arg10[%c0_19, %c0_20] : memref<384x128xbf16, #tpu.memory_space<vmem>>, vector<384x128xbf16>
    %cst_21 = arith.constant dense<0.000000e+00> : vector<128x128xf32>
    %29 = tpu.matmul %27, %28, %cst_21 {dimension_numbers = #tpu.dot_dimension_numbers<[1], [0], [0], [1], [0, 0, 1, 1], [], []>} : vector<128x384xbf16>, vector<384x128xbf16>, vector<128x128xf32> -> vector<128x128xf32>
    %c0_22 = arith.constant 0 : index
    %c0_23 = arith.constant 0 : index
    %30 = vector.load %arg11[%c0_22, %c0_23] : memref<1x128xf32, #tpu.memory_space<vmem>>, vector<1x128xf32>
    %31 = vector.broadcast %30 : vector<1x128xf32> to vector<128x128xf32>
    %32 = arith.addf %29, %31 : vector<128x128xf32>
    %c0_24 = arith.constant 0 : index
    %c0_25 = arith.constant 0 : index
    %33 = vector.load %arg21[%c0_24, %c0_25] : memref<8x128xi32, #tpu.memory_space<vmem>>, vector<8x128xi32>
    %c0_26 = arith.constant 0 : index
    %c0_27 = arith.constant 0 : index
    %34 = vector.load %arg2[%c0_26, %c0_27] : memref<1x128xi32, #tpu.memory_space<vmem>>, vector<1x128xi32>
    %35 = vector.broadcast %34 : vector<1x128xi32> to vector<8x128xi32>
    %36 = arith.cmpi eq, %33, %35 : vector<8x128xi32>
    %37 = arith.extui %36 : vector<8x128xi1> to vector<8x128xi32>
    %38 = arith.sitofp %37 : vector<8x128xi32> to vector<8x128xf32>
    %39 = arith.truncf %38 : vector<8x128xf32> to vector<8x128xbf16>
    %c0_28 = arith.constant 0 : index
    %c0_29 = arith.constant 0 : index
    %40 = vector.load %arg20[%c0_28, %c0_29] : memref<8x128xf32, #tpu.memory_space<vmem>>, vector<8x128xf32>
    %41 = arith.truncf %32 : vector<128x128xf32> to vector<128x128xbf16>
    %cst_30 = arith.constant dense<0.000000e+00> : vector<8x128xf32>
    %42 = tpu.matmul %39, %41, %cst_30 {dimension_numbers = #tpu.dot_dimension_numbers<[1], [0], [0], [1], [0, 0, 1, 1], [], []>} : vector<8x128xbf16>, vector<128x128xbf16>, vector<8x128xf32> -> vector<8x128xf32>
    %43 = arith.addf %40, %42 : vector<8x128xf32>
    %c0_31 = arith.constant 0 : index
    %c0_32 = arith.constant 0 : index
    %44 = vector.load %arg20[%c0_31, %c0_32] : memref<8x128xf32, #tpu.memory_space<vmem>>, vector<8x128xf32>
    tpu.vector_store %arg20[%c0_31, %c0_32], %43 {strides = array<i32>} : memref<8x128xf32, #tpu.memory_space<vmem>>, vector<8x128xf32>,
    %c0_i32_33 = arith.constant 0 : i32
    %45 = arith.cmpi eq, %arg0, %c0_i32_33 : i32
    %46 = arith.extui %45 : i1 to i32
    %c0_i32_34 = arith.constant 0 : i32
    %47 = arith.cmpi ne, %46, %c0_i32_34 : i32
    scf.if %47 {
      %c0_35 = arith.constant 0 : index
      %c0_36 = arith.constant 0 : index
      %48 = vector.load %arg3[%c0_35, %c0_36] : memref<8x8xf32, #tpu.memory_space<vmem>>, vector<8x8xf32>
      %c0_37 = arith.constant 0 : index
      %c0_38 = arith.constant 0 : index
      %49 = vector.load %arg12[%c0_37, %c0_38] : memref<8x128xf32, #tpu.memory_space<vmem>>, vector<8x128xf32>
      %cst_39 = arith.constant dense<0.000000e+00> : vector<8x128xf32>
      %50 = tpu.matmul %48, %49, %cst_39 {dimension_numbers = #tpu.dot_dimension_numbers<[1], [0], [0], [1], [0, 0, 1, 1], [], []>} : vector<8x8xf32>, vector<8x128xf32>, vector<8x128xf32> -> vector<8x128xf32>
      %c0_40 = arith.constant 0 : index
      %c0_41 = arith.constant 0 : index
      %51 = vector.load %arg20[%c0_40, %c0_41] : memref<8x128xf32, #tpu.memory_space<vmem>>, vector<8x128xf32>
      %c0_42 = arith.constant 0 : index
      %c0_43 = arith.constant 0 : index
      %52 = vector.load %arg13[%c0_42, %c0_43] : memref<128x128xf32, #tpu.memory_space<vmem>>, vector<128x128xf32>
      %cst_44 = arith.constant dense<0.000000e+00> : vector<8x128xf32>
      %53 = tpu.matmul %51, %52, %cst_44 {dimension_numbers = #tpu.dot_dimension_numbers<[1], [0], [0], [1], [0, 0, 1, 1], [], []>} : vector<8x128xf32>, vector<128x128xf32>, vector<8x128xf32> -> vector<8x128xf32>
      %54 = arith.addf %50, %53 : vector<8x128xf32>
      %c0_45 = arith.constant 0 : index
      %c0_46 = arith.constant 0 : index
      %55 = vector.load %arg14[%c0_45, %c0_46] : memref<1x128xf32, #tpu.memory_space<vmem>>, vector<1x128xf32>
      %56 = vector.broadcast %55 : vector<1x128xf32> to vector<8x128xf32>
      %57 = arith.addf %54, %56 : vector<8x128xf32>
      %cst_47 = arith.constant 0.000000e+00 : f32
      %58 = vector.broadcast %cst_47 : f32 to vector<8x128xf32>
      %59 = arith.maximumf %57, %58 : vector<8x128xf32>
      %c0_48 = arith.constant 0 : index
      %c0_49 = arith.constant 0 : index
      %60 = vector.load %arg15[%c0_48, %c0_49] : memref<128x128xf32, #tpu.memory_space<vmem>>, vector<128x128xf32>
      %cst_50 = arith.constant dense<0.000000e+00> : vector<8x128xf32>
      %61 = tpu.matmul %59, %60, %cst_50 {dimension_numbers = #tpu.dot_dimension_numbers<[1], [0], [0], [1], [0, 0, 1, 1], [], []>} : vector<8x128xf32>, vector<128x128xf32>, vector<8x128xf32> -> vector<8x128xf32>
      %c0_51 = arith.constant 0 : index
      %c0_52 = arith.constant 0 : index
      %62 = vector.load %arg16[%c0_51, %c0_52] : memref<1x128xf32, #tpu.memory_space<vmem>>, vector<1x128xf32>
      %63 = vector.broadcast %62 : vector<1x128xf32> to vector<8x128xf32>
      %64 = arith.addf %61, %63 : vector<8x128xf32>
      %cst_53 = arith.constant 0.000000e+00 : f32
      %65 = vector.broadcast %cst_53 : f32 to vector<8x128xf32>
      %66 = arith.maximumf %64, %65 : vector<8x128xf32>
      %c0_54 = arith.constant 0 : index
      %c0_55 = arith.constant 0 : index
      %67 = vector.load %arg17[%c0_54, %c0_55] : memref<128x128xf32, #tpu.memory_space<vmem>>, vector<128x128xf32>
      %cst_56 = arith.constant dense<0.000000e+00> : vector<8x128xf32>
      %68 = tpu.matmul %66, %67, %cst_56 {dimension_numbers = #tpu.dot_dimension_numbers<[1], [0], [0], [1], [0, 0, 1, 1], [], []>} : vector<8x128xf32>, vector<128x128xf32>, vector<8x128xf32> -> vector<8x128xf32>
      %c0_57 = arith.constant 0 : index
      %c0_58 = arith.constant 0 : index
      %69 = vector.load %arg18[%c0_57, %c0_58] : memref<1x128xf32, #tpu.memory_space<vmem>>, vector<1x128xf32>
      %70 = vector.broadcast %69 : vector<1x128xf32> to vector<8x128xf32>
      %71 = arith.addf %68, %70 : vector<8x128xf32>
      %c0_59 = arith.constant 0 : index
      %c0_60 = arith.constant 0 : index
      %72 = vector.load %arg19[%c0_59, %c0_60] : memref<8x128xf32, #tpu.memory_space<vmem>>, vector<8x128xf32>
      tpu.vector_store %arg19[%c0_59, %c0_60], %71 {strides = array<i32>} : memref<8x128xf32, #tpu.memory_space<vmem>>, vector<8x128xf32>,
    } else {
    }
    return
  }
  func.func @transform_0(%arg0: i32) -> (i32, i32) {
    %c0_i32 = arith.constant 0 : i32
    %c0_i32_0 = arith.constant 0 : i32
    return %arg0, %c0_i32 : i32, i32
  }
  func.func @transform_1(%arg0: i32) -> (i32, i32) {
    %c0_i32 = arith.constant 0 : i32
    %c0_i32_0 = arith.constant 0 : i32
    return %c0_i32, %arg0 : i32, i32
  }
  func.func @transform_2(%arg0: i32) -> (i32, i32) {
    %c0_i32 = arith.constant 0 : i32
    %c0_i32_0 = arith.constant 0 : i32
    %c0_i32_1 = arith.constant 0 : i32
    return %c0_i32, %c0_i32_0 : i32, i32
  }
  func.func @transform_3(%arg0: i32) -> (i32, i32) {
    %c0_i32 = arith.constant 0 : i32
    %c0_i32_0 = arith.constant 0 : i32
    %c0_i32_1 = arith.constant 0 : i32
    return %c0_i32, %c0_i32_0 : i32, i32
  }
  func.func @transform_4(%arg0: i32) -> (i32, i32) {
    %c0_i32 = arith.constant 0 : i32
    %c0_i32_0 = arith.constant 0 : i32
    %c0_i32_1 = arith.constant 0 : i32
    return %c0_i32, %c0_i32_0 : i32, i32
  }
  func.func @transform_5(%arg0: i32) -> (i32, i32) {
    %c0_i32 = arith.constant 0 : i32
    %c0_i32_0 = arith.constant 0 : i32
    %c0_i32_1 = arith.constant 0 : i32
    return %c0_i32, %c0_i32_0 : i32, i32
  }
  func.func @transform_6(%arg0: i32) -> (i32, i32) {
    %c0_i32 = arith.constant 0 : i32
    %c0_i32_0 = arith.constant 0 : i32
    %c0_i32_1 = arith.constant 0 : i32
    return %c0_i32, %c0_i32_0 : i32, i32
  }
  func.func @transform_7(%arg0: i32) -> (i32, i32) {
    %c0_i32 = arith.constant 0 : i32
    %c0_i32_0 = arith.constant 0 : i32
    %c0_i32_1 = arith.constant 0 : i32
    return %c0_i32, %c0_i32_0 : i32, i32
  }
  func.func @transform_8(%arg0: i32) -> (i32, i32) {
    %c0_i32 = arith.constant 0 : i32
    %c0_i32_0 = arith.constant 0 : i32
    %c0_i32_1 = arith.constant 0 : i32
    return %c0_i32, %c0_i32_0 : i32, i32
  }
  func.func @transform_9(%arg0: i32) -> (i32, i32) {
    %c0_i32 = arith.constant 0 : i32
    %c0_i32_0 = arith.constant 0 : i32
    %c0_i32_1 = arith.constant 0 : i32
    return %c0_i32, %c0_i32_0 : i32, i32
  }
  func.func @transform_10(%arg0: i32) -> (i32, i32) {
    %c0_i32 = arith.constant 0 : i32
    %c0_i32_0 = arith.constant 0 : i32
    %c0_i32_1 = arith.constant 0 : i32
    return %c0_i32, %c0_i32_0 : i32, i32
  }
  func.func @transform_11(%arg0: i32) -> (i32, i32) {
    %c0_i32 = arith.constant 0 : i32
    %c0_i32_0 = arith.constant 0 : i32
    %c0_i32_1 = arith.constant 0 : i32
    return %c0_i32, %c0_i32_0 : i32, i32
  }
  func.func @transform_12(%arg0: i32) -> (i32, i32) {
    %c0_i32 = arith.constant 0 : i32
    %c0_i32_0 = arith.constant 0 : i32
    %c0_i32_1 = arith.constant 0 : i32
    return %c0_i32, %c0_i32_0 : i32, i32
  }
  func.func @transform_13(%arg0: i32) -> (i32, i32) {
    %c0_i32 = arith.constant 0 : i32
    %c0_i32_0 = arith.constant 0 : i32
    %c0_i32_1 = arith.constant 0 : i32
    return %c0_i32, %c0_i32_0 : i32, i32
  }
  func.func @transform_14(%arg0: i32) -> (i32, i32) {
    %c0_i32 = arith.constant 0 : i32
    %c0_i32_0 = arith.constant 0 : i32
    %c0_i32_1 = arith.constant 0 : i32
    return %c0_i32, %c0_i32_0 : i32, i32
  }
  func.func @transform_15(%arg0: i32) -> (i32, i32) {
    %c0_i32 = arith.constant 0 : i32
    %c0_i32_0 = arith.constant 0 : i32
    %c0_i32_1 = arith.constant 0 : i32
    return %c0_i32, %c0_i32_0 : i32, i32
  }
  func.func @transform_16(%arg0: i32) -> (i32, i32) {
    %c0_i32 = arith.constant 0 : i32
    %c0_i32_0 = arith.constant 0 : i32
    %c0_i32_1 = arith.constant 0 : i32
    return %c0_i32, %c0_i32_0 : i32, i32
  }
  func.func @transform_17(%arg0: i32) -> (i32, i32) {
    %c0_i32 = arith.constant 0 : i32
    %c0_i32_0 = arith.constant 0 : i32
    %c0_i32_1 = arith.constant 0 : i32
    return %c0_i32, %c0_i32_0 : i32, i32
  }
  func.func @transform_18(%arg0: i32) -> (i32, i32) {
    %c0_i32 = arith.constant 0 : i32
    %c0_i32_0 = arith.constant 0 : i32
    %c0_i32_1 = arith.constant 0 : i32
    return %c0_i32, %c0_i32_0 : i32, i32
  }
}

</mosaic_0001>

<llo_original>
// kernel: tpu_custom_call.1
$region0: #{tpu_custom_call.1}
  #allocation0 [shape = 'u32[]', space=smem, size = 0x4, offset = 0x4, fixed_abs, tag = 'smem constant byte address 0x4 - core index']
  #allocation1 [shape = 'u32[72,128]{1,0:T(1,128)}', space=vmem, size = 0x9000, scoped, tag = 'internal scratch']
  #allocation2 [shape = 'f32[8,128]{1,0:T(8,128)}', space=vmem, size = 0x1000, scoped, tag = 'scratch operand']
  #allocation3 [shape = 's32[8,128]{1,0:T(8,128)}', space=vmem, size = 0x1000, scoped, tag = 'scratch operand']
  %s0 = inlined_call_operand.vmem [shape: bf16[128,8], index: 0, kind: input, shape index: {}]
  %s1 = inlined_call_operand.vmem [shape: s32[1,128], index: 1, kind: input, shape index: {}]
  %s2 = inlined_call_operand.vmem [shape: f32[8,8], index: 2, kind: input, shape index: {}]
  %s3 = inlined_call_operand.vmem [shape: bf16[8,384], index: 3, kind: input, shape index: {}]
  %s4 = inlined_call_operand.vmem [shape: f32[1,384], index: 4, kind: input, shape index: {}]
  %s5 = inlined_call_operand.hbm [shape: bf16[384,384], index: 5, kind: input, shape index: {}]
  %s6 = inlined_call_operand.vmem [shape: f32[1,384], index: 6, kind: input, shape index: {}]
  %s7 = inlined_call_operand.hbm [shape: bf16[384,384], index: 7, kind: input, shape index: {}]
  %s8 = inlined_call_operand.vmem [shape: f32[1,384], index: 8, kind: input, shape index: {}]
  %s9 = inlined_call_operand.hbm [shape: bf16[384,128], index: 9, kind: input, shape index: {}]
  %s10 = inlined_call_operand.vmem [shape: f32[1,128], index: 10, kind: input, shape index: {}]
  %s11 = inlined_call_operand.vmem [shape: f32[8,128], index: 11, kind: input, shape index: {}]
  %s12 = inlined_call_operand.hbm [shape: f32[128,128], index: 12, kind: input, shape index: {}]
  %s13 = inlined_call_operand.vmem [shape: f32[1,128], index: 13, kind: input, shape index: {}]
  %s14 = inlined_call_operand.hbm [shape: f32[128,128], index: 14, kind: input, shape index: {}]
  %s15 = inlined_call_operand.vmem [shape: f32[1,128], index: 15, kind: input, shape index: {}]
  %s16 = inlined_call_operand.hbm [shape: f32[128,128], index: 16, kind: input, shape index: {}]
  %s17 = inlined_call_operand.vmem [shape: f32[1,128], index: 17, kind: input, shape index: {}]
  %s18 = inlined_call_operand.hbm [shape: f32[8,128], index: 18, kind: output, shape index: {}]
  %s19 = sld [smem:[#allocation0]]
  $region114: #{tpu_custom_call.1} parent=0
    _
  %s21 = ssub.s32 1, %s19
  %s22 = scalar_select 0, %s21, %s19
  $region1: #{tpu_custom_call.1} parent=0
    #allocation4 [shape = 'u8[294912]{0}', space=vmem, size = 0x48000, scoped, tag = 'input window, operand 5, single buffered']
    #allocation5 [shape = 's32[1]{0}', space=sflag, size = 0x4, scoped, tag = 'scoped memory for tpu_custom_call.1']
    #allocation6 [shape = 's32[1]{0}', space=sflag, size = 0x4, scoped, tag = 'scoped memory for tpu_custom_call.1']
    #allocation7 [shape = 'u8[294912]{0}', space=vmem, size = 0x48000, scoped, tag = 'input window, operand 7, single buffered']
    #allocation8 [shape = 's32[1]{0}', space=sflag, size = 0x4, scoped, tag = 'scoped memory for tpu_custom_call.1']
    #allocation9 [shape = 'u8[98304]{0}', space=vmem, size = 0x18000, scoped, tag = 'input window, operand 9, single buffered']
    #allocation10 [shape = 'u8[65536]{0}', space=vmem, size = 0x10000, scoped, tag = 'input window, operand 12, single buffered']
    #allocation11 [shape = 's32[1]{0}', space=sflag, size = 0x4, scoped, tag = 'scoped memory for tpu_custom_call.1']
    #allocation12 [shape = 'u8[65536]{0}', space=vmem, size = 0x10000, scoped, tag = 'input window, operand 14, single buffered']
    #allocation13 [shape = 'u8[65536]{0}', space=vmem, size = 0x10000, scoped, tag = 'input window, operand 16, single buffered']
    #allocation14 [shape = 's32[1]{0}', space=sflag, size = 0x4, scoped, tag = 'scoped memory for tpu_custom_call.1']
    #allocation15 [shape = 'u8[4096]{0}', space=vmem, size = 0x1000, scoped, tag = 'output window, operand 0, single buffered']
    %23 = vsyncpa [#allocation5], 0
    %24 = vsyncpa [#allocation8], 0
    %25 = vsyncpa [#allocation11], 0
    %26 = vsyncpa [#allocation14], 0
    %27 = vsyncpa [#allocation6], 0
    // Predicated region
    $region2: #{tpu_custom_call.1} parent=1 // pred_check
      _
    $region3: #{tpu_custom_call.1} parent=1 // pred_check_branch
      %29 = sbr.rel (0) target = $region5
    $region4: #{tpu_custom_call.1} parent=1 // pred_region
      _
    $region5: #{tpu_custom_call.1} parent=1 // pred_fallthru
      _
    // Predicated region
    $region6: #{tpu_custom_call.1} parent=1 // pred_check
      _
    $region7: #{tpu_custom_call.1} parent=1 // pred_check_branch
      %31 = sbr.rel (0) target = $region9
    $region8: #{tpu_custom_call.1} parent=1 // pred_region
      _
    $region9: #{tpu_custom_call.1} parent=1 // pred_fallthru
      _
    // Predicated region
    $region10: #{tpu_custom_call.1} parent=1 // pred_check
      _
    $region11: #{tpu_custom_call.1} parent=1 // pred_check_branch
      %33 = sbr.rel (0) target = $region13
    $region12: #{tpu_custom_call.1} parent=1 // pred_region
      _
    $region13: #{tpu_custom_call.1} parent=1 // pred_fallthru
      _
    // Predicated region
    $region14: #{tpu_custom_call.1} parent=1 // pred_check
      _
    $region15: #{tpu_custom_call.1} parent=1 // pred_check_branch
      %35 = sbr.rel (0) target = $region17
    $region16: #{tpu_custom_call.1} parent=1 // pred_region
      _
    $region17: #{tpu_custom_call.1} parent=1 // pred_fallthru
      _
    // Predicated region
    $region18: #{tpu_custom_call.1} parent=1 // pred_check
      _
    $region19: #{tpu_custom_call.1} parent=1 // pred_check_branch
      %37 = sbr.rel (0) target = $region21
    $region20: #{tpu_custom_call.1} parent=1 // pred_region
      _
    $region21: #{tpu_custom_call.1} parent=1 // pred_fallthru
      _
    // Predicated region
    $region22: #{tpu_custom_call.1} parent=1 // pred_check
      _
    $region23: #{tpu_custom_call.1} parent=1 // pred_check_branch
      %39 = sbr.rel (0) target = $region25
    $region24: #{tpu_custom_call.1} parent=1 // pred_region
      %41 = vsyncadd [#allocation5], 0
      %s42 = sshll.u32 %s5, 4
      %s43 = int_to_ptr.hbm [resolvable:$true] %s42
      %s44 = sshll.u32 [#allocation4], 4
      %s45 = int_to_ptr.vmem [resolvable:$true] %s44
      %50 = dma.hbm_to_vmem [thread:$0]  %s43, 9216, %s45, [#allocation5], 192, 192, 12
    $region25: #{tpu_custom_call.1} parent=1 // pred_fallthru
      _
    // Predicated region
    $region26: #{tpu_custom_call.1} parent=1 // pred_check
      _
    $region27: #{tpu_custom_call.1} parent=1 // pred_check_branch
      %52 = sbr.rel (0) target = $region29
    $region28: #{tpu_custom_call.1} parent=1 // pred_region
      _
    $region29: #{tpu_custom_call.1} parent=1 // pred_fallthru
      _
    // Predicated region
    $region30: #{tpu_custom_call.1} parent=1 // pred_check
      _
    $region31: #{tpu_custom_call.1} parent=1 // pred_check_branch
      %54 = sbr.rel (0) target = $region33
    $region32: #{tpu_custom_call.1} parent=1 // pred_region
      %56 = vsyncadd [#allocation8], 0
      %s57 = sshll.u32 %s7, 4
      %s58 = int_to_ptr.hbm [resolvable:$true] %s57
      %s59 = sshll.u32 [#allocation7], 4
      %s60 = int_to_ptr.vmem [resolvable:$true] %s59
      %65 = dma.hbm_to_vmem [thread:$0]  %s58, 9216, %s60, [#allocation8], 192, 192, 12
    $region33: #{tpu_custom_call.1} parent=1 // pred_fallthru
      _
    // Predicated region
    $region34: #{tpu_custom_call.1} parent=1 // pred_check
      _
    $region35: #{tpu_custom_call.1} parent=1 // pred_check_branch
      %67 = sbr.rel (0) target = $region37
    $region36: #{tpu_custom_call.1} parent=1 // pred_region
      _
    $region37: #{tpu_custom_call.1} parent=1 // pred_fallthru
      _
    // Predicated region
    $region38: #{tpu_custom_call.1} parent=1 // pred_check
      _
    $region39: #{tpu_custom_call.1} parent=1 // pred_check_branch
      %69 = sbr.rel (0) target = $region41
    $region40: #{tpu_custom_call.1} parent=1 // pred_region
      %71 = vsyncadd [#allocation8], 0
      %s72 = sshll.u32 %s9, 4
      %s73 = int_to_ptr.hbm [resolvable:$true] %s72
      %s74 = sshll.u32 [#allocation9], 4
      %s75 = int_to_ptr.vmem [resolvable:$true] %s74
      %80 = dma.hbm_to_vmem [thread:$0]  %s73, 3072, %s75, [#allocation8], 64, 64, 4
    $region41: #{tpu_custom_call.1} parent=1 // pred_fallthru
      _
    // Predicated region
    $region42: #{tpu_custom_call.1} parent=1 // pred_check
      _
    $region43: #{tpu_custom_call.1} parent=1 // pred_check_branch
      %82 = sbr.rel (0) target = $region45
    $region44: #{tpu_custom_call.1} parent=1 // pred_region
      _
    $region45: #{tpu_custom_call.1} parent=1 // pred_fallthru
      _
    // Predicated region
    $region46: #{tpu_custom_call.1} parent=1 // pred_check
      _
    $region47: #{tpu_custom_call.1} parent=1 // pred_check_branch
      %84 = sbr.rel (0) target = $region49
    $region48: #{tpu_custom_call.1} parent=1 // pred_region
      _
    $region49: #{tpu_custom_call.1} parent=1 // pred_fallthru
      _
    // Predicated region
    $region50: #{tpu_custom_call.1} parent=1 // pred_check
      _
    $region51: #{tpu_custom_call.1} parent=1 // pred_check_branch
      %86 = sbr.rel (0) target = $region53
    $region52: #{tpu_custom_call.1} parent=1 // pred_region
      %88 = vsyncadd [#allocation11], 0
      %s89 = sshll.u32 %s12, 4
      %s90 = int_to_ptr.hbm [resolvable:$true] %s89
      %s91 = sshll.u32 [#allocation10], 4
      %s92 = int_to_ptr.vmem [resolvable:$true] %s91
      %97 = dma.hbm_to_vmem [thread:$0]  %s90, 2048, %s92, [#allocation11], 128, 128, 8
    $region53: #{tpu_custom_call.1} parent=1 // pred_fallthru
      _
    // Predicated region
    $region54: #{tpu_custom_call.1} parent=1 // pred_check
      _
    $region55: #{tpu_custom_call.1} parent=1 // pred_check_branch
      %99 = sbr.rel (0) target = $region57
    $region56: #{tpu_custom_call.1} parent=1 // pred_region
      _
    $region57: #{tpu_custom_call.1} parent=1 // pred_fallthru
      _
    // Predicated region
    $region58: #{tpu_custom_call.1} parent=1 // pred_check
      _
    $region59: #{tpu_custom_call.1} parent=1 // pred_check_branch
      %101 = sbr.rel (0) target = $region61
    $region60: #{tpu_custom_call.1} parent=1 // pred_region
      %103 = vsyncadd [#allocation11], 0
      %s104 = sshll.u32 %s14, 4
      %s105 = int_to_ptr.hbm [resolvable:$true] %s104
      %s106 = sshll.u32 [#allocation12], 4
      %s107 = int_to_ptr.vmem [resolvable:$true] %s106
      %112 = dma.hbm_to_vmem [thread:$0]  %s105, 2048, %s107, [#allocation11], 128, 128, 8
    $region61: #{tpu_custom_call.1} parent=1 // pred_fallthru
      _
    // Predicated region
    $region62: #{tpu_custom_call.1} parent=1 // pred_check
      _
    $region63: #{tpu_custom_call.1} parent=1 // pred_check_branch
      %114 = sbr.rel (0) target = $region65
    $region64: #{tpu_custom_call.1} parent=1 // pred_region
      _
    $region65: #{tpu_custom_call.1} parent=1 // pred_fallthru
      _
    // Predicated region
    $region66: #{tpu_custom_call.1} parent=1 // pred_check
      _
    $region67: #{tpu_custom_call.1} parent=1 // pred_check_branch
      %116 = sbr.rel (0) target = $region69
    $region68: #{tpu_custom_call.1} parent=1 // pred_region
      %118 = vsyncadd [#allocation14], 0
      %s119 = sshll.u32 %s16, 4
      %s120 = int_to_ptr.hbm [resolvable:$true] %s119
      %s121 = sshll.u32 [#allocation13], 4
      %s122 = int_to_ptr.vmem [resolvable:$true] %s121
      %127 = dma.hbm_to_vmem [thread:$0]  %s120, 2048, %s122, [#allocation14], 128, 128, 8
    $region69: #{tpu_custom_call.1} parent=1 // pred_fallthru
      _
    // Predicated region
    $region70: #{tpu_custom_call.1} parent=1 // pred_check
      _
    $region71: #{tpu_custom_call.1} parent=1 // pred_check_branch
      %129 = sbr.rel (0) target = $region73
    $region72: #{tpu_custom_call.1} parent=1 // pred_region
      _
    $region73: #{tpu_custom_call.1} parent=1 // pred_fallthru
      _
    // Predicated region
    $region74: #{tpu_custom_call.1} parent=1 // pred_check
      _
    $region75: #{tpu_custom_call.1} parent=1 // pred_check_branch
      %131 = sbr.rel (0) target = $region77
    $region76: #{tpu_custom_call.1} parent=1 // pred_region
      %133 = dma.done [#allocation5], 9216
    $region77: #{tpu_custom_call.1} parent=1 // pred_fallthru
      _
    // Predicated region
    $region78: #{tpu_custom_call.1} parent=1 // pred_check
      _
    $region79: #{tpu_custom_call.1} parent=1 // pred_check_branch
      %135 = sbr.rel (0) target = $region81
    $region80: #{tpu_custom_call.1} parent=1 // pred_region
      %137 = dma.done [#allocation8], 9216
    $region81: #{tpu_custom_call.1} parent=1 // pred_fallthru
      _
    // Predicated region
    $region82: #{tpu_custom_call.1} parent=1 // pred_check
      _
    $region83: #{tpu_custom_call.1} parent=1 // pred_check_branch
      %139 = sbr.rel (0) target = $region85
    $region84: #{tpu_custom_call.1} parent=1 // pred_region
      %141 = dma.done [#allocation8], 3072
    $region85: #{tpu_custom_call.1} parent=1 // pred_fallthru
      _
    // Predicated region
    $region86: #{tpu_custom_call.1} parent=1 // pred_check
      _
    $region87: #{tpu_custom_call.1} parent=1 // pred_check_branch
      %143 = sbr.rel (0) target = $region89
    $region88: #{tpu_custom_call.1} parent=1 // pred_region
      %145 = dma.done [#allocation11], 2048
    $region89: #{tpu_custom_call.1} parent=1 // pred_fallthru
      _
    // Predicated region
    $region90: #{tpu_custom_call.1} parent=1 // pred_check
      _
    $region91: #{tpu_custom_call.1} parent=1 // pred_check_branch
      %147 = sbr.rel (0) target = $region93
    $region92: #{tpu_custom_call.1} parent=1 // pred_region
      %149 = dma.done [#allocation11], 2048
    $region93: #{tpu_custom_call.1} parent=1 // pred_fallthru
      _
    // Predicated region
    $region94: #{tpu_custom_call.1} parent=1 // pred_check
      _
    $region95: #{tpu_custom_call.1} parent=1 // pred_check_branch
      %151 = sbr.rel (0) target = $region97
    $region96: #{tpu_custom_call.1} parent=1 // pred_region
      %153 = dma.done [#allocation14], 2048
    $region97: #{tpu_custom_call.1} parent=1 // pred_fallthru
      _
    %p155 = scmp.eq.s32.totalorder 0, 0
    // Predicated region
    $region98: #{tpu_custom_call.1} parent=1 // pred_check
      %p156 = pneg %p155
    $region99: #{tpu_custom_call.1} parent=1 // pred_check_branch
      %158 = sbr.rel (%p156) target = $region101
    $region100: #{tpu_custom_call.1} parent=1 // pred_region
      %159 = vst [vmem:[#allocation2] sm:$0xff] 0.0
      %v160 = vlaneseq
      %v161 = vshrl.u32 %v160, 7
      %162 = vst [vmem:[#allocation3] sm:$0xff] %v161
    $region101: #{tpu_custom_call.1} parent=1 // pred_fallthru
      _
    %v163 = vld [vmem:[%s0] sm:$0xf]
    %v164 = vld [vmem:[%s0 + $0x4] sm:$0xf]
    %v165 = vld [vmem:[%s0 + $0x8] sm:$0xf]
    %v166 = vld [vmem:[%s0 + $0xc] sm:$0xf]
    %v167 = vld [vmem:[%s0 + $0x10] sm:$0xf]
    %v168 = vld [vmem:[%s0 + $0x14] sm:$0xf]
    %v169 = vld [vmem:[%s0 + $0x18] sm:$0xf]
    %v170 = vld [vmem:[%s0 + $0x1c] sm:$0xf]
    %v171 = vld [vmem:[%s0 + $0x20] sm:$0xf]
    %v172 = vld [vmem:[%s0 + $0x24] sm:$0xf]
    %v173 = vld [vmem:[%s0 + $0x28] sm:$0xf]
    %v174 = vld [vmem:[%s0 + $0x2c] sm:$0xf]
    %v175 = vld [vmem:[%s0 + $0x30] sm:$0xf]
    %v176 = vld [vmem:[%s0 + $0x34] sm:$0xf]
    %v177 = vld [vmem:[%s0 + $0x38] sm:$0xf]
    %v178 = vld [vmem:[%s0 + $0x3c] sm:$0xf]
    %v179 = vld [vmem:[%s3] sm:$0xff]
    %v180 = vld [vmem:[%s3 + $0x8] sm:$0xf]
    %v181 = vld [vmem:[%s4] sm:$0x7]
    %v183 = vperm.slane %v181, 0
    %v184 = vperm.slane %v181, 1
    %v185 = vperm.slane %v181, 2
    %v205 = vunpack.c.l.b16 %v163
    %v206 = vunpack.c.l.b16 %v164
    %v207 = vunpack.c.l.b16 %v165
    %v208 = vunpack.c.l.b16 %v166
    %v209 = vunpack.c.l.b16 %v167
    %v210 = vunpack.c.l.b16 %v168
    %v211 = vunpack.c.l.b16 %v169
    %v212 = vunpack.c.l.b16 %v170
    %v213 = vunpack.c.l.b16 %v171
    %v214 = vunpack.c.l.b16 %v172
    %v215 = vunpack.c.l.b16 %v173
    %v216 = vunpack.c.l.b16 %v174
    %v217 = vunpack.c.l.b16 %v175
    %v218 = vunpack.c.l.b16 %v176
    %v219 = vunpack.c.l.b16 %v177
    %v220 = vunpack.c.l.b16 %v178
    %v221 = vpack.c.b16 %v206, %v205
    %v222 = vpack.c.b16 %v208, %v207
    %v223 = vpack.c.b16 %v210, %v209
    %v224 = vpack.c.b16 %v212, %v211
    %v225 = vpack.c.b16 %v214, %v213
    %v226 = vpack.c.b16 %v216, %v215
    %v227 = vpack.c.b16 %v218, %v217
    %v228 = vpack.c.b16 %v220, %v219
    %v231 = vunpack.c.l.b16 %v179
    %v232 = vunpack.c.h.b16 %v179
    %v233 = vunpack.c.l.b16 %v180
    %v234 = vpack.c.b16 %v231, %v231
    %v235 = vpack.c.b16 %v232, %v232
    %v236 = vpack.c.b16 %v233, %v233
    %vm237 = vcmask 64512
    %v239 = vsel %vm237, %v221, 0
    %v242 = vsel %vm237, %v222, 0
    %v245 = vsel %vm237, %v223, 0
    %v248 = vsel %vm237, %v224, 0
    %v251 = vsel %vm237, %v225, 0
    %v254 = vsel %vm237, %v226, 0
    %v257 = vsel %vm237, %v227, 0
    %v260 = vsel %vm237, %v228, 0
    %vm262 = vcmask 1043456
    %v264 = vsel %vm262, %v234, 0
    %v267 = vsel %vm262, %v235, 0
    %v270 = vsel %vm262, %v236, 0
    %272 = vmatpush.bf16.msra.mxu0 0
    %273 = vmatpush.bf16.msra.mxu0 0
    %274 = vmatpush.bf16.msra.mxu0 0
    %275 = vmatpush.bf16.msra.mxu0 0
    %276 = vmatpush.bf16.msra.mxu0 0
    %277 = vmatpush.bf16.msra.mxu0 0
    %278 = vmatpush.bf16.msra.mxu0 0
    %279 = vmatpush.bf16.msra.mxu0 %v264
    %280 = vmatmul.bf16.gmra.mxu0 %v239
    %v281 = vpop.f32.mrf.mxu0
    %v282 = vadd.f32 %v183, %v281
    %v283 = vpop.f32.mrf.mxu0
    %v284 = vadd.f32 %v183, %v283
    %285 = vmatmul.bf16.gmra.mxu0 %v242
    %v286 = vpop.f32.mrf.mxu0
    %v287 = vadd.f32 %v183, %v286
    %v288 = vpop.f32.mrf.mxu0
    %v289 = vadd.f32 %v183, %v288
    %290 = vmatmul.bf16.gmra.mxu0 %v245
    %v291 = vpop.f32.mrf.mxu0
    %v292 = vadd.f32 %v183, %v291
    %v293 = vpop.f32.mrf.mxu0
    %v294 = vadd.f32 %v183, %v293
    %295 = vmatmul.bf16.gmra.mxu0 %v248
    %v296 = vpop.f32.mrf.mxu0
    %v297 = vadd.f32 %v183, %v296
    %v298 = vpop.f32.mrf.mxu0
    %v299 = vadd.f32 %v183, %v298
    %300 = vmatmul.bf16.gmra.mxu0 %v251
    %v301 = vpop.f32.mrf.mxu0
    %v302 = vadd.f32 %v183, %v301
    %v303 = vpop.f32.mrf.mxu0
    %v304 = vadd.f32 %v183, %v303
    %305 = vmatmul.bf16.gmra.mxu0 %v254
    %v306 = vpop.f32.mrf.mxu0
    %v307 = vadd.f32 %v183, %v306
    %v308 = vpop.f32.mrf.mxu0
    %v309 = vadd.f32 %v183, %v308
    %310 = vmatmul.bf16.gmra.mxu0 %v257
    %v311 = vpop.f32.mrf.mxu0
    %v312 = vadd.f32 %v183, %v311
    %v313 = vpop.f32.mrf.mxu0
    %v314 = vadd.f32 %v183, %v313
    %315 = vmatmul.bf16.gmra.mxu0 %v260
    %v316 = vpop.f32.mrf.mxu0
    %v317 = vadd.f32 %v183, %v316
    %v318 = vpop.f32.mrf.mxu0
    %v319 = vadd.f32 %v183, %v318
    %320 = vdwg.mxu0
    %321 = vmatpush.bf16.msra.mxu0 0
    %322 = vmatpush.bf16.msra.mxu0 0
    %323 = vmatpush.bf16.msra.mxu0 0
    %324 = vmatpush.bf16.msra.mxu0 0
    %325 = vmatpush.bf16.msra.mxu0 0
    %326 = vmatpush.bf16.msra.mxu0 0
    %327 = vmatpush.bf16.msra.mxu0 0
    %328 = vmatpush.bf16.msra.mxu0 %v267
    %329 = vmatmul.bf16.gmra.mxu0 %v239
    %v330 = vpop.f32.mrf.mxu0
    %v331 = vadd.f32 %v184, %v330
    %v332 = vpop.f32.mrf.mxu0
    %v333 = vadd.f32 %v184, %v332
    %334 = vmatmul.bf16.gmra.mxu0 %v242
    %v335 = vpop.f32.mrf.mxu0
    %v336 = vadd.f32 %v184, %v335
    %v337 = vpop.f32.mrf.mxu0
    %v338 = vadd.f32 %v184, %v337
    %339 = vmatmul.bf16.gmra.mxu0 %v245
    %v340 = vpop.f32.mrf.mxu0
    %v341 = vadd.f32 %v184, %v340
    %v342 = vpop.f32.mrf.mxu0
    %v343 = vadd.f32 %v184, %v342
    %344 = vmatmul.bf16.gmra.mxu0 %v248
    %v345 = vpop.f32.mrf.mxu0
    %v346 = vadd.f32 %v184, %v345
    %v347 = vpop.f32.mrf.mxu0
    %v348 = vadd.f32 %v184, %v347
    %349 = vmatmul.bf16.gmra.mxu0 %v251
    %v350 = vpop.f32.mrf.mxu0
    %v351 = vadd.f32 %v184, %v350
    %v352 = vpop.f32.mrf.mxu0
    %v353 = vadd.f32 %v184, %v352
    %354 = vmatmul.bf16.gmra.mxu0 %v254
    %v355 = vpop.f32.mrf.mxu0
    %v356 = vadd.f32 %v184, %v355
    %v357 = vpop.f32.mrf.mxu0
    %v358 = vadd.f32 %v184, %v357
    %359 = vmatmul.bf16.gmra.mxu0 %v257
    %v360 = vpop.f32.mrf.mxu0
    %v361 = vadd.f32 %v184, %v360
    %v362 = vpop.f32.mrf.mxu0
    %v363 = vadd.f32 %v184, %v362
    %364 = vmatmul.bf16.gmra.mxu0 %v260
    %v365 = vpop.f32.mrf.mxu0
    %v366 = vadd.f32 %v184, %v365
    %v367 = vpop.f32.mrf.mxu0
    %v368 = vadd.f32 %v184, %v367
    %369 = vdwg.mxu0
    %370 = vmatpush.bf16.msra.mxu0 0
    %371 = vmatpush.bf16.msra.mxu0 0
    %372 = vmatpush.bf16.msra.mxu0 0
    %373 = vmatpush.bf16.msra.mxu0 0
    %374 = vmatpush.bf16.msra.mxu0 0
    %375 = vmatpush.bf16.msra.mxu0 0
    %376 = vmatpush.bf16.msra.mxu0 0
    %377 = vmatpush.bf16.msra.mxu0 %v270
    %378 = vmatmul.bf16.gmra.mxu0 %v239
    %v379 = vpop.f32.mrf.mxu0
    %v380 = vadd.f32 %v185, %v379
    %v381 = vpop.f32.mrf.mxu0
    %v382 = vadd.f32 %v185, %v381
    %383 = vmatmul.bf16.gmra.mxu0 %v242
    %v384 = vpop.f32.mrf.mxu0
    %v385 = vadd.f32 %v185, %v384
    %v386 = vpop.f32.mrf.mxu0
    %v387 = vadd.f32 %v185, %v386
    %388 = vmatmul.bf16.gmra.mxu0 %v245
    %v389 = vpop.f32.mrf.mxu0
    %v390 = vadd.f32 %v185, %v389
    %v391 = vpop.f32.mrf.mxu0
    %v392 = vadd.f32 %v185, %v391
    %393 = vmatmul.bf16.gmra.mxu0 %v248
    %v394 = vpop.f32.mrf.mxu0
    %v395 = vadd.f32 %v185, %v394
    %v396 = vpop.f32.mrf.mxu0
    %v397 = vadd.f32 %v185, %v396
    %398 = vmatmul.bf16.gmra.mxu0 %v251
    %v399 = vpop.f32.mrf.mxu0
    %v400 = vadd.f32 %v185, %v399
    %v401 = vpop.f32.mrf.mxu0
    %v402 = vadd.f32 %v185, %v401
    %403 = vmatmul.bf16.gmra.mxu0 %v254
    %v404 = vpop.f32.mrf.mxu0
    %v405 = vadd.f32 %v185, %v404
    %v406 = vpop.f32.mrf.mxu0
    %v407 = vadd.f32 %v185, %v406
    %408 = vmatmul.bf16.gmra.mxu0 %v257
    %v409 = vpop.f32.mrf.mxu0
    %v410 = vadd.f32 %v185, %v409
    %v411 = vpop.f32.mrf.mxu0
    %v412 = vadd.f32 %v185, %v411
    %413 = vmatmul.bf16.gmra.mxu0 %v260
    %v414 = vpop.f32.mrf.mxu0
    %v415 = vadd.f32 %v185, %v414
    %v416 = vpop.f32.mrf.mxu0
    %v417 = vadd.f32 %v185, %v416
    %418 = vdwg.mxu0
    %v419 = vmax.f32 %v282, 0.0
    %v420 = vmax.f32 %v331, 0.0
    %v421 = vmax.f32 %v380, 0.0
    %v422 = vmax.f32 %v284, 0.0
    %v423 = vmax.f32 %v333, 0.0
    %v424 = vmax.f32 %v382, 0.0
    %v425 = vmax.f32 %v287, 0.0
    %v426 = vmax.f32 %v336, 0.0
    %v427 = vmax.f32 %v385, 0.0
    %v428 = vmax.f32 %v289, 0.0
    %v429 = vmax.f32 %v338, 0.0
    %v430 = vmax.f32 %v387, 0.0
    %v431 = vmax.f32 %v292, 0.0
    %v432 = vmax.f32 %v341, 0.0
    %v433 = vmax.f32 %v390, 0.0
    %v434 = vmax.f32 %v294, 0.0
    %v435 = vmax.f32 %v343, 0.0
    %v436 = vmax.f32 %v392, 0.0
    %v437 = vmax.f32 %v297, 0.0
    %v438 = vmax.f32 %v346, 0.0
    %v439 = vmax.f32 %v395, 0.0
    %v440 = vmax.f32 %v299, 0.0
    %v441 = vmax.f32 %v348, 0.0
    %v442 = vmax.f32 %v397, 0.0
    %v443 = vmax.f32 %v302, 0.0
    %v444 = vmax.f32 %v351, 0.0
    %v445 = vmax.f32 %v400, 0.0
    %v446 = vmax.f32 %v304, 0.0
    %v447 = vmax.f32 %v353, 0.0
    %v448 = vmax.f32 %v402, 0.0
    %v449 = vmax.f32 %v307, 0.0
    %v450 = vmax.f32 %v356, 0.0
    %v451 = vmax.f32 %v405, 0.0
    %v452 = vmax.f32 %v309, 0.0
    %v453 = vmax.f32 %v358, 0.0
    %v454 = vmax.f32 %v407, 0.0
    %v455 = vmax.f32 %v312, 0.0
    %v456 = vmax.f32 %v361, 0.0
    %v457 = vmax.f32 %v410, 0.0
    %v458 = vmax.f32 %v314, 0.0
    %v459 = vmax.f32 %v363, 0.0
    %v460 = vmax.f32 %v412, 0.0
    %v461 = vmax.f32 %v317, 0.0
    %v462 = vmax.f32 %v366, 0.0
    %v463 = vmax.f32 %v415, 0.0
    %v464 = vmax.f32 %v319, 0.0
    %v465 = vmax.f32 %v368, 0.0
    %v466 = vmax.f32 %v417, 0.0
    %v467 = vpack.c.bf16 %v422, %v419
    %v468 = vpack.c.bf16 %v423, %v420
    %v469 = vpack.c.bf16 %v424, %v421
    %v470 = vpack.c.bf16 %v428, %v425
    %v471 = vpack.c.bf16 %v429, %v426
    %v472 = vpack.c.bf16 %v430, %v427
    %v473 = vpack.c.bf16 %v434, %v431
    %v474 = vpack.c.bf16 %v435, %v432
    %v475 = vpack.c.bf16 %v436, %v433
    %v476 = vpack.c.bf16 %v440, %v437
    %v477 = vpack.c.bf16 %v441, %v438
    %v478 = vpack.c.bf16 %v442, %v439
    %v479 = vpack.c.bf16 %v446, %v443
    %v480 = vpack.c.bf16 %v447, %v444
    %v481 = vpack.c.bf16 %v448, %v445
    %v482 = vpack.c.bf16 %v452, %v449
    %v483 = vpack.c.bf16 %v453, %v450
    %v484 = vpack.c.bf16 %v454, %v451
    %v485 = vpack.c.bf16 %v458, %v455
    %v486 = vpack.c.bf16 %v459, %v456
    %v487 = vpack.c.bf16 %v460, %v457
    %v488 = vpack.c.bf16 %v464, %v461
    %v489 = vpack.c.bf16 %v465, %v462
    %v490 = vpack.c.bf16 %v466, %v463
    %v491 = vld [vmem:[#allocation4] sm:$0xff]
    %v492 = vld [vmem:[#allocation4 + $0x8] sm:$0xf]
    %v493 = vld [vmem:[#allocation4 + $0xc] sm:$0xff]
    %v494 = vld [vmem:[#allocation4 + $0x14] sm:$0xf]
    %v495 = vld [vmem:[#allocation4 + $0x18] sm:$0xff]
    %v496 = vld [vmem:[#allocation4 + $0x20] sm:$0xf]
    %v497 = vld [vmem:[#allocation4 + $0x24] sm:$0xff]
    %v498 = vld [vmem:[#allocation4 + $0x2c] sm:$0xf]
    %v499 = vld [vmem:[#allocation4 + $0x30] sm:$0xff]
    %v500 = vld [vmem:[#allocation4 + $0x38] sm:$0xf]
    %v501 = vld [vmem:[#allocation4 + $0x3c] sm:$0xff]
    %v502 = vld [vmem:[#allocation4 + $0x44] sm:$0xf]
    %v503 = vld [vmem:[#allocation4 + $0x48] sm:$0xff]
    %v504 = vld [vmem:[#allocation4 + $0x50] sm:$0xf]
    %v505 = vld [vmem:[#allocation4 + $0x54] sm:$0xff]
    %v506 = vld [vmem:[#allocation4 + $0x5c] sm:$0xf]
    %v507 = vld [vmem:[#allocation4 + $0x60] sm:$0xff]
    %v508 = vld [vmem:[#allocation4 + $0x68] sm:$0xf]
    %v509 = vld [vmem:[#allocation4 + $0x6c] sm:$0xff]
    %v510 = vld [vmem:[#allocation4 + $0x74] sm:$0xf]
    %v511 = vld [vmem:[#allocation4 + $0x78] sm:$0xff]
    %v512 = vld [vmem:[#allocation4 + $0x80] sm:$0xf]
    %v513 = vld [vmem:[#allocation4 + $0x84] sm:$0xff]
    %v514 = vld [vmem:[#allocation4 + $0x8c] sm:$0xf]
    %v515 = vld [vmem:[#allocation4 + $0x90] sm:$0xff]
    %v516 = vld [vmem:[#allocation4 + $0x98] sm:$0xf]
    %v517 = vld [vmem:[#allocation4 + $0x9c] sm:$0xff]
    %v518 = vld [vmem:[#allocation4 + $0xa4] sm:$0xf]
    %v519 = vld [vmem:[#allocation4 + $0xa8] sm:$0xff]
    %v520 = vld [vmem:[#allocation4 + $0xb0] sm:$0xf]
    %v521 = vld [vmem:[#allocation4 + $0xb4] sm:$0xff]
    %v522 = vld [vmem:[#allocation4 + $0xbc] sm:$0xf]
    %v523 = vld [vmem:[#allocation4 + $0xc0] sm:$0xff]
    %v524 = vld [vmem:[#allocation4 + $0xc8] sm:$0xf]
    %v525 = vld [vmem:[#allocation4 + $0xcc] sm:$0xff]
    %v526 = vld [vmem:[#allocation4 + $0xd4] sm:$0xf]
    %v527 = vld [vmem:[#allocation4 + $0xd8] sm:$0xff]
    %v528 = vld [vmem:[#allocation4 + $0xe0] sm:$0xf]
    %v529 = vld [vmem:[#allocation4 + $0xe4] sm:$0xff]
    %v530 = vld [vmem:[#allocation4 + $0xec] sm:$0xf]
    %v531 = vld [vmem:[#allocation4 + $0xf0] sm:$0xff]
    %v532 = vld [vmem:[#allocation4 + $0xf8] sm:$0xf]
    %v533 = vld [vmem:[#allocation4 + $0xfc] sm:$0xff]
    %v534 = vld [vmem:[#allocation4 + $0x104] sm:$0xf]
    %v535 = vld [vmem:[#allocation4 + $0x108] sm:$0xff]
    %v536 = vld [vmem:[#allocation4 + $0x110] sm:$0xf]
    %v537 = vld [vmem:[#allocation4 + $0x114] sm:$0xff]
    %v538 = vld [vmem:[#allocation4 + $0x11c] sm:$0xf]
    %v539 = vld [vmem:[#allocation4 + $0x120] sm:$0xff]
    %v540 = vld [vmem:[#allocation4 + $0x128] sm:$0xf]
    %v541 = vld [vmem:[#allocation4 + $0x12c] sm:$0xff]
    %v542 = vld [vmem:[#allocation4 + $0x134] sm:$0xf]
    %v543 = vld [vmem:[#allocation4 + $0x138] sm:$0xff]
    %v544 = vld [vmem:[#allocation4 + $0x140] sm:$0xf]
    %v545 = vld [vmem:[#allocation4 + $0x144] sm:$0xff]
    %v546 = vld [vmem:[#allocation4 + $0x14c] sm:$0xf]
    %v547 = vld [vmem:[#allocation4 + $0x150] sm:$0xff]
    %v548 = vld [vmem:[#allocation4 + $0x158] sm:$0xf]
    %v549 = vld [vmem:[#allocation4 + $0x15c] sm:$0xff]
    %v550 = vld [vmem:[#allocation4 + $0x164] sm:$0xf]
    %v551 = vld [vmem:[#allocation4 + $0x168] sm:$0xff]
    %v552 = vld [vmem:[#allocation4 + $0x170] sm:$0xf]
    %v553 = vld [vmem:[#allocation4 + $0x174] sm:$0xff]
    %v554 = vld [vmem:[#allocation4 + $0x17c] sm:$0xf]
    %v555 = vld [vmem:[#allocation4 + $0x180] sm:$0xff]
    %v556 = vld [vmem:[#allocation4 + $0x188] sm:$0xf]
    %v557 = vld [vmem:[#allocation4 + $0x18c] sm:$0xff]
    %v558 = vld [vmem:[#allocation4 + $0x194] sm:$0xf]
    %v559 = vld [vmem:[#allocation4 + $0x198] sm:$0xff]
    %v560 = vld [vmem:[#allocation4 + $0x1a0] sm:$0xf]
    %v561 = vld [vmem:[#allocation4 + $0x1a4] sm:$0xff]
    %v562 = vld [vmem:[#allocation4 + $0x1ac] sm:$0xf]
    %v563 = vld [vmem:[#allocation4 + $0x1b0] sm:$0xff]
    %v564 = vld [vmem:[#allocation4 + $0x1b8] sm:$0xf]
    %v565 = vld [vmem:[#allocation4 + $0x1bc] sm:$0xff]
    %v566 = vld [vmem:[#allocation4 + $0x1c4] sm:$0xf]
    %v567 = vld [vmem:[#allocation4 + $0x1c8] sm:$0xff]
    %v568 = vld [vmem:[#allocation4 + $0x1d0] sm:$0xf]
    %v569 = vld [vmem:[#allocation4 + $0x1d4] sm:$0xff]
    %v570 = vld [vmem:[#allocation4 + $0x1dc] sm:$0xf]
    %v571 = vld [vmem:[#allocation4 + $0x1e0] sm:$0xff]
    %v572 = vld [vmem:[#allocation4 + $0x1e8] sm:$0xf]
    %v573 = vld [vmem:[#allocation4 + $0x1ec] sm:$0xff]
    %v574 = vld [vmem:[#allocation4 + $0x1f4] sm:$0xf]
    %v575 = vld [vmem:[#allocation4 + $0x1f8] sm:$0xff]
    %v576 = vld [vmem:[#allocation4 + $0x200] sm:$0xf]
    %v577 = vld [vmem:[#allocation4 + $0x204] sm:$0xff]
    %v578 = vld [vmem:[#allocation4 + $0x20c] sm:$0xf]
    %v579 = vld [vmem:[#allocation4 + $0x210] sm:$0xff]
    %v580 = vld [vmem:[#allocation4 + $0x218] sm:$0xf]
    %v581 = vld [vmem:[#allocation4 + $0x21c] sm:$0xff]
    %v582 = vld [vmem:[#allocation4 + $0x224] sm:$0xf]
    %v583 = vld [vmem:[#allocation4 + $0x228] sm:$0xff]
    %v584 = vld [vmem:[#allocation4 + $0x230] sm:$0xf]
    %v585 = vld [vmem:[#allocation4 + $0x234] sm:$0xff]
    %v586 = vld [vmem:[#allocation4 + $0x23c] sm:$0xf]
    %v587 = vld [vmem:[%s6] sm:$0x7]
    %v589 = vperm.slane %v587, 0
    %v590 = vperm.slane %v587, 1
    %v591 = vperm.slane %v587, 2
    %v691 = vunpack.c.l.b16 %v491
    %v692 = vunpack.c.h.b16 %v491
    %v693 = vunpack.c.l.b16 %v492
    %v694 = vunpack.c.l.b16 %v493
    %v695 = vunpack.c.h.b16 %v493
    %v696 = vunpack.c.l.b16 %v494
    %v697 = vunpack.c.l.b16 %v495
    %v698 = vunpack.c.h.b16 %v495
    %v699 = vunpack.c.l.b16 %v496
    %v700 = vunpack.c.l.b16 %v497
    %v701 = vunpack.c.h.b16 %v497
    %v702 = vunpack.c.l.b16 %v498
    %v703 = vunpack.c.l.b16 %v499
    %v704 = vunpack.c.h.b16 %v499
    %v705 = vunpack.c.l.b16 %v500
    %v706 = vunpack.c.l.b16 %v501
    %v707 = vunpack.c.h.b16 %v501
    %v708 = vunpack.c.l.b16 %v502
    %v709 = vunpack.c.l.b16 %v503
    %v710 = vunpack.c.h.b16 %v503
    %v711 = vunpack.c.l.b16 %v504
    %v712 = vunpack.c.l.b16 %v505
    %v713 = vunpack.c.h.b16 %v505
    %v714 = vunpack.c.l.b16 %v506
    %v715 = vunpack.c.l.b16 %v507
    %v716 = vunpack.c.h.b16 %v507
    %v717 = vunpack.c.l.b16 %v508
    %v718 = vunpack.c.l.b16 %v509
    %v719 = vunpack.c.h.b16 %v509
    %v720 = vunpack.c.l.b16 %v510
    %v721 = vunpack.c.l.b16 %v511
    %v722 = vunpack.c.h.b16 %v511
    %v723 = vunpack.c.l.b16 %v512
    %v724 = vunpack.c.l.b16 %v513
    %v725 = vunpack.c.h.b16 %v513
    %v726 = vunpack.c.l.b16 %v514
    %v727 = vunpack.c.l.b16 %v515
    %v728 = vunpack.c.h.b16 %v515
    %v729 = vunpack.c.l.b16 %v516
    %v730 = vunpack.c.l.b16 %v517
    %v731 = vunpack.c.h.b16 %v517
    %v732 = vunpack.c.l.b16 %v518
    %v733 = vunpack.c.l.b16 %v519
    %v734 = vunpack.c.h.b16 %v519
    %v735 = vunpack.c.l.b16 %v520
    %v736 = vunpack.c.l.b16 %v521
    %v737 = vunpack.c.h.b16 %v521
    %v738 = vunpack.c.l.b16 %v522
    %v739 = vunpack.c.l.b16 %v523
    %v740 = vunpack.c.h.b16 %v523
    %v741 = vunpack.c.l.b16 %v524
    %v742 = vunpack.c.l.b16 %v525
    %v743 = vunpack.c.h.b16 %v525
    %v744 = vunpack.c.l.b16 %v526
    %v745 = vunpack.c.l.b16 %v527
    %v746 = vunpack.c.h.b16 %v527
    %v747 = vunpack.c.l.b16 %v528
    %v748 = vunpack.c.l.b16 %v529
    %v749 = vunpack.c.h.b16 %v529
    %v750 = vunpack.c.l.b16 %v530
    %v751 = vunpack.c.l.b16 %v531
    %v752 = vunpack.c.h.b16 %v531
    %v753 = vunpack.c.l.b16 %v532
    %v754 = vunpack.c.l.b16 %v533
    %v755 = vunpack.c.h.b16 %v533
    %v756 = vunpack.c.l.b16 %v534
    %v757 = vunpack.c.l.b16 %v535
    %v758 = vunpack.c.h.b16 %v535
    %v759 = vunpack.c.l.b16 %v536
    %v760 = vunpack.c.l.b16 %v537
    %v761 = vunpack.c.h.b16 %v537
    %v762 = vunpack.c.l.b16 %v538
    %v763 = vunpack.c.l.b16 %v539
    %v764 = vunpack.c.h.b16 %v539
    %v765 = vunpack.c.l.b16 %v540
    %v766 = vunpack.c.l.b16 %v541
    %v767 = vunpack.c.h.b16 %v541
    %v768 = vunpack.c.l.b16 %v542
    %v769 = vunpack.c.l.b16 %v543
    %v770 = vunpack.c.h.b16 %v543
    %v771 = vunpack.c.l.b16 %v544
    %v772 = vunpack.c.l.b16 %v545
    %v773 = vunpack.c.h.b16 %v545
    %v774 = vunpack.c.l.b16 %v546
    %v775 = vunpack.c.l.b16 %v547
    %v776 = vunpack.c.h.b16 %v547
    %v777 = vunpack.c.l.b16 %v548
    %v778 = vunpack.c.l.b16 %v549
    %v779 = vunpack.c.h.b16 %v549
    %v780 = vunpack.c.l.b16 %v550
    %v781 = vunpack.c.l.b16 %v551
    %v782 = vunpack.c.h.b16 %v551
    %v783 = vunpack.c.l.b16 %v552
    %v784 = vunpack.c.l.b16 %v553
    %v785 = vunpack.c.h.b16 %v553
    %v786 = vunpack.c.l.b16 %v554
    %v787 = vunpack.c.l.b16 %v555
    %v788 = vunpack.c.h.b16 %v555
    %v789 = vunpack.c.l.b16 %v556
    %v790 = vunpack.c.l.b16 %v557
    %v791 = vunpack.c.h.b16 %v557
    %v792 = vunpack.c.l.b16 %v558
    %v793 = vunpack.c.l.b16 %v559
    %v794 = vunpack.c.h.b16 %v559
    %v795 = vunpack.c.l.b16 %v560
    %v796 = vunpack.c.l.b16 %v561
    %v797 = vunpack.c.h.b16 %v561
    %v798 = vunpack.c.l.b16 %v562
    %v799 = vunpack.c.l.b16 %v563
    %v800 = vunpack.c.h.b16 %v563
    %v801 = vunpack.c.l.b16 %v564
    %v802 = vunpack.c.l.b16 %v565
    %v803 = vunpack.c.h.b16 %v565
    %v804 = vunpack.c.l.b16 %v566
    %v805 = vunpack.c.l.b16 %v567
    %v806 = vunpack.c.h.b16 %v567
    %v807 = vunpack.c.l.b16 %v568
    %v808 = vunpack.c.l.b16 %v569
    %v809 = vunpack.c.h.b16 %v569
    %v810 = vunpack.c.l.b16 %v570
    %v811 = vunpack.c.l.b16 %v571
    %v812 = vunpack.c.h.b16 %v571
    %v813 = vunpack.c.l.b16 %v572
    %v814 = vunpack.c.l.b16 %v573
    %v815 = vunpack.c.h.b16 %v573
    %v816 = vunpack.c.l.b16 %v574
    %v817 = vunpack.c.l.b16 %v575
    %v818 = vunpack.c.h.b16 %v575
    %v819 = vunpack.c.l.b16 %v576
    %v820 = vunpack.c.l.b16 %v577
    %v821 = vunpack.c.h.b16 %v577
    %v822 = vunpack.c.l.b16 %v578
    %v823 = vunpack.c.l.b16 %v579
    %v824 = vunpack.c.h.b16 %v579
    %v825 = vunpack.c.l.b16 %v580
    %v826 = vunpack.c.l.b16 %v581
    %v827 = vunpack.c.h.b16 %v581
    %v828 = vunpack.c.l.b16 %v582
    %v829 = vunpack.c.l.b16 %v583
    %v830 = vunpack.c.h.b16 %v583
    %v831 = vunpack.c.l.b16 %v584
    %v832 = vunpack.c.l.b16 %v585
    %v833 = vunpack.c.h.b16 %v585
    %v834 = vunpack.c.l.b16 %v586
    %v835 = vpack.c.b16 %v694, %v691
    %v836 = vpack.c.b16 %v695, %v692
    %v837 = vpack.c.b16 %v696, %v693
    %v838 = vpack.c.b16 %v700, %v697
    %v839 = vpack.c.b16 %v701, %v698
    %v840 = vpack.c.b16 %v702, %v699
    %v841 = vpack.c.b16 %v706, %v703
    %v842 = vpack.c.b16 %v707, %v704
    %v843 = vpack.c.b16 %v708, %v705
    %v844 = vpack.c.b16 %v712, %v709
    %v845 = vpack.c.b16 %v713, %v710
    %v846 = vpack.c.b16 %v714, %v711
    %v847 = vpack.c.b16 %v718, %v715
    %v848 = vpack.c.b16 %v719, %v716
    %v849 = vpack.c.b16 %v720, %v717
    %v850 = vpack.c.b16 %v724, %v721
    %v851 = vpack.c.b16 %v725, %v722
    %v852 = vpack.c.b16 %v726, %v723
    %v853 = vpack.c.b16 %v730, %v727
    %v854 = vpack.c.b16 %v731, %v728
    %v855 = vpack.c.b16 %v732, %v729
    %v856 = vpack.c.b16 %v736, %v733
    %v857 = vpack.c.b16 %v737, %v734
    %v858 = vpack.c.b16 %v738, %v735
    %v859 = vpack.c.b16 %v742, %v739
    %v860 = vpack.c.b16 %v743, %v740
    %v861 = vpack.c.b16 %v744, %v741
    %v862 = vpack.c.b16 %v748, %v745
    %v863 = vpack.c.b16 %v749, %v746
    %v864 = vpack.c.b16 %v750, %v747
    %v865 = vpack.c.b16 %v754, %v751
    %v866 = vpack.c.b16 %v755, %v752
    %v867 = vpack.c.b16 %v756, %v753
    %v868 = vpack.c.b16 %v760, %v757
    %v869 = vpack.c.b16 %v761, %v758
    %v870 = vpack.c.b16 %v762, %v759
    %v871 = vpack.c.b16 %v766, %v763
    %v872 = vpack.c.b16 %v767, %v764
    %v873 = vpack.c.b16 %v768, %v765
    %v874 = vpack.c.b16 %v772, %v769
    %v875 = vpack.c.b16 %v773, %v770
    %v876 = vpack.c.b16 %v774, %v771
    %v877 = vpack.c.b16 %v778, %v775
    %v878 = vpack.c.b16 %v779, %v776
    %v879 = vpack.c.b16 %v780, %v777
    %v880 = vpack.c.b16 %v784, %v781
    %v881 = vpack.c.b16 %v785, %v782
    %v882 = vpack.c.b16 %v786, %v783
    %v883 = vpack.c.b16 %v790, %v787
    %v884 = vpack.c.b16 %v791, %v788
    %v885 = vpack.c.b16 %v792, %v789
    %v886 = vpack.c.b16 %v796, %v793
    %v887 = vpack.c.b16 %v797, %v794
    %v888 = vpack.c.b16 %v798, %v795
    %v889 = vpack.c.b16 %v802, %v799
    %v890 = vpack.c.b16 %v803, %v800
    %v891 = vpack.c.b16 %v804, %v801
    %v892 = vpack.c.b16 %v808, %v805
    %v893 = vpack.c.b16 %v809, %v806
    %v894 = vpack.c.b16 %v810, %v807
    %v895 = vpack.c.b16 %v814, %v811
    %v896 = vpack.c.b16 %v815, %v812
    %v897 = vpack.c.b16 %v816, %v813
    %v898 = vpack.c.b16 %v820, %v817
    %v899 = vpack.c.b16 %v821, %v818
    %v900 = vpack.c.b16 %v822, %v819
    %v901 = vpack.c.b16 %v826, %v823
    %v902 = vpack.c.b16 %v827, %v824
    %v903 = vpack.c.b16 %v828, %v825
    %v904 = vpack.c.b16 %v832, %v829
    %v905 = vpack.c.b16 %v833, %v830
    %v906 = vpack.c.b16 %v834, %v831
    %979 = vmatpush.bf16.msra.mxu0 %v856
    %980 = vmatpush.bf16.msra.mxu0 %v853
    %981 = vmatpush.bf16.msra.mxu0 %v850
    %982 = vmatpush.bf16.msra.mxu0 %v847
    %983 = vmatpush.bf16.msra.mxu0 %v844
    %984 = vmatpush.bf16.msra.mxu0 %v841
    %985 = vmatpush.bf16.msra.mxu0 %v838
    %986 = vmatpush.bf16.msra.mxu0 %v835
    %987 = vmatmul.bf16.gmra.mxu0 %v467
    %v988 = vpop.f32.mrf.mxu0
    %v989 = vadd.f32 %v589, %v988
    %v990 = vpop.f32.mrf.mxu0
    %v991 = vadd.f32 %v589, %v990
    %992 = vmatmul.bf16.gmra.mxu0 %v470
    %v993 = vpop.f32.mrf.mxu0
    %v994 = vadd.f32 %v589, %v993
    %v995 = vpop.f32.mrf.mxu0
    %v996 = vadd.f32 %v589, %v995
    %997 = vmatmul.bf16.gmra.mxu0 %v473
    %v998 = vpop.f32.mrf.mxu0
    %v999 = vadd.f32 %v589, %v998
    %v1000 = vpop.f32.mrf.mxu0
    %v1001 = vadd.f32 %v589, %v1000
    %1002 = vmatmul.bf16.gmra.mxu0 %v476
    %v1003 = vpop.f32.mrf.mxu0
    %v1004 = vadd.f32 %v589, %v1003
    %v1005 = vpop.f32.mrf.mxu0
    %v1006 = vadd.f32 %v589, %v1005
    %1007 = vmatmul.bf16.gmra.mxu0 %v479
    %v1008 = vpop.f32.mrf.mxu0
    %v1009 = vadd.f32 %v589, %v1008
    %v1010 = vpop.f32.mrf.mxu0
    %v1011 = vadd.f32 %v589, %v1010
    %1012 = vmatmul.bf16.gmra.mxu0 %v482
    %v1013 = vpop.f32.mrf.mxu0
    %v1014 = vadd.f32 %v589, %v1013
    %v1015 = vpop.f32.mrf.mxu0
    %v1016 = vadd.f32 %v589, %v1015
    %1017 = vmatmul.bf16.gmra.mxu0 %v485
    %v1018 = vpop.f32.mrf.mxu0
    %v1019 = vadd.f32 %v589, %v1018
    %v1020 = vpop.f32.mrf.mxu0
    %v1021 = vadd.f32 %v589, %v1020
    %1022 = vmatmul.bf16.gmra.mxu0 %v488
    %v1023 = vpop.f32.mrf.mxu0
    %v1024 = vadd.f32 %v589, %v1023
    %v1025 = vpop.f32.mrf.mxu0
    %v1026 = vadd.f32 %v589, %v1025
    %1027 = vdwg.mxu0
    %1028 = vmatpush.bf16.msra.mxu0 %v880
    %1029 = vmatpush.bf16.msra.mxu0 %v877
    %1030 = vmatpush.bf16.msra.mxu0 %v874
    %1031 = vmatpush.bf16.msra.mxu0 %v871
    %1032 = vmatpush.bf16.msra.mxu0 %v868
    %1033 = vmatpush.bf16.msra.mxu0 %v865
    %1034 = vmatpush.bf16.msra.mxu0 %v862
    %1035 = vmatpush.bf16.msra.mxu0 %v859
    %1036 = vmatmul.bf16.gmra.mxu0 %v468
    %v1037 = vpop.f32.mrf.mxu0
    %v1038 = vadd.f32 %v989, %v1037
    %v1039 = vpop.f32.mrf.mxu0
    %v1040 = vadd.f32 %v991, %v1039
    %1041 = vmatmul.bf16.gmra.mxu0 %v471
    %v1042 = vpop.f32.mrf.mxu0
    %v1043 = vadd.f32 %v994, %v1042
    %v1044 = vpop.f32.mrf.mxu0
    %v1045 = vadd.f32 %v996, %v1044
    %1046 = vmatmul.bf16.gmra.mxu0 %v474
    %v1047 = vpop.f32.mrf.mxu0
    %v1048 = vadd.f32 %v999, %v1047
    %v1049 = vpop.f32.mrf.mxu0
    %v1050 = vadd.f32 %v1001, %v1049
    %1051 = vmatmul.bf16.gmra.mxu0 %v477
    %v1052 = vpop.f32.mrf.mxu0
    %v1053 = vadd.f32 %v1004, %v1052
    %v1054 = vpop.f32.mrf.mxu0
    %v1055 = vadd.f32 %v1006, %v1054
    %1056 = vmatmul.bf16.gmra.mxu0 %v480
    %v1057 = vpop.f32.mrf.mxu0
    %v1058 = vadd.f32 %v1009, %v1057
    %v1059 = vpop.f32.mrf.mxu0
    %v1060 = vadd.f32 %v1011, %v1059
    %1061 = vmatmul.bf16.gmra.mxu0 %v483
    %v1062 = vpop.f32.mrf.mxu0
    %v1063 = vadd.f32 %v1014, %v1062
    %v1064 = vpop.f32.mrf.mxu0
    %v1065 = vadd.f32 %v1016, %v1064
    %1066 = vmatmul.bf16.gmra.mxu0 %v486
    %v1067 = vpop.f32.mrf.mxu0
    %v1068 = vadd.f32 %v1019, %v1067
    %v1069 = vpop.f32.mrf.mxu0
    %v1070 = vadd.f32 %v1021, %v1069
    %1071 = vmatmul.bf16.gmra.mxu0 %v489
    %v1072 = vpop.f32.mrf.mxu0
    %v1073 = vadd.f32 %v1024, %v1072
    %v1074 = vpop.f32.mrf.mxu0
    %v1075 = vadd.f32 %v1026, %v1074
    %1076 = vdwg.mxu0
    %1077 = vmatpush.bf16.msra.mxu0 %v904
    %1078 = vmatpush.bf16.msra.mxu0 %v901
    %1079 = vmatpush.bf16.msra.mxu0 %v898
    %1080 = vmatpush.bf16.msra.mxu0 %v895
    %1081 = vmatpush.bf16.msra.mxu0 %v892
    %1082 = vmatpush.bf16.msra.mxu0 %v889
    %1083 = vmatpush.bf16.msra.mxu0 %v886
    %1084 = vmatpush.bf16.msra.mxu0 %v883
    %1085 = vmatmul.bf16.gmra.mxu0 %v469
    %v1086 = vpop.f32.mrf.mxu0
    %v1087 = vadd.f32 %v1038, %v1086
    %v1088 = vpop.f32.mrf.mxu0
    %v1089 = vadd.f32 %v1040, %v1088
    %1090 = vmatmul.bf16.gmra.mxu0 %v472
    %v1091 = vpop.f32.mrf.mxu0
    %v1092 = vadd.f32 %v1043, %v1091
    %v1093 = vpop.f32.mrf.mxu0
    %v1094 = vadd.f32 %v1045, %v1093
    %1095 = vmatmul.bf16.gmra.mxu0 %v475
    %v1096 = vpop.f32.mrf.mxu0
    %v1097 = vadd.f32 %v1048, %v1096
    %v1098 = vpop.f32.mrf.mxu0
    %v1099 = vadd.f32 %v1050, %v1098
    %1100 = vmatmul.bf16.gmra.mxu0 %v478
    %v1101 = vpop.f32.mrf.mxu0
    %v1102 = vadd.f32 %v1053, %v1101
    %v1103 = vpop.f32.mrf.mxu0
    %v1104 = vadd.f32 %v1055, %v1103
    %1105 = vmatmul.bf16.gmra.mxu0 %v481
    %v1106 = vpop.f32.mrf.mxu0
    %v1107 = vadd.f32 %v1058, %v1106
    %v1108 = vpop.f32.mrf.mxu0
    %v1109 = vadd.f32 %v1060, %v1108
    %1110 = vmatmul.bf16.gmra.mxu0 %v484
    %v1111 = vpop.f32.mrf.mxu0
    %v1112 = vadd.f32 %v1063, %v1111
    %v1113 = vpop.f32.mrf.mxu0
    %v1114 = vadd.f32 %v1065, %v1113
    %1115 = vmatmul.bf16.gmra.mxu0 %v487
    %v1116 = vpop.f32.mrf.mxu0
    %v1117 = vadd.f32 %v1068, %v1116
    %v1118 = vpop.f32.mrf.mxu0
    %v1119 = vadd.f32 %v1070, %v1118
    %1120 = vmatmul.bf16.gmra.mxu0 %v490
    %v1121 = vpop.f32.mrf.mxu0
    %v1122 = vadd.f32 %v1073, %v1121
    %v1123 = vpop.f32.mrf.mxu0
    %v1124 = vadd.f32 %v1075, %v1123
    %1125 = vdwg.mxu0
    %1126 = vmatpush.bf16.msra.mxu0 %v857
    %1127 = vmatpush.bf16.msra.mxu0 %v854
    %1128 = vmatpush.bf16.msra.mxu0 %v851
    %1129 = vmatpush.bf16.msra.mxu0 %v848
    %1130 = vmatpush.bf16.msra.mxu0 %v845
    %1131 = vmatpush.bf16.msra.mxu0 %v842
    %1132 = vmatpush.bf16.msra.mxu0 %v839
    %1133 = vmatpush.bf16.msra.mxu0 %v836
    %1134 = vmatmul.bf16.gmra.mxu0 %v467
    %v1135 = vpop.f32.mrf.mxu0
    %v1136 = vadd.f32 %v590, %v1135
    %v1137 = vpop.f32.mrf.mxu0
    %v1138 = vadd.f32 %v590, %v1137
    %1139 = vmatmul.bf16.gmra.mxu0 %v470
    %v1140 = vpop.f32.mrf.mxu0
    %v1141 = vadd.f32 %v590, %v1140
    %v1142 = vpop.f32.mrf.mxu0
    %v1143 = vadd.f32 %v590, %v1142
    %1144 = vmatmul.bf16.gmra.mxu0 %v473
    %v1145 = vpop.f32.mrf.mxu0
    %v1146 = vadd.f32 %v590, %v1145
    %v1147 = vpop.f32.mrf.mxu0
    %v1148 = vadd.f32 %v590, %v1147
    %1149 = vmatmul.bf16.gmra.mxu0 %v476
    %v1150 = vpop.f32.mrf.mxu0
    %v1151 = vadd.f32 %v590, %v1150
    %v1152 = vpop.f32.mrf.mxu0
    %v1153 = vadd.f32 %v590, %v1152
    %1154 = vmatmul.bf16.gmra.mxu0 %v479
    %v1155 = vpop.f32.mrf.mxu0
    %v1156 = vadd.f32 %v590, %v1155
    %v1157 = vpop.f32.mrf.mxu0
    %v1158 = vadd.f32 %v590, %v1157
    %1159 = vmatmul.bf16.gmra.mxu0 %v482
    %v1160 = vpop.f32.mrf.mxu0
    %v1161 = vadd.f32 %v590, %v1160
    %v1162 = vpop.f32.mrf.mxu0
    %v1163 = vadd.f32 %v590, %v1162
    %1164 = vmatmul.bf16.gmra.mxu0 %v485
    %v1165 = vpop.f32.mrf.mxu0
    %v1166 = vadd.f32 %v590, %v1165
    %v1167 = vpop.f32.mrf.mxu0
    %v1168 = vadd.f32 %v590, %v1167
    %1169 = vmatmul.bf16.gmra.mxu0 %v488
    %v1170 = vpop.f32.mrf.mxu0
    %v1171 = vadd.f32 %v590, %v1170
    %v1172 = vpop.f32.mrf.mxu0
    %v1173 = vadd.f32 %v590, %v1172
    %1174 = vdwg.mxu0
    %1175 = vmatpush.bf16.msra.mxu0 %v881
    %1176 = vmatpush.bf16.msra.mxu0 %v878
    %1177 = vmatpush.bf16.msra.mxu0 %v875
    %1178 = vmatpush.bf16.msra.mxu0 %v872
    %1179 = vmatpush.bf16.msra.mxu0 %v869
    %1180 = vmatpush.bf16.msra.mxu0 %v866
    %1181 = vmatpush.bf16.msra.mxu0 %v863
    %1182 = vmatpush.bf16.msra.mxu0 %v860
    %1183 = vmatmul.bf16.gmra.mxu0 %v468
    %v1184 = vpop.f32.mrf.mxu0
    %v1185 = vadd.f32 %v1136, %v1184
    %v1186 = vpop.f32.mrf.mxu0
    %v1187 = vadd.f32 %v1138, %v1186
    %1188 = vmatmul.bf16.gmra.mxu0 %v471
    %v1189 = vpop.f32.mrf.mxu0
    %v1190 = vadd.f32 %v1141, %v1189
    %v1191 = vpop.f32.mrf.mxu0
    %v1192 = vadd.f32 %v1143, %v1191
    %1193 = vmatmul.bf16.gmra.mxu0 %v474
    %v1194 = vpop.f32.mrf.mxu0
    %v1195 = vadd.f32 %v1146, %v1194
    %v1196 = vpop.f32.mrf.mxu0
    %v1197 = vadd.f32 %v1148, %v1196
    %1198 = vmatmul.bf16.gmra.mxu0 %v477
    %v1199 = vpop.f32.mrf.mxu0
    %v1200 = vadd.f32 %v1151, %v1199
    %v1201 = vpop.f32.mrf.mxu0
    %v1202 = vadd.f32 %v1153, %v1201
    %1203 = vmatmul.bf16.gmra.mxu0 %v480
    %v1204 = vpop.f32.mrf.mxu0
    %v1205 = vadd.f32 %v1156, %v1204
    %v1206 = vpop.f32.mrf.mxu0
    %v1207 = vadd.f32 %v1158, %v1206
    %1208 = vmatmul.bf16.gmra.mxu0 %v483
    %v1209 = vpop.f32.mrf.mxu0
    %v1210 = vadd.f32 %v1161, %v1209
    %v1211 = vpop.f32.mrf.mxu0
    %v1212 = vadd.f32 %v1163, %v1211
    %1213 = vmatmul.bf16.gmra.mxu0 %v486
    %v1214 = vpop.f32.mrf.mxu0
    %v1215 = vadd.f32 %v1166, %v1214
    %v1216 = vpop.f32.mrf.mxu0
    %v1217 = vadd.f32 %v1168, %v1216
    %1218 = vmatmul.bf16.gmra.mxu0 %v489
    %v1219 = vpop.f32.mrf.mxu0
    %v1220 = vadd.f32 %v1171, %v1219
    %v1221 = vpop.f32.mrf.mxu0
    %v1222 = vadd.f32 %v1173, %v1221
    %1223 = vdwg.mxu0
    %1224 = vmatpush.bf16.msra.mxu0 %v905
    %1225 = vmatpush.bf16.msra.mxu0 %v902
    %1226 = vmatpush.bf16.msra.mxu0 %v899
    %1227 = vmatpush.bf16.msra.mxu0 %v896
    %1228 = vmatpush.bf16.msra.mxu0 %v893
    %1229 = vmatpush.bf16.msra.mxu0 %v890
    %1230 = vmatpush.bf16.msra.mxu0 %v887
    %1231 = vmatpush.bf16.msra.mxu0 %v884
    %1232 = vmatmul.bf16.gmra.mxu0 %v469
    %v1233 = vpop.f32.mrf.mxu0
    %v1234 = vadd.f32 %v1185, %v1233
    %v1235 = vpop.f32.mrf.mxu0
    %v1236 = vadd.f32 %v1187, %v1235
    %1237 = vmatmul.bf16.gmra.mxu0 %v472
    %v1238 = vpop.f32.mrf.mxu0
    %v1239 = vadd.f32 %v1190, %v1238
    %v1240 = vpop.f32.mrf.mxu0
    %v1241 = vadd.f32 %v1192, %v1240
    %1242 = vmatmul.bf16.gmra.mxu0 %v475
    %v1243 = vpop.f32.mrf.mxu0
    %v1244 = vadd.f32 %v1195, %v1243
    %v1245 = vpop.f32.mrf.mxu0
    %v1246 = vadd.f32 %v1197, %v1245
    %1247 = vmatmul.bf16.gmra.mxu0 %v478
    %v1248 = vpop.f32.mrf.mxu0
    %v1249 = vadd.f32 %v1200, %v1248
    %v1250 = vpop.f32.mrf.mxu0
    %v1251 = vadd.f32 %v1202, %v1250
    %1252 = vmatmul.bf16.gmra.mxu0 %v481
    %v1253 = vpop.f32.mrf.mxu0
    %v1254 = vadd.f32 %v1205, %v1253
    %v1255 = vpop.f32.mrf.mxu0
    %v1256 = vadd.f32 %v1207, %v1255
    %1257 = vmatmul.bf16.gmra.mxu0 %v484
    %v1258 = vpop.f32.mrf.mxu0
    %v1259 = vadd.f32 %v1210, %v1258
    %v1260 = vpop.f32.mrf.mxu0
    %v1261 = vadd.f32 %v1212, %v1260
    %1262 = vmatmul.bf16.gmra.mxu0 %v487
    %v1263 = vpop.f32.mrf.mxu0
    %v1264 = vadd.f32 %v1215, %v1263
    %v1265 = vpop.f32.mrf.mxu0
    %v1266 = vadd.f32 %v1217, %v1265
    %1267 = vmatmul.bf16.gmra.mxu0 %v490
    %v1268 = vpop.f32.mrf.mxu0
    %v1269 = vadd.f32 %v1220, %v1268
    %v1270 = vpop.f32.mrf.mxu0
    %v1271 = vadd.f32 %v1222, %v1270
    %1272 = vdwg.mxu0
    %1273 = vmatpush.bf16.msra.mxu0 %v858
    %1274 = vmatpush.bf16.msra.mxu0 %v855
    %1275 = vmatpush.bf16.msra.mxu0 %v852
    %1276 = vmatpush.bf16.msra.mxu0 %v849
    %1277 = vmatpush.bf16.msra.mxu0 %v846
    %1278 = vmatpush.bf16.msra.mxu0 %v843
    %1279 = vmatpush.bf16.msra.mxu0 %v840
    %1280 = vmatpush.bf16.msra.mxu0 %v837
    %1281 = vmatmul.bf16.gmra.mxu0 %v467
    %v1282 = vpop.f32.mrf.mxu0
    %v1283 = vadd.f32 %v591, %v1282
    %v1284 = vpop.f32.mrf.mxu0
    %v1285 = vadd.f32 %v591, %v1284
    %1286 = vmatmul.bf16.gmra.mxu0 %v470
    %v1287 = vpop.f32.mrf.mxu0
    %v1288 = vadd.f32 %v591, %v1287
    %v1289 = vpop.f32.mrf.mxu0
    %v1290 = vadd.f32 %v591, %v1289
    %1291 = vmatmul.bf16.gmra.mxu0 %v473
    %v1292 = vpop.f32.mrf.mxu0
    %v1293 = vadd.f32 %v591, %v1292
    %v1294 = vpop.f32.mrf.mxu0
    %v1295 = vadd.f32 %v591, %v1294
    %1296 = vmatmul.bf16.gmra.mxu0 %v476
    %v1297 = vpop.f32.mrf.mxu0
    %v1298 = vadd.f32 %v591, %v1297
    %v1299 = vpop.f32.mrf.mxu0
    %v1300 = vadd.f32 %v591, %v1299
    %1301 = vmatmul.bf16.gmra.mxu0 %v479
    %v1302 = vpop.f32.mrf.mxu0
    %v1303 = vadd.f32 %v591, %v1302
    %v1304 = vpop.f32.mrf.mxu0
    %v1305 = vadd.f32 %v591, %v1304
    %1306 = vmatmul.bf16.gmra.mxu0 %v482
    %v1307 = vpop.f32.mrf.mxu0
    %v1308 = vadd.f32 %v591, %v1307
    %v1309 = vpop.f32.mrf.mxu0
    %v1310 = vadd.f32 %v591, %v1309
    %1311 = vmatmul.bf16.gmra.mxu0 %v485
    %v1312 = vpop.f32.mrf.mxu0
    %v1313 = vadd.f32 %v591, %v1312
    %v1314 = vpop.f32.mrf.mxu0
    %v1315 = vadd.f32 %v591, %v1314
    %1316 = vmatmul.bf16.gmra.mxu0 %v488
    %v1317 = vpop.f32.mrf.mxu0
    %v1318 = vadd.f32 %v591, %v1317
    %v1319 = vpop.f32.mrf.mxu0
    %v1320 = vadd.f32 %v591, %v1319
    %1321 = vdwg.mxu0
    %1322 = vmatpush.bf16.msra.mxu0 %v882
    %1323 = vmatpush.bf16.msra.mxu0 %v879
    %1324 = vmatpush.bf16.msra.mxu0 %v876
    %1325 = vmatpush.bf16.msra.mxu0 %v873
    %1326 = vmatpush.bf16.msra.mxu0 %v870
    %1327 = vmatpush.bf16.msra.mxu0 %v867
    %1328 = vmatpush.bf16.msra.mxu0 %v864
    %1329 = vmatpush.bf16.msra.mxu0 %v861
    %1330 = vmatmul.bf16.gmra.mxu0 %v468
    %v1331 = vpop.f32.mrf.mxu0
    %v1332 = vadd.f32 %v1283, %v1331
    %v1333 = vpop.f32.mrf.mxu0
    %v1334 = vadd.f32 %v1285, %v1333
    %1335 = vmatmul.bf16.gmra.mxu0 %v471
    %v1336 = vpop.f32.mrf.mxu0
    %v1337 = vadd.f32 %v1288, %v1336
    %v1338 = vpop.f32.mrf.mxu0
    %v1339 = vadd.f32 %v1290, %v1338
    %1340 = vmatmul.bf16.gmra.mxu0 %v474
    %v1341 = vpop.f32.mrf.mxu0
    %v1342 = vadd.f32 %v1293, %v1341
    %v1343 = vpop.f32.mrf.mxu0
    %v1344 = vadd.f32 %v1295, %v1343
    %1345 = vmatmul.bf16.gmra.mxu0 %v477
    %v1346 = vpop.f32.mrf.mxu0
    %v1347 = vadd.f32 %v1298, %v1346
    %v1348 = vpop.f32.mrf.mxu0
    %v1349 = vadd.f32 %v1300, %v1348
    %1350 = vmatmul.bf16.gmra.mxu0 %v480
    %v1351 = vpop.f32.mrf.mxu0
    %v1352 = vadd.f32 %v1303, %v1351
    %v1353 = vpop.f32.mrf.mxu0
    %v1354 = vadd.f32 %v1305, %v1353
    %1355 = vmatmul.bf16.gmra.mxu0 %v483
    %v1356 = vpop.f32.mrf.mxu0
    %v1357 = vadd.f32 %v1308, %v1356
    %v1358 = vpop.f32.mrf.mxu0
    %v1359 = vadd.f32 %v1310, %v1358
    %1360 = vmatmul.bf16.gmra.mxu0 %v486
    %v1361 = vpop.f32.mrf.mxu0
    %v1362 = vadd.f32 %v1313, %v1361
    %v1363 = vpop.f32.mrf.mxu0
    %v1364 = vadd.f32 %v1315, %v1363
    %1365 = vmatmul.bf16.gmra.mxu0 %v489
    %v1366 = vpop.f32.mrf.mxu0
    %v1367 = vadd.f32 %v1318, %v1366
    %v1368 = vpop.f32.mrf.mxu0
    %v1369 = vadd.f32 %v1320, %v1368
    %1370 = vdwg.mxu0
    %1371 = vmatpush.bf16.msra.mxu0 %v906
    %1372 = vmatpush.bf16.msra.mxu0 %v903
    %1373 = vmatpush.bf16.msra.mxu0 %v900
    %1374 = vmatpush.bf16.msra.mxu0 %v897
    %1375 = vmatpush.bf16.msra.mxu0 %v894
    %1376 = vmatpush.bf16.msra.mxu0 %v891
    %1377 = vmatpush.bf16.msra.mxu0 %v888
    %1378 = vmatpush.bf16.msra.mxu0 %v885
    %1379 = vmatmul.bf16.gmra.mxu0 %v469
    %v1380 = vpop.f32.mrf.mxu0
    %v1381 = vadd.f32 %v1332, %v1380
    %v1382 = vpop.f32.mrf.mxu0
    %v1383 = vadd.f32 %v1334, %v1382
    %1384 = vmatmul.bf16.gmra.mxu0 %v472
    %v1385 = vpop.f32.mrf.mxu0
    %v1386 = vadd.f32 %v1337, %v1385
    %v1387 = vpop.f32.mrf.mxu0
    %v1388 = vadd.f32 %v1339, %v1387
    %1389 = vmatmul.bf16.gmra.mxu0 %v475
    %v1390 = vpop.f32.mrf.mxu0
    %v1391 = vadd.f32 %v1342, %v1390
    %v1392 = vpop.f32.mrf.mxu0
    %v1393 = vadd.f32 %v1344, %v1392
    %1394 = vmatmul.bf16.gmra.mxu0 %v478
    %v1395 = vpop.f32.mrf.mxu0
    %v1396 = vadd.f32 %v1347, %v1395
    %v1397 = vpop.f32.mrf.mxu0
    %v1398 = vadd.f32 %v1349, %v1397
    %1399 = vmatmul.bf16.gmra.mxu0 %v481
    %v1400 = vpop.f32.mrf.mxu0
    %v1401 = vadd.f32 %v1352, %v1400
    %v1402 = vpop.f32.mrf.mxu0
    %v1403 = vadd.f32 %v1354, %v1402
    %1404 = vmatmul.bf16.gmra.mxu0 %v484
    %v1405 = vpop.f32.mrf.mxu0
    %v1406 = vadd.f32 %v1357, %v1405
    %v1407 = vpop.f32.mrf.mxu0
    %v1408 = vadd.f32 %v1359, %v1407
    %1409 = vmatmul.bf16.gmra.mxu0 %v487
    %v1410 = vpop.f32.mrf.mxu0
    %v1411 = vadd.f32 %v1362, %v1410
    %v1412 = vpop.f32.mrf.mxu0
    %v1413 = vadd.f32 %v1364, %v1412
    %1414 = vmatmul.bf16.gmra.mxu0 %v490
    %v1415 = vpop.f32.mrf.mxu0
    %v1416 = vadd.f32 %v1367, %v1415
    %v1417 = vpop.f32.mrf.mxu0
    %v1418 = vadd.f32 %v1369, %v1417
    %1419 = vdwg.mxu0
    %v1420 = vmax.f32 %v1087, 0.0
    %v1421 = vmax.f32 %v1234, 0.0
    %v1422 = vmax.f32 %v1381, 0.0
    %v1423 = vmax.f32 %v1089, 0.0
    %v1424 = vmax.f32 %v1236, 0.0
    %v1425 = vmax.f32 %v1383, 0.0
    %v1426 = vmax.f32 %v1092, 0.0
    %v1427 = vmax.f32 %v1239, 0.0
    %v1428 = vmax.f32 %v1386, 0.0
    %v1429 = vmax.f32 %v1094, 0.0
    %v1430 = vmax.f32 %v1241, 0.0
    %v1431 = vmax.f32 %v1388, 0.0
    %v1432 = vmax.f32 %v1097, 0.0
    %v1433 = vmax.f32 %v1244, 0.0
    %v1434 = vmax.f32 %v1391, 0.0
    %v1435 = vmax.f32 %v1099, 0.0
    %v1436 = vmax.f32 %v1246, 0.0
    %v1437 = vmax.f32 %v1393, 0.0
    %v1438 = vmax.f32 %v1102, 0.0
    %v1439 = vmax.f32 %v1249, 0.0
    %v1440 = vmax.f32 %v1396, 0.0
    %v1441 = vmax.f32 %v1104, 0.0
    %v1442 = vmax.f32 %v1251, 0.0
    %v1443 = vmax.f32 %v1398, 0.0
    %v1444 = vmax.f32 %v1107, 0.0
    %v1445 = vmax.f32 %v1254, 0.0
    %v1446 = vmax.f32 %v1401, 0.0
    %v1447 = vmax.f32 %v1109, 0.0
    %v1448 = vmax.f32 %v1256, 0.0
    %v1449 = vmax.f32 %v1403, 0.0
    %v1450 = vmax.f32 %v1112, 0.0
    %v1451 = vmax.f32 %v1259, 0.0
    %v1452 = vmax.f32 %v1406, 0.0
    %v1453 = vmax.f32 %v1114, 0.0
    %v1454 = vmax.f32 %v1261, 0.0
    %v1455 = vmax.f32 %v1408, 0.0
    %v1456 = vmax.f32 %v1117, 0.0
    %v1457 = vmax.f32 %v1264, 0.0
    %v1458 = vmax.f32 %v1411, 0.0
    %v1459 = vmax.f32 %v1119, 0.0
    %v1460 = vmax.f32 %v1266, 0.0
    %v1461 = vmax.f32 %v1413, 0.0
    %v1462 = vmax.f32 %v1122, 0.0
    %v1463 = vmax.f32 %v1269, 0.0
    %v1464 = vmax.f32 %v1416, 0.0
    %v1465 = vmax.f32 %v1124, 0.0
    %v1466 = vmax.f32 %v1271, 0.0
    %v1467 = vmax.f32 %v1418, 0.0
    %v1468 = vpack.c.bf16 %v1423, %v1420
    %v1469 = vpack.c.bf16 %v1424, %v1421
    %v1470 = vpack.c.bf16 %v1425, %v1422
    %v1471 = vpack.c.bf16 %v1429, %v1426
    %v1472 = vpack.c.bf16 %v1430, %v1427
    %v1473 = vpack.c.bf16 %v1431, %v1428
    %v1474 = vpack.c.bf16 %v1435, %v1432
    %v1475 = vpack.c.bf16 %v1436, %v1433
    %v1476 = vpack.c.bf16 %v1437, %v1434
    %v1477 = vpack.c.bf16 %v1441, %v1438
    %v1478 = vpack.c.bf16 %v1442, %v1439
    %v1479 = vpack.c.bf16 %v1443, %v1440
    %v1480 = vpack.c.bf16 %v1447, %v1444
    %v1481 = vpack.c.bf16 %v1448, %v1445
    %v1482 = vpack.c.bf16 %v1449, %v1446
    %v1483 = vpack.c.bf16 %v1453, %v1450
    %v1484 = vpack.c.bf16 %v1454, %v1451
    %v1485 = vpack.c.bf16 %v1455, %v1452
    %v1486 = vpack.c.bf16 %v1459, %v1456
    %v1487 = vpack.c.bf16 %v1460, %v1457
    %v1488 = vpack.c.bf16 %v1461, %v1458
    %v1489 = vpack.c.bf16 %v1465, %v1462
    %v1490 = vpack.c.bf16 %v1466, %v1463
    %v1491 = vpack.c.bf16 %v1467, %v1464
    %v1492 = vld [vmem:[#allocation7] sm:$0xff]
    %v1493 = vld [vmem:[#allocation7 + $0x8] sm:$0xf]
    %v1494 = vld [vmem:[#allocation7 + $0xc] sm:$0xff]
    %v1495 = vld [vmem:[#allocation7 + $0x14] sm:$0xf]
    %v1496 = vld [vmem:[#allocation7 + $0x18] sm:$0xff]
    %v1497 = vld [vmem:[#allocation7 + $0x20] sm:$0xf]
    %v1498 = vld [vmem:[#allocation7 + $0x24] sm:$0xff]
    %v1499 = vld [vmem:[#allocation7 + $0x2c] sm:$0xf]
    %v1500 = vld [vmem:[#allocation7 + $0x30] sm:$0xff]
    %v1501 = vld [vmem:[#allocation7 + $0x38] sm:$0xf]
    %v1502 = vld [vmem:[#allocation7 + $0x3c] sm:$0xff]
    %v1503 = vld [vmem:[#allocation7 + $0x44] sm:$0xf]
    %v1504 = vld [vmem:[#allocation7 + $0x48] sm:$0xff]
    %v1505 = vld [vmem:[#allocation7 + $0x50] sm:$0xf]
    %v1506 = vld [vmem:[#allocation7 + $0x54] sm:$0xff]
    %v1507 = vld [vmem:[#allocation7 + $0x5c] sm:$0xf]
    %v1508 = vld [vmem:[#allocation7 + $0x60] sm:$0xff]
    %v1509 = vld [vmem:[#allocation7 + $0x68] sm:$0xf]
    %v1510 = vld [vmem:[#allocation7 + $0x6c] sm:$0xff]
    %v1511 = vld [vmem:[#allocation7 + $0x74] sm:$0xf]
    %v1512 = vld [vmem:[#allocation7 + $0x78] sm:$0xff]
    %v1513 = vld [vmem:[#allocation7 + $0x80] sm:$0xf]
    %v1514 = vld [vmem:[#allocation7 + $0x84] sm:$0xff]
    %v1515 = vld [vmem:[#allocation7 + $0x8c] sm:$0xf]
    %v1516 = vld [vmem:[#allocation7 + $0x90] sm:$0xff]
    %v1517 = vld [vmem:[#allocation7 + $0x98] sm:$0xf]
    %v1518 = vld [vmem:[#allocation7 + $0x9c] sm:$0xff]
    %v1519 = vld [vmem:[#allocation7 + $0xa4] sm:$0xf]
    %v1520 = vld [vmem:[#allocation7 + $0xa8] sm:$0xff]
    %v1521 = vld [vmem:[#allocation7 + $0xb0] sm:$0xf]
    %v1522 = vld [vmem:[#allocation7 + $0xb4] sm:$0xff]
    %v1523 = vld [vmem:[#allocation7 + $0xbc] sm:$0xf]
    %v1524 = vld [vmem:[#allocation7 + $0xc0] sm:$0xff]
    %v1525 = vld [vmem:[#allocation7 + $0xc8] sm:$0xf]
    %v1526 = vld [vmem:[#allocation7 + $0xcc] sm:$0xff]
    %v1527 = vld [vmem:[#allocation7 + $0xd4] sm:$0xf]
    %v1528 = vld [vmem:[#allocation7 + $0xd8] sm:$0xff]
    %v1529 = vld [vmem:[#allocation7 + $0xe0] sm:$0xf]
    %v1530 = vld [vmem:[#allocation7 + $0xe4] sm:$0xff]
    %v1531 = vld [vmem:[#allocation7 + $0xec] sm:$0xf]
    %v1532 = vld [vmem:[#allocation7 + $0xf0] sm:$0xff]
    %v1533 = vld [vmem:[#allocation7 + $0xf8] sm:$0xf]
    %v1534 = vld [vmem:[#allocation7 + $0xfc] sm:$0xff]
    %v1535 = vld [vmem:[#allocation7 + $0x104] sm:$0xf]
    %v1536 = vld [vmem:[#allocation7 + $0x108] sm:$0xff]
    %v1537 = vld [vmem:[#allocation7 + $0x110] sm:$0xf]
    %v1538 = vld [vmem:[#allocation7 + $0x114] sm:$0xff]
    %v1539 = vld [vmem:[#allocation7 + $0x11c] sm:$0xf]
    %v1540 = vld [vmem:[#allocation7 + $0x120] sm:$0xff]
    %v1541 = vld [vmem:[#allocation7 + $0x128] sm:$0xf]
    %v1542 = vld [vmem:[#allocation7 + $0x12c] sm:$0xff]
    %v1543 = vld [vmem:[#allocation7 + $0x134] sm:$0xf]
    %v1544 = vld [vmem:[#allocation7 + $0x138] sm:$0xff]
    %v1545 = vld [vmem:[#allocation7 + $0x140] sm:$0xf]
    %v1546 = vld [vmem:[#allocation7 + $0x144] sm:$0xff]
    %v1547 = vld [vmem:[#allocation7 + $0x14c] sm:$0xf]
    %v1548 = vld [vmem:[#allocation7 + $0x150] sm:$0xff]
    %v1549 = vld [vmem:[#allocation7 + $0x158] sm:$0xf]
    %v1550 = vld [vmem:[#allocation7 + $0x15c] sm:$0xff]
    %v1551 = vld [vmem:[#allocation7 + $0x164] sm:$0xf]
    %v1552 = vld [vmem:[#allocation7 + $0x168] sm:$0xff]
    %v1553 = vld [vmem:[#allocation7 + $0x170] sm:$0xf]
    %v1554 = vld [vmem:[#allocation7 + $0x174] sm:$0xff]
    %v1555 = vld [vmem:[#allocation7 + $0x17c] sm:$0xf]
    %v1556 = vld [vmem:[#allocation7 + $0x180] sm:$0xff]
    %v1557 = vld [vmem:[#allocation7 + $0x188] sm:$0xf]
    %v1558 = vld [vmem:[#allocation7 + $0x18c] sm:$0xff]
    %v1559 = vld [vmem:[#allocation7 + $0x194] sm:$0xf]
    %v1560 = vld [vmem:[#allocation7 + $0x198] sm:$0xff]
    %v1561 = vld [vmem:[#allocation7 + $0x1a0] sm:$0xf]
    %v1562 = vld [vmem:[#allocation7 + $0x1a4] sm:$0xff]
    %v1563 = vld [vmem:[#allocation7 + $0x1ac] sm:$0xf]
    %v1564 = vld [vmem:[#allocation7 + $0x1b0] sm:$0xff]
    %v1565 = vld [vmem:[#allocation7 + $0x1b8] sm:$0xf]
    %v1566 = vld [vmem:[#allocation7 + $0x1bc] sm:$0xff]
    %v1567 = vld [vmem:[#allocation7 + $0x1c4] sm:$0xf]
    %v1568 = vld [vmem:[#allocation7 + $0x1c8] sm:$0xff]
    %v1569 = vld [vmem:[#allocation7 + $0x1d0] sm:$0xf]
    %v1570 = vld [vmem:[#allocation7 + $0x1d4] sm:$0xff]
    %v1571 = vld [vmem:[#allocation7 + $0x1dc] sm:$0xf]
    %v1572 = vld [vmem:[#allocation7 + $0x1e0] sm:$0xff]
    %v1573 = vld [vmem:[#allocation7 + $0x1e8] sm:$0xf]
    %v1574 = vld [vmem:[#allocation7 + $0x1ec] sm:$0xff]
    %v1575 = vld [vmem:[#allocation7 + $0x1f4] sm:$0xf]
    %v1576 = vld [vmem:[#allocation7 + $0x1f8] sm:$0xff]
    %v1577 = vld [vmem:[#allocation7 + $0x200] sm:$0xf]
    %v1578 = vld [vmem:[#allocation7 + $0x204] sm:$0xff]
    %v1579 = vld [vmem:[#allocation7 + $0x20c] sm:$0xf]
    %v1580 = vld [vmem:[#allocation7 + $0x210] sm:$0xff]
    %v1581 = vld [vmem:[#allocation7 + $0x218] sm:$0xf]
    %v1582 = vld [vmem:[#allocation7 + $0x21c] sm:$0xff]
    %v1583 = vld [vmem:[#allocation7 + $0x224] sm:$0xf]
    %v1584 = vld [vmem:[#allocation7 + $0x228] sm:$0xff]
    %v1585 = vld [vmem:[#allocation7 + $0x230] sm:$0xf]
    %v1586 = vld [vmem:[#allocation7 + $0x234] sm:$0xff]
    %v1587 = vld [vmem:[#allocation7 + $0x23c] sm:$0xf]
    %v1588 = vld [vmem:[%s8] sm:$0x7]
    %v1590 = vperm.slane %v1588, 0
    %v1591 = vperm.slane %v1588, 1
    %v1592 = vperm.slane %v1588, 2
    %v1692 = vunpack.c.l.b16 %v1492
    %v1693 = vunpack.c.h.b16 %v1492
    %v1694 = vunpack.c.l.b16 %v1493
    %v1695 = vunpack.c.l.b16 %v1494
    %v1696 = vunpack.c.h.b16 %v1494
    %v1697 = vunpack.c.l.b16 %v1495
    %v1698 = vunpack.c.l.b16 %v1496
    %v1699 = vunpack.c.h.b16 %v1496
    %v1700 = vunpack.c.l.b16 %v1497
    %v1701 = vunpack.c.l.b16 %v1498
    %v1702 = vunpack.c.h.b16 %v1498
    %v1703 = vunpack.c.l.b16 %v1499
    %v1704 = vunpack.c.l.b16 %v1500
    %v1705 = vunpack.c.h.b16 %v1500
    %v1706 = vunpack.c.l.b16 %v1501
    %v1707 = vunpack.c.l.b16 %v1502
    %v1708 = vunpack.c.h.b16 %v1502
    %v1709 = vunpack.c.l.b16 %v1503
    %v1710 = vunpack.c.l.b16 %v1504
    %v1711 = vunpack.c.h.b16 %v1504
    %v1712 = vunpack.c.l.b16 %v1505
    %v1713 = vunpack.c.l.b16 %v1506
    %v1714 = vunpack.c.h.b16 %v1506
    %v1715 = vunpack.c.l.b16 %v1507
    %v1716 = vunpack.c.l.b16 %v1508
    %v1717 = vunpack.c.h.b16 %v1508
    %v1718 = vunpack.c.l.b16 %v1509
    %v1719 = vunpack.c.l.b16 %v1510
    %v1720 = vunpack.c.h.b16 %v1510
    %v1721 = vunpack.c.l.b16 %v1511
    %v1722 = vunpack.c.l.b16 %v1512
    %v1723 = vunpack.c.h.b16 %v1512
    %v1724 = vunpack.c.l.b16 %v1513
    %v1725 = vunpack.c.l.b16 %v1514
    %v1726 = vunpack.c.h.b16 %v1514
    %v1727 = vunpack.c.l.b16 %v1515
    %v1728 = vunpack.c.l.b16 %v1516
    %v1729 = vunpack.c.h.b16 %v1516
    %v1730 = vunpack.c.l.b16 %v1517
    %v1731 = vunpack.c.l.b16 %v1518
    %v1732 = vunpack.c.h.b16 %v1518
    %v1733 = vunpack.c.l.b16 %v1519
    %v1734 = vunpack.c.l.b16 %v1520
    %v1735 = vunpack.c.h.b16 %v1520
    %v1736 = vunpack.c.l.b16 %v1521
    %v1737 = vunpack.c.l.b16 %v1522
    %v1738 = vunpack.c.h.b16 %v1522
    %v1739 = vunpack.c.l.b16 %v1523
    %v1740 = vunpack.c.l.b16 %v1524
    %v1741 = vunpack.c.h.b16 %v1524
    %v1742 = vunpack.c.l.b16 %v1525
    %v1743 = vunpack.c.l.b16 %v1526
    %v1744 = vunpack.c.h.b16 %v1526
    %v1745 = vunpack.c.l.b16 %v1527
    %v1746 = vunpack.c.l.b16 %v1528
    %v1747 = vunpack.c.h.b16 %v1528
    %v1748 = vunpack.c.l.b16 %v1529
    %v1749 = vunpack.c.l.b16 %v1530
    %v1750 = vunpack.c.h.b16 %v1530
    %v1751 = vunpack.c.l.b16 %v1531
    %v1752 = vunpack.c.l.b16 %v1532
    %v1753 = vunpack.c.h.b16 %v1532
    %v1754 = vunpack.c.l.b16 %v1533
    %v1755 = vunpack.c.l.b16 %v1534
    %v1756 = vunpack.c.h.b16 %v1534
    %v1757 = vunpack.c.l.b16 %v1535
    %v1758 = vunpack.c.l.b16 %v1536
    %v1759 = vunpack.c.h.b16 %v1536
    %v1760 = vunpack.c.l.b16 %v1537
    %v1761 = vunpack.c.l.b16 %v1538
    %v1762 = vunpack.c.h.b16 %v1538
    %v1763 = vunpack.c.l.b16 %v1539
    %v1764 = vunpack.c.l.b16 %v1540
    %v1765 = vunpack.c.h.b16 %v1540
    %v1766 = vunpack.c.l.b16 %v1541
    %v1767 = vunpack.c.l.b16 %v1542
    %v1768 = vunpack.c.h.b16 %v1542
    %v1769 = vunpack.c.l.b16 %v1543
    %v1770 = vunpack.c.l.b16 %v1544
    %v1771 = vunpack.c.h.b16 %v1544
    %v1772 = vunpack.c.l.b16 %v1545
    %v1773 = vunpack.c.l.b16 %v1546
    %v1774 = vunpack.c.h.b16 %v1546
    %v1775 = vunpack.c.l.b16 %v1547
    %v1776 = vunpack.c.l.b16 %v1548
    %v1777 = vunpack.c.h.b16 %v1548
    %v1778 = vunpack.c.l.b16 %v1549
    %v1779 = vunpack.c.l.b16 %v1550
    %v1780 = vunpack.c.h.b16 %v1550
    %v1781 = vunpack.c.l.b16 %v1551
    %v1782 = vunpack.c.l.b16 %v1552
    %v1783 = vunpack.c.h.b16 %v1552
    %v1784 = vunpack.c.l.b16 %v1553
    %v1785 = vunpack.c.l.b16 %v1554
    %v1786 = vunpack.c.h.b16 %v1554
    %v1787 = vunpack.c.l.b16 %v1555
    %v1788 = vunpack.c.l.b16 %v1556
    %v1789 = vunpack.c.h.b16 %v1556
    %v1790 = vunpack.c.l.b16 %v1557
    %v1791 = vunpack.c.l.b16 %v1558
    %v1792 = vunpack.c.h.b16 %v1558
    %v1793 = vunpack.c.l.b16 %v1559
    %v1794 = vunpack.c.l.b16 %v1560
    %v1795 = vunpack.c.h.b16 %v1560
    %v1796 = vunpack.c.l.b16 %v1561
    %v1797 = vunpack.c.l.b16 %v1562
    %v1798 = vunpack.c.h.b16 %v1562
    %v1799 = vunpack.c.l.b16 %v1563
    %v1800 = vunpack.c.l.b16 %v1564
    %v1801 = vunpack.c.h.b16 %v1564
    %v1802 = vunpack.c.l.b16 %v1565
    %v1803 = vunpack.c.l.b16 %v1566
    %v1804 = vunpack.c.h.b16 %v1566
    %v1805 = vunpack.c.l.b16 %v1567
    %v1806 = vunpack.c.l.b16 %v1568
    %v1807 = vunpack.c.h.b16 %v1568
    %v1808 = vunpack.c.l.b16 %v1569
    %v1809 = vunpack.c.l.b16 %v1570
    %v1810 = vunpack.c.h.b16 %v1570
    %v1811 = vunpack.c.l.b16 %v1571
    %v1812 = vunpack.c.l.b16 %v1572
    %v1813 = vunpack.c.h.b16 %v1572
    %v1814 = vunpack.c.l.b16 %v1573
    %v1815 = vunpack.c.l.b16 %v1574
    %v1816 = vunpack.c.h.b16 %v1574
    %v1817 = vunpack.c.l.b16 %v1575
    %v1818 = vunpack.c.l.b16 %v1576
    %v1819 = vunpack.c.h.b16 %v1576
    %v1820 = vunpack.c.l.b16 %v1577
    %v1821 = vunpack.c.l.b16 %v1578
    %v1822 = vunpack.c.h.b16 %v1578
    %v1823 = vunpack.c.l.b16 %v1579
    %v1824 = vunpack.c.l.b16 %v1580
    %v1825 = vunpack.c.h.b16 %v1580
    %v1826 = vunpack.c.l.b16 %v1581
    %v1827 = vunpack.c.l.b16 %v1582
    %v1828 = vunpack.c.h.b16 %v1582
    %v1829 = vunpack.c.l.b16 %v1583
    %v1830 = vunpack.c.l.b16 %v1584
    %v1831 = vunpack.c.h.b16 %v1584
    %v1832 = vunpack.c.l.b16 %v1585
    %v1833 = vunpack.c.l.b16 %v1586
    %v1834 = vunpack.c.h.b16 %v1586
    %v1835 = vunpack.c.l.b16 %v1587
    %v1836 = vpack.c.b16 %v1695, %v1692
    %v1837 = vpack.c.b16 %v1696, %v1693
    %v1838 = vpack.c.b16 %v1697, %v1694
    %v1839 = vpack.c.b16 %v1701, %v1698
    %v1840 = vpack.c.b16 %v1702, %v1699
    %v1841 = vpack.c.b16 %v1703, %v1700
    %v1842 = vpack.c.b16 %v1707, %v1704
    %v1843 = vpack.c.b16 %v1708, %v1705
    %v1844 = vpack.c.b16 %v1709, %v1706
    %v1845 = vpack.c.b16 %v1713, %v1710
    %v1846 = vpack.c.b16 %v1714, %v1711
    %v1847 = vpack.c.b16 %v1715, %v1712
    %v1848 = vpack.c.b16 %v1719, %v1716
    %v1849 = vpack.c.b16 %v1720, %v1717
    %v1850 = vpack.c.b16 %v1721, %v1718
    %v1851 = vpack.c.b16 %v1725, %v1722
    %v1852 = vpack.c.b16 %v1726, %v1723
    %v1853 = vpack.c.b16 %v1727, %v1724
    %v1854 = vpack.c.b16 %v1731, %v1728
    %v1855 = vpack.c.b16 %v1732, %v1729
    %v1856 = vpack.c.b16 %v1733, %v1730
    %v1857 = vpack.c.b16 %v1737, %v1734
    %v1858 = vpack.c.b16 %v1738, %v1735
    %v1859 = vpack.c.b16 %v1739, %v1736
    %v1860 = vpack.c.b16 %v1743, %v1740
    %v1861 = vpack.c.b16 %v1744, %v1741
    %v1862 = vpack.c.b16 %v1745, %v1742
    %v1863 = vpack.c.b16 %v1749, %v1746
    %v1864 = vpack.c.b16 %v1750, %v1747
    %v1865 = vpack.c.b16 %v1751, %v1748
    %v1866 = vpack.c.b16 %v1755, %v1752
    %v1867 = vpack.c.b16 %v1756, %v1753
    %v1868 = vpack.c.b16 %v1757, %v1754
    %v1869 = vpack.c.b16 %v1761, %v1758
    %v1870 = vpack.c.b16 %v1762, %v1759
    %v1871 = vpack.c.b16 %v1763, %v1760
    %v1872 = vpack.c.b16 %v1767, %v1764
    %v1873 = vpack.c.b16 %v1768, %v1765
    %v1874 = vpack.c.b16 %v1769, %v1766
    %v1875 = vpack.c.b16 %v1773, %v1770
    %v1876 = vpack.c.b16 %v1774, %v1771
    %v1877 = vpack.c.b16 %v1775, %v1772
    %v1878 = vpack.c.b16 %v1779, %v1776
    %v1879 = vpack.c.b16 %v1780, %v1777
    %v1880 = vpack.c.b16 %v1781, %v1778
    %v1881 = vpack.c.b16 %v1785, %v1782
    %v1882 = vpack.c.b16 %v1786, %v1783
    %v1883 = vpack.c.b16 %v1787, %v1784
    %v1884 = vpack.c.b16 %v1791, %v1788
    %v1885 = vpack.c.b16 %v1792, %v1789
    %v1886 = vpack.c.b16 %v1793, %v1790
    %v1887 = vpack.c.b16 %v1797, %v1794
    %v1888 = vpack.c.b16 %v1798, %v1795
    %v1889 = vpack.c.b16 %v1799, %v1796
    %v1890 = vpack.c.b16 %v1803, %v1800
    %v1891 = vpack.c.b16 %v1804, %v1801
    %v1892 = vpack.c.b16 %v1805, %v1802
    %v1893 = vpack.c.b16 %v1809, %v1806
    %v1894 = vpack.c.b16 %v1810, %v1807
    %v1895 = vpack.c.b16 %v1811, %v1808
    %v1896 = vpack.c.b16 %v1815, %v1812
    %v1897 = vpack.c.b16 %v1816, %v1813
    %v1898 = vpack.c.b16 %v1817, %v1814
    %v1899 = vpack.c.b16 %v1821, %v1818
    %v1900 = vpack.c.b16 %v1822, %v1819
    %v1901 = vpack.c.b16 %v1823, %v1820
    %v1902 = vpack.c.b16 %v1827, %v1824
    %v1903 = vpack.c.b16 %v1828, %v1825
    %v1904 = vpack.c.b16 %v1829, %v1826
    %v1905 = vpack.c.b16 %v1833, %v1830
    %v1906 = vpack.c.b16 %v1834, %v1831
    %v1907 = vpack.c.b16 %v1835, %v1832
    %1980 = vmatpush.bf16.msra.mxu0 %v1857
    %1981 = vmatpush.bf16.msra.mxu0 %v1854
    %1982 = vmatpush.bf16.msra.mxu0 %v1851
    %1983 = vmatpush.bf16.msra.mxu0 %v1848
    %1984 = vmatpush.bf16.msra.mxu0 %v1845
    %1985 = vmatpush.bf16.msra.mxu0 %v1842
    %1986 = vmatpush.bf16.msra.mxu0 %v1839
    %1987 = vmatpush.bf16.msra.mxu0 %v1836
    %1988 = vmatmul.bf16.gmra.mxu0 %v1468
    %v1989 = vpop.f32.mrf.mxu0
    %v1990 = vadd.f32 %v1590, %v1989
    %v1991 = vpop.f32.mrf.mxu0
    %v1992 = vadd.f32 %v1590, %v1991
    %1993 = vmatmul.bf16.gmra.mxu0 %v1471
    %v1994 = vpop.f32.mrf.mxu0
    %v1995 = vadd.f32 %v1590, %v1994
    %v1996 = vpop.f32.mrf.mxu0
    %v1997 = vadd.f32 %v1590, %v1996
    %1998 = vmatmul.bf16.gmra.mxu0 %v1474
    %v1999 = vpop.f32.mrf.mxu0
    %v2000 = vadd.f32 %v1590, %v1999
    %v2001 = vpop.f32.mrf.mxu0
    %v2002 = vadd.f32 %v1590, %v2001
    %2003 = vmatmul.bf16.gmra.mxu0 %v1477
    %v2004 = vpop.f32.mrf.mxu0
    %v2005 = vadd.f32 %v1590, %v2004
    %v2006 = vpop.f32.mrf.mxu0
    %v2007 = vadd.f32 %v1590, %v2006
    %2008 = vmatmul.bf16.gmra.mxu0 %v1480
    %v2009 = vpop.f32.mrf.mxu0
    %v2010 = vadd.f32 %v1590, %v2009
    %v2011 = vpop.f32.mrf.mxu0
    %v2012 = vadd.f32 %v1590, %v2011
    %2013 = vmatmul.bf16.gmra.mxu0 %v1483
    %v2014 = vpop.f32.mrf.mxu0
    %v2015 = vadd.f32 %v1590, %v2014
    %v2016 = vpop.f32.mrf.mxu0
    %v2017 = vadd.f32 %v1590, %v2016
    %2018 = vmatmul.bf16.gmra.mxu0 %v1486
    %v2019 = vpop.f32.mrf.mxu0
    %v2020 = vadd.f32 %v1590, %v2019
    %v2021 = vpop.f32.mrf.mxu0
    %v2022 = vadd.f32 %v1590, %v2021
    %2023 = vmatmul.bf16.gmra.mxu0 %v1489
    %v2024 = vpop.f32.mrf.mxu0
    %v2025 = vadd.f32 %v1590, %v2024
    %v2026 = vpop.f32.mrf.mxu0
    %v2027 = vadd.f32 %v1590, %v2026
    %2028 = vdwg.mxu0
    %2029 = vmatpush.bf16.msra.mxu0 %v1881
    %2030 = vmatpush.bf16.msra.mxu0 %v1878
    %2031 = vmatpush.bf16.msra.mxu0 %v1875
    %2032 = vmatpush.bf16.msra.mxu0 %v1872
    %2033 = vmatpush.bf16.msra.mxu0 %v1869
    %2034 = vmatpush.bf16.msra.mxu0 %v1866
    %2035 = vmatpush.bf16.msra.mxu0 %v1863
    %2036 = vmatpush.bf16.msra.mxu0 %v1860
    %2037 = vmatmul.bf16.gmra.mxu0 %v1469
    %v2038 = vpop.f32.mrf.mxu0
    %v2039 = vadd.f32 %v1990, %v2038
    %v2040 = vpop.f32.mrf.mxu0
    %v2041 = vadd.f32 %v1992, %v2040
    %2042 = vmatmul.bf16.gmra.mxu0 %v1472
    %v2043 = vpop.f32.mrf.mxu0
    %v2044 = vadd.f32 %v1995, %v2043
    %v2045 = vpop.f32.mrf.mxu0
    %v2046 = vadd.f32 %v1997, %v2045
    %2047 = vmatmul.bf16.gmra.mxu0 %v1475
    %v2048 = vpop.f32.mrf.mxu0
    %v2049 = vadd.f32 %v2000, %v2048
    %v2050 = vpop.f32.mrf.mxu0
    %v2051 = vadd.f32 %v2002, %v2050
    %2052 = vmatmul.bf16.gmra.mxu0 %v1478
    %v2053 = vpop.f32.mrf.mxu0
    %v2054 = vadd.f32 %v2005, %v2053
    %v2055 = vpop.f32.mrf.mxu0
    %v2056 = vadd.f32 %v2007, %v2055
    %2057 = vmatmul.bf16.gmra.mxu0 %v1481
    %v2058 = vpop.f32.mrf.mxu0
    %v2059 = vadd.f32 %v2010, %v2058
    %v2060 = vpop.f32.mrf.mxu0
    %v2061 = vadd.f32 %v2012, %v2060
    %2062 = vmatmul.bf16.gmra.mxu0 %v1484
    %v2063 = vpop.f32.mrf.mxu0
    %v2064 = vadd.f32 %v2015, %v2063
    %v2065 = vpop.f32.mrf.mxu0
    %v2066 = vadd.f32 %v2017, %v2065
    %2067 = vmatmul.bf16.gmra.mxu0 %v1487
    %v2068 = vpop.f32.mrf.mxu0
    %v2069 = vadd.f32 %v2020, %v2068
    %v2070 = vpop.f32.mrf.mxu0
    %v2071 = vadd.f32 %v2022, %v2070
    %2072 = vmatmul.bf16.gmra.mxu0 %v1490
    %v2073 = vpop.f32.mrf.mxu0
    %v2074 = vadd.f32 %v2025, %v2073
    %v2075 = vpop.f32.mrf.mxu0
    %v2076 = vadd.f32 %v2027, %v2075
    %2077 = vdwg.mxu0
    %2078 = vmatpush.bf16.msra.mxu0 %v1905
    %2079 = vmatpush.bf16.msra.mxu0 %v1902
    %2080 = vmatpush.bf16.msra.mxu0 %v1899
    %2081 = vmatpush.bf16.msra.mxu0 %v1896
    %2082 = vmatpush.bf16.msra.mxu0 %v1893
    %2083 = vmatpush.bf16.msra.mxu0 %v1890
    %2084 = vmatpush.bf16.msra.mxu0 %v1887
    %2085 = vmatpush.bf16.msra.mxu0 %v1884
    %2086 = vmatmul.bf16.gmra.mxu0 %v1470
    %v2087 = vpop.f32.mrf.mxu0
    %v2088 = vadd.f32 %v2039, %v2087
    %v2089 = vpop.f32.mrf.mxu0
    %v2090 = vadd.f32 %v2041, %v2089
    %2091 = vmatmul.bf16.gmra.mxu0 %v1473
    %v2092 = vpop.f32.mrf.mxu0
    %v2093 = vadd.f32 %v2044, %v2092
    %v2094 = vpop.f32.mrf.mxu0
    %v2095 = vadd.f32 %v2046, %v2094
    %2096 = vmatmul.bf16.gmra.mxu0 %v1476
    %v2097 = vpop.f32.mrf.mxu0
    %v2098 = vadd.f32 %v2049, %v2097
    %v2099 = vpop.f32.mrf.mxu0
    %v2100 = vadd.f32 %v2051, %v2099
    %2101 = vmatmul.bf16.gmra.mxu0 %v1479
    %v2102 = vpop.f32.mrf.mxu0
    %v2103 = vadd.f32 %v2054, %v2102
    %v2104 = vpop.f32.mrf.mxu0
    %v2105 = vadd.f32 %v2056, %v2104
    %2106 = vmatmul.bf16.gmra.mxu0 %v1482
    %v2107 = vpop.f32.mrf.mxu0
    %v2108 = vadd.f32 %v2059, %v2107
    %v2109 = vpop.f32.mrf.mxu0
    %v2110 = vadd.f32 %v2061, %v2109
    %2111 = vmatmul.bf16.gmra.mxu0 %v1485
    %v2112 = vpop.f32.mrf.mxu0
    %v2113 = vadd.f32 %v2064, %v2112
    %v2114 = vpop.f32.mrf.mxu0
    %v2115 = vadd.f32 %v2066, %v2114
    %2116 = vmatmul.bf16.gmra.mxu0 %v1488
    %v2117 = vpop.f32.mrf.mxu0
    %v2118 = vadd.f32 %v2069, %v2117
    %v2119 = vpop.f32.mrf.mxu0
    %v2120 = vadd.f32 %v2071, %v2119
    %2121 = vmatmul.bf16.gmra.mxu0 %v1491
    %v2122 = vpop.f32.mrf.mxu0
    %v2123 = vadd.f32 %v2074, %v2122
    %v2124 = vpop.f32.mrf.mxu0
    %v2125 = vadd.f32 %v2076, %v2124
    %2126 = vdwg.mxu0
    %2127 = vmatpush.bf16.msra.mxu0 %v1858
    %2128 = vmatpush.bf16.msra.mxu0 %v1855
    %2129 = vmatpush.bf16.msra.mxu0 %v1852
    %2130 = vmatpush.bf16.msra.mxu0 %v1849
    %2131 = vmatpush.bf16.msra.mxu0 %v1846
    %2132 = vmatpush.bf16.msra.mxu0 %v1843
    %2133 = vmatpush.bf16.msra.mxu0 %v1840
    %2134 = vmatpush.bf16.msra.mxu0 %v1837
    %2135 = vmatmul.bf16.gmra.mxu0 %v1468
    %v2136 = vpop.f32.mrf.mxu0
    %v2137 = vadd.f32 %v1591, %v2136
    %v2138 = vpop.f32.mrf.mxu0
    %v2139 = vadd.f32 %v1591, %v2138
    %2140 = vmatmul.bf16.gmra.mxu0 %v1471
    %v2141 = vpop.f32.mrf.mxu0
    %v2142 = vadd.f32 %v1591, %v2141
    %v2143 = vpop.f32.mrf.mxu0
    %v2144 = vadd.f32 %v1591, %v2143
    %2145 = vmatmul.bf16.gmra.mxu0 %v1474
    %v2146 = vpop.f32.mrf.mxu0
    %v2147 = vadd.f32 %v1591, %v2146
    %v2148 = vpop.f32.mrf.mxu0
    %v2149 = vadd.f32 %v1591, %v2148
    %2150 = vmatmul.bf16.gmra.mxu0 %v1477
    %v2151 = vpop.f32.mrf.mxu0
    %v2152 = vadd.f32 %v1591, %v2151
    %v2153 = vpop.f32.mrf.mxu0
    %v2154 = vadd.f32 %v1591, %v2153
    %2155 = vmatmul.bf16.gmra.mxu0 %v1480
    %v2156 = vpop.f32.mrf.mxu0
    %v2157 = vadd.f32 %v1591, %v2156
    %v2158 = vpop.f32.mrf.mxu0
    %v2159 = vadd.f32 %v1591, %v2158
    %2160 = vmatmul.bf16.gmra.mxu0 %v1483
    %v2161 = vpop.f32.mrf.mxu0
    %v2162 = vadd.f32 %v1591, %v2161
    %v2163 = vpop.f32.mrf.mxu0
    %v2164 = vadd.f32 %v1591, %v2163
    %2165 = vmatmul.bf16.gmra.mxu0 %v1486
    %v2166 = vpop.f32.mrf.mxu0
    %v2167 = vadd.f32 %v1591, %v2166
    %v2168 = vpop.f32.mrf.mxu0
    %v2169 = vadd.f32 %v1591, %v2168
    %2170 = vmatmul.bf16.gmra.mxu0 %v1489
    %v2171 = vpop.f32.mrf.mxu0
    %v2172 = vadd.f32 %v1591, %v2171
    %v2173 = vpop.f32.mrf.mxu0
    %v2174 = vadd.f32 %v1591, %v2173
    %2175 = vdwg.mxu0
    %2176 = vmatpush.bf16.msra.mxu0 %v1882
    %2177 = vmatpush.bf16.msra.mxu0 %v1879
    %2178 = vmatpush.bf16.msra.mxu0 %v1876
    %2179 = vmatpush.bf16.msra.mxu0 %v1873
    %2180 = vmatpush.bf16.msra.mxu0 %v1870
    %2181 = vmatpush.bf16.msra.mxu0 %v1867
    %2182 = vmatpush.bf16.msra.mxu0 %v1864
    %2183 = vmatpush.bf16.msra.mxu0 %v1861
    %2184 = vmatmul.bf16.gmra.mxu0 %v1469
    %v2185 = vpop.f32.mrf.mxu0
    %v2186 = vadd.f32 %v2137, %v2185
    %v2187 = vpop.f32.mrf.mxu0
    %v2188 = vadd.f32 %v2139, %v2187
    %2189 = vmatmul.bf16.gmra.mxu0 %v1472
    %v2190 = vpop.f32.mrf.mxu0
    %v2191 = vadd.f32 %v2142, %v2190
    %v2192 = vpop.f32.mrf.mxu0
    %v2193 = vadd.f32 %v2144, %v2192
    %2194 = vmatmul.bf16.gmra.mxu0 %v1475
    %v2195 = vpop.f32.mrf.mxu0
    %v2196 = vadd.f32 %v2147, %v2195
    %v2197 = vpop.f32.mrf.mxu0
    %v2198 = vadd.f32 %v2149, %v2197
    %2199 = vmatmul.bf16.gmra.mxu0 %v1478
    %v2200 = vpop.f32.mrf.mxu0
    %v2201 = vadd.f32 %v2152, %v2200
    %v2202 = vpop.f32.mrf.mxu0
    %v2203 = vadd.f32 %v2154, %v2202
    %2204 = vmatmul.bf16.gmra.mxu0 %v1481
    %v2205 = vpop.f32.mrf.mxu0
    %v2206 = vadd.f32 %v2157, %v2205
    %v2207 = vpop.f32.mrf.mxu0
    %v2208 = vadd.f32 %v2159, %v2207
    %2209 = vmatmul.bf16.gmra.mxu0 %v1484
    %v2210 = vpop.f32.mrf.mxu0
    %v2211 = vadd.f32 %v2162, %v2210
    %v2212 = vpop.f32.mrf.mxu0
    %v2213 = vadd.f32 %v2164, %v2212
    %2214 = vmatmul.bf16.gmra.mxu0 %v1487
    %v2215 = vpop.f32.mrf.mxu0
    %v2216 = vadd.f32 %v2167, %v2215
    %v2217 = vpop.f32.mrf.mxu0
    %v2218 = vadd.f32 %v2169, %v2217
    %2219 = vmatmul.bf16.gmra.mxu0 %v1490
    %v2220 = vpop.f32.mrf.mxu0
    %v2221 = vadd.f32 %v2172, %v2220
    %v2222 = vpop.f32.mrf.mxu0
    %v2223 = vadd.f32 %v2174, %v2222
    %2224 = vdwg.mxu0
    %2225 = vmatpush.bf16.msra.mxu0 %v1906
    %2226 = vmatpush.bf16.msra.mxu0 %v1903
    %2227 = vmatpush.bf16.msra.mxu0 %v1900
    %2228 = vmatpush.bf16.msra.mxu0 %v1897
    %2229 = vmatpush.bf16.msra.mxu0 %v1894
    %2230 = vmatpush.bf16.msra.mxu0 %v1891
    %2231 = vmatpush.bf16.msra.mxu0 %v1888
    %2232 = vmatpush.bf16.msra.mxu0 %v1885
    %2233 = vmatmul.bf16.gmra.mxu0 %v1470
    %v2234 = vpop.f32.mrf.mxu0
    %v2235 = vadd.f32 %v2186, %v2234
    %v2236 = vpop.f32.mrf.mxu0
    %v2237 = vadd.f32 %v2188, %v2236
    %2238 = vmatmul.bf16.gmra.mxu0 %v1473
    %v2239 = vpop.f32.mrf.mxu0
    %v2240 = vadd.f32 %v2191, %v2239
    %v2241 = vpop.f32.mrf.mxu0
    %v2242 = vadd.f32 %v2193, %v2241
    %2243 = vmatmul.bf16.gmra.mxu0 %v1476
    %v2244 = vpop.f32.mrf.mxu0
    %v2245 = vadd.f32 %v2196, %v2244
    %v2246 = vpop.f32.mrf.mxu0
    %v2247 = vadd.f32 %v2198, %v2246
    %2248 = vmatmul.bf16.gmra.mxu0 %v1479
    %v2249 = vpop.f32.mrf.mxu0
    %v2250 = vadd.f32 %v2201, %v2249
    %v2251 = vpop.f32.mrf.mxu0
    %v2252 = vadd.f32 %v2203, %v2251
    %2253 = vmatmul.bf16.gmra.mxu0 %v1482
    %v2254 = vpop.f32.mrf.mxu0
    %v2255 = vadd.f32 %v2206, %v2254
    %v2256 = vpop.f32.mrf.mxu0
    %v2257 = vadd.f32 %v2208, %v2256
    %2258 = vmatmul.bf16.gmra.mxu0 %v1485
    %v2259 = vpop.f32.mrf.mxu0
    %v2260 = vadd.f32 %v2211, %v2259
    %v2261 = vpop.f32.mrf.mxu0
    %v2262 = vadd.f32 %v2213, %v2261
    %2263 = vmatmul.bf16.gmra.mxu0 %v1488
    %v2264 = vpop.f32.mrf.mxu0
    %v2265 = vadd.f32 %v2216, %v2264
    %v2266 = vpop.f32.mrf.mxu0
    %v2267 = vadd.f32 %v2218, %v2266
    %2268 = vmatmul.bf16.gmra.mxu0 %v1491
    %v2269 = vpop.f32.mrf.mxu0
    %v2270 = vadd.f32 %v2221, %v2269
    %v2271 = vpop.f32.mrf.mxu0
    %v2272 = vadd.f32 %v2223, %v2271
    %2273 = vdwg.mxu0
    %2274 = vmatpush.bf16.msra.mxu0 %v1859
    %2275 = vmatpush.bf16.msra.mxu0 %v1856
    %2276 = vmatpush.bf16.msra.mxu0 %v1853
    %2277 = vmatpush.bf16.msra.mxu0 %v1850
    %2278 = vmatpush.bf16.msra.mxu0 %v1847
    %2279 = vmatpush.bf16.msra.mxu0 %v1844
    %2280 = vmatpush.bf16.msra.mxu0 %v1841
    %2281 = vmatpush.bf16.msra.mxu0 %v1838
    %2282 = vmatmul.bf16.gmra.mxu0 %v1468
    %v2283 = vpop.f32.mrf.mxu0
    %v2284 = vadd.f32 %v1592, %v2283
    %v2285 = vpop.f32.mrf.mxu0
    %v2286 = vadd.f32 %v1592, %v2285
    %2287 = vmatmul.bf16.gmra.mxu0 %v1471
    %v2288 = vpop.f32.mrf.mxu0
    %v2289 = vadd.f32 %v1592, %v2288
    %v2290 = vpop.f32.mrf.mxu0
    %v2291 = vadd.f32 %v1592, %v2290
    %2292 = vmatmul.bf16.gmra.mxu0 %v1474
    %v2293 = vpop.f32.mrf.mxu0
    %v2294 = vadd.f32 %v1592, %v2293
    %v2295 = vpop.f32.mrf.mxu0
    %v2296 = vadd.f32 %v1592, %v2295
    %2297 = vmatmul.bf16.gmra.mxu0 %v1477
    %v2298 = vpop.f32.mrf.mxu0
    %v2299 = vadd.f32 %v1592, %v2298
    %v2300 = vpop.f32.mrf.mxu0
    %v2301 = vadd.f32 %v1592, %v2300
    %2302 = vmatmul.bf16.gmra.mxu0 %v1480
    %v2303 = vpop.f32.mrf.mxu0
    %v2304 = vadd.f32 %v1592, %v2303
    %v2305 = vpop.f32.mrf.mxu0
    %v2306 = vadd.f32 %v1592, %v2305
    %2307 = vmatmul.bf16.gmra.mxu0 %v1483
    %v2308 = vpop.f32.mrf.mxu0
    %v2309 = vadd.f32 %v1592, %v2308
    %v2310 = vpop.f32.mrf.mxu0
    %v2311 = vadd.f32 %v1592, %v2310
    %2312 = vmatmul.bf16.gmra.mxu0 %v1486
    %v2313 = vpop.f32.mrf.mxu0
    %v2314 = vadd.f32 %v1592, %v2313
    %v2315 = vpop.f32.mrf.mxu0
    %v2316 = vadd.f32 %v1592, %v2315
    %2317 = vmatmul.bf16.gmra.mxu0 %v1489
    %v2318 = vpop.f32.mrf.mxu0
    %v2319 = vadd.f32 %v1592, %v2318
    %v2320 = vpop.f32.mrf.mxu0
    %v2321 = vadd.f32 %v1592, %v2320
    %2322 = vdwg.mxu0
    %2323 = vmatpush.bf16.msra.mxu0 %v1883
    %2324 = vmatpush.bf16.msra.mxu0 %v1880
    %2325 = vmatpush.bf16.msra.mxu0 %v1877
    %2326 = vmatpush.bf16.msra.mxu0 %v1874
    %2327 = vmatpush.bf16.msra.mxu0 %v1871
    %2328 = vmatpush.bf16.msra.mxu0 %v1868
    %2329 = vmatpush.bf16.msra.mxu0 %v1865
    %2330 = vmatpush.bf16.msra.mxu0 %v1862
    %2331 = vmatmul.bf16.gmra.mxu0 %v1469
    %v2332 = vpop.f32.mrf.mxu0
    %v2333 = vadd.f32 %v2284, %v2332
    %v2334 = vpop.f32.mrf.mxu0
    %v2335 = vadd.f32 %v2286, %v2334
    %2336 = vmatmul.bf16.gmra.mxu0 %v1472
    %v2337 = vpop.f32.mrf.mxu0
    %v2338 = vadd.f32 %v2289, %v2337
    %v2339 = vpop.f32.mrf.mxu0
    %v2340 = vadd.f32 %v2291, %v2339
    %2341 = vmatmul.bf16.gmra.mxu0 %v1475
    %v2342 = vpop.f32.mrf.mxu0
    %v2343 = vadd.f32 %v2294, %v2342
    %v2344 = vpop.f32.mrf.mxu0
    %v2345 = vadd.f32 %v2296, %v2344
    %2346 = vmatmul.bf16.gmra.mxu0 %v1478
    %v2347 = vpop.f32.mrf.mxu0
    %v2348 = vadd.f32 %v2299, %v2347
    %v2349 = vpop.f32.mrf.mxu0
    %v2350 = vadd.f32 %v2301, %v2349
    %2351 = vmatmul.bf16.gmra.mxu0 %v1481
    %v2352 = vpop.f32.mrf.mxu0
    %v2353 = vadd.f32 %v2304, %v2352
    %v2354 = vpop.f32.mrf.mxu0
    %v2355 = vadd.f32 %v2306, %v2354
    %2356 = vmatmul.bf16.gmra.mxu0 %v1484
    %v2357 = vpop.f32.mrf.mxu0
    %v2358 = vadd.f32 %v2309, %v2357
    %v2359 = vpop.f32.mrf.mxu0
    %v2360 = vadd.f32 %v2311, %v2359
    %2361 = vmatmul.bf16.gmra.mxu0 %v1487
    %v2362 = vpop.f32.mrf.mxu0
    %v2363 = vadd.f32 %v2314, %v2362
    %v2364 = vpop.f32.mrf.mxu0
    %v2365 = vadd.f32 %v2316, %v2364
    %2366 = vmatmul.bf16.gmra.mxu0 %v1490
    %v2367 = vpop.f32.mrf.mxu0
    %v2368 = vadd.f32 %v2319, %v2367
    %v2369 = vpop.f32.mrf.mxu0
    %v2370 = vadd.f32 %v2321, %v2369
    %2371 = vdwg.mxu0
    %2372 = vmatpush.bf16.msra.mxu0 %v1907
    %2373 = vmatpush.bf16.msra.mxu0 %v1904
    %2374 = vmatpush.bf16.msra.mxu0 %v1901
    %2375 = vmatpush.bf16.msra.mxu0 %v1898
    %2376 = vmatpush.bf16.msra.mxu0 %v1895
    %2377 = vmatpush.bf16.msra.mxu0 %v1892
    %2378 = vmatpush.bf16.msra.mxu0 %v1889
    %2379 = vmatpush.bf16.msra.mxu0 %v1886
    %2380 = vmatmul.bf16.gmra.mxu0 %v1470
    %v2381 = vpop.f32.mrf.mxu0
    %v2382 = vadd.f32 %v2333, %v2381
    %v2383 = vpop.f32.mrf.mxu0
    %v2384 = vadd.f32 %v2335, %v2383
    %2385 = vmatmul.bf16.gmra.mxu0 %v1473
    %v2386 = vpop.f32.mrf.mxu0
    %v2387 = vadd.f32 %v2338, %v2386
    %v2388 = vpop.f32.mrf.mxu0
    %v2389 = vadd.f32 %v2340, %v2388
    %2390 = vmatmul.bf16.gmra.mxu0 %v1476
    %v2391 = vpop.f32.mrf.mxu0
    %v2392 = vadd.f32 %v2343, %v2391
    %v2393 = vpop.f32.mrf.mxu0
    %v2394 = vadd.f32 %v2345, %v2393
    %2395 = vmatmul.bf16.gmra.mxu0 %v1479
    %v2396 = vpop.f32.mrf.mxu0
    %v2397 = vadd.f32 %v2348, %v2396
    %v2398 = vpop.f32.mrf.mxu0
    %v2399 = vadd.f32 %v2350, %v2398
    %2400 = vmatmul.bf16.gmra.mxu0 %v1482
    %v2401 = vpop.f32.mrf.mxu0
    %v2402 = vadd.f32 %v2353, %v2401
    %v2403 = vpop.f32.mrf.mxu0
    %v2404 = vadd.f32 %v2355, %v2403
    %2405 = vmatmul.bf16.gmra.mxu0 %v1485
    %v2406 = vpop.f32.mrf.mxu0
    %v2407 = vadd.f32 %v2358, %v2406
    %v2408 = vpop.f32.mrf.mxu0
    %v2409 = vadd.f32 %v2360, %v2408
    %2410 = vmatmul.bf16.gmra.mxu0 %v1488
    %v2411 = vpop.f32.mrf.mxu0
    %v2412 = vadd.f32 %v2363, %v2411
    %v2413 = vpop.f32.mrf.mxu0
    %v2414 = vadd.f32 %v2365, %v2413
    %2415 = vmatmul.bf16.gmra.mxu0 %v1491
    %v2416 = vpop.f32.mrf.mxu0
    %v2417 = vadd.f32 %v2368, %v2416
    %v2418 = vpop.f32.mrf.mxu0
    %v2419 = vadd.f32 %v2370, %v2418
    %2420 = vdwg.mxu0
    %v2421 = vmax.f32 %v2088, 0.0
    %v2422 = vmax.f32 %v2235, 0.0
    %v2423 = vmax.f32 %v2382, 0.0
    %v2424 = vmax.f32 %v2090, 0.0
    %v2425 = vmax.f32 %v2237, 0.0
    %v2426 = vmax.f32 %v2384, 0.0
    %v2427 = vmax.f32 %v2093, 0.0
    %v2428 = vmax.f32 %v2240, 0.0
    %v2429 = vmax.f32 %v2387, 0.0
    %v2430 = vmax.f32 %v2095, 0.0
    %v2431 = vmax.f32 %v2242, 0.0
    %v2432 = vmax.f32 %v2389, 0.0
    %v2433 = vmax.f32 %v2098, 0.0
    %v2434 = vmax.f32 %v2245, 0.0
    %v2435 = vmax.f32 %v2392, 0.0
    %v2436 = vmax.f32 %v2100, 0.0
    %v2437 = vmax.f32 %v2247, 0.0
    %v2438 = vmax.f32 %v2394, 0.0
    %v2439 = vmax.f32 %v2103, 0.0
    %v2440 = vmax.f32 %v2250, 0.0
    %v2441 = vmax.f32 %v2397, 0.0
    %v2442 = vmax.f32 %v2105, 0.0
    %v2443 = vmax.f32 %v2252, 0.0
    %v2444 = vmax.f32 %v2399, 0.0
    %v2445 = vmax.f32 %v2108, 0.0
    %v2446 = vmax.f32 %v2255, 0.0
    %v2447 = vmax.f32 %v2402, 0.0
    %v2448 = vmax.f32 %v2110, 0.0
    %v2449 = vmax.f32 %v2257, 0.0
    %v2450 = vmax.f32 %v2404, 0.0
    %v2451 = vmax.f32 %v2113, 0.0
    %v2452 = vmax.f32 %v2260, 0.0
    %v2453 = vmax.f32 %v2407, 0.0
    %v2454 = vmax.f32 %v2115, 0.0
    %v2455 = vmax.f32 %v2262, 0.0
    %v2456 = vmax.f32 %v2409, 0.0
    %v2457 = vmax.f32 %v2118, 0.0
    %v2458 = vmax.f32 %v2265, 0.0
    %v2459 = vmax.f32 %v2412, 0.0
    %v2460 = vmax.f32 %v2120, 0.0
    %v2461 = vmax.f32 %v2267, 0.0
    %v2462 = vmax.f32 %v2414, 0.0
    %v2463 = vmax.f32 %v2123, 0.0
    %v2464 = vmax.f32 %v2270, 0.0
    %v2465 = vmax.f32 %v2417, 0.0
    %v2466 = vmax.f32 %v2125, 0.0
    %v2467 = vmax.f32 %v2272, 0.0
    %v2468 = vmax.f32 %v2419, 0.0
    %v2469 = vpack.c.bf16 %v2424, %v2421
    %v2470 = vpack.c.bf16 %v2425, %v2422
    %v2471 = vpack.c.bf16 %v2426, %v2423
    %v2472 = vpack.c.bf16 %v2430, %v2427
    %v2473 = vpack.c.bf16 %v2431, %v2428
    %v2474 = vpack.c.bf16 %v2432, %v2429
    %v2475 = vpack.c.bf16 %v2436, %v2433
    %v2476 = vpack.c.bf16 %v2437, %v2434
    %v2477 = vpack.c.bf16 %v2438, %v2435
    %v2478 = vpack.c.bf16 %v2442, %v2439
    %v2479 = vpack.c.bf16 %v2443, %v2440
    %v2480 = vpack.c.bf16 %v2444, %v2441
    %v2481 = vpack.c.bf16 %v2448, %v2445
    %v2482 = vpack.c.bf16 %v2449, %v2446
    %v2483 = vpack.c.bf16 %v2450, %v2447
    %v2484 = vpack.c.bf16 %v2454, %v2451
    %v2485 = vpack.c.bf16 %v2455, %v2452
    %v2486 = vpack.c.bf16 %v2456, %v2453
    %v2487 = vpack.c.bf16 %v2460, %v2457
    %v2488 = vpack.c.bf16 %v2461, %v2458
    %v2489 = vpack.c.bf16 %v2462, %v2459
    %v2490 = vpack.c.bf16 %v2466, %v2463
    %v2491 = vpack.c.bf16 %v2467, %v2464
    %v2492 = vpack.c.bf16 %v2468, %v2465
    %v2493 = vld [vmem:[#allocation9] sm:$0xf]
    %v2494 = vld [vmem:[#allocation9 + $0x4] sm:$0xf]
    %v2495 = vld [vmem:[#allocation9 + $0x8] sm:$0xf]
    %v2496 = vld [vmem:[#allocation9 + $0xc] sm:$0xf]
    %v2497 = vld [vmem:[#allocation9 + $0x10] sm:$0xf]
    %v2498 = vld [vmem:[#allocation9 + $0x14] sm:$0xf]
    %v2499 = vld [vmem:[#allocation9 + $0x18] sm:$0xf]
    %v2500 = vld [vmem:[#allocation9 + $0x1c] sm:$0xf]
    %v2501 = vld [vmem:[#allocation9 + $0x20] sm:$0xf]
    %v2502 = vld [vmem:[#allocation9 + $0x24] sm:$0xf]
    %v2503 = vld [vmem:[#allocation9 + $0x28] sm:$0xf]
    %v2504 = vld [vmem:[#allocation9 + $0x2c] sm:$0xf]
    %v2505 = vld [vmem:[#allocation9 + $0x30] sm:$0xf]
    %v2506 = vld [vmem:[#allocation9 + $0x34] sm:$0xf]
    %v2507 = vld [vmem:[#allocation9 + $0x38] sm:$0xf]
    %v2508 = vld [vmem:[#allocation9 + $0x3c] sm:$0xf]
    %v2509 = vld [vmem:[#allocation9 + $0x40] sm:$0xf]
    %v2510 = vld [vmem:[#allocation9 + $0x44] sm:$0xf]
    %v2511 = vld [vmem:[#allocation9 + $0x48] sm:$0xf]
    %v2512 = vld [vmem:[#allocation9 + $0x4c] sm:$0xf]
    %v2513 = vld [vmem:[#allocation9 + $0x50] sm:$0xf]
    %v2514 = vld [vmem:[#allocation9 + $0x54] sm:$0xf]
    %v2515 = vld [vmem:[#allocation9 + $0x58] sm:$0xf]
    %v2516 = vld [vmem:[#allocation9 + $0x5c] sm:$0xf]
    %v2517 = vld [vmem:[#allocation9 + $0x60] sm:$0xf]
    %v2518 = vld [vmem:[#allocation9 + $0x64] sm:$0xf]
    %v2519 = vld [vmem:[#allocation9 + $0x68] sm:$0xf]
    %v2520 = vld [vmem:[#allocation9 + $0x6c] sm:$0xf]
    %v2521 = vld [vmem:[#allocation9 + $0x70] sm:$0xf]
    %v2522 = vld [vmem:[#allocation9 + $0x74] sm:$0xf]
    %v2523 = vld [vmem:[#allocation9 + $0x78] sm:$0xf]
    %v2524 = vld [vmem:[#allocation9 + $0x7c] sm:$0xf]
    %v2525 = vld [vmem:[#allocation9 + $0x80] sm:$0xf]
    %v2526 = vld [vmem:[#allocation9 + $0x84] sm:$0xf]
    %v2527 = vld [vmem:[#allocation9 + $0x88] sm:$0xf]
    %v2528 = vld [vmem:[#allocation9 + $0x8c] sm:$0xf]
    %v2529 = vld [vmem:[#allocation9 + $0x90] sm:$0xf]
    %v2530 = vld [vmem:[#allocation9 + $0x94] sm:$0xf]
    %v2531 = vld [vmem:[#allocation9 + $0x98] sm:$0xf]
    %v2532 = vld [vmem:[#allocation9 + $0x9c] sm:$0xf]
    %v2533 = vld [vmem:[#allocation9 + $0xa0] sm:$0xf]
    %v2534 = vld [vmem:[#allocation9 + $0xa4] sm:$0xf]
    %v2535 = vld [vmem:[#allocation9 + $0xa8] sm:$0xf]
    %v2536 = vld [vmem:[#allocation9 + $0xac] sm:$0xf]
    %v2537 = vld [vmem:[#allocation9 + $0xb0] sm:$0xf]
    %v2538 = vld [vmem:[#allocation9 + $0xb4] sm:$0xf]
    %v2539 = vld [vmem:[#allocation9 + $0xb8] sm:$0xf]
    %v2540 = vld [vmem:[#allocation9 + $0xbc] sm:$0xf]
    %v2541 = vld [vmem:[%s10] sm:$0x1]
    %v2543 = vperm.slane %v2541, 0
    %v2593 = vunpack.c.l.b16 %v2493
    %v2594 = vunpack.c.l.b16 %v2494
    %v2595 = vunpack.c.l.b16 %v2495
    %v2596 = vunpack.c.l.b16 %v2496
    %v2597 = vunpack.c.l.b16 %v2497
    %v2598 = vunpack.c.l.b16 %v2498
    %v2599 = vunpack.c.l.b16 %v2499
    %v2600 = vunpack.c.l.b16 %v2500
    %v2601 = vunpack.c.l.b16 %v2501
    %v2602 = vunpack.c.l.b16 %v2502
    %v2603 = vunpack.c.l.b16 %v2503
    %v2604 = vunpack.c.l.b16 %v2504
    %v2605 = vunpack.c.l.b16 %v2505
    %v2606 = vunpack.c.l.b16 %v2506
    %v2607 = vunpack.c.l.b16 %v2507
    %v2608 = vunpack.c.l.b16 %v2508
    %v2609 = vunpack.c.l.b16 %v2509
    %v2610 = vunpack.c.l.b16 %v2510
    %v2611 = vunpack.c.l.b16 %v2511
    %v2612 = vunpack.c.l.b16 %v2512
    %v2613 = vunpack.c.l.b16 %v2513
    %v2614 = vunpack.c.l.b16 %v2514
    %v2615 = vunpack.c.l.b16 %v2515
    %v2616 = vunpack.c.l.b16 %v2516
    %v2617 = vunpack.c.l.b16 %v2517
    %v2618 = vunpack.c.l.b16 %v2518
    %v2619 = vunpack.c.l.b16 %v2519
    %v2620 = vunpack.c.l.b16 %v2520
    %v2621 = vunpack.c.l.b16 %v2521
    %v2622 = vunpack.c.l.b16 %v2522
    %v2623 = vunpack.c.l.b16 %v2523
    %v2624 = vunpack.c.l.b16 %v2524
    %v2625 = vunpack.c.l.b16 %v2525
    %v2626 = vunpack.c.l.b16 %v2526
    %v2627 = vunpack.c.l.b16 %v2527
    %v2628 = vunpack.c.l.b16 %v2528
    %v2629 = vunpack.c.l.b16 %v2529
    %v2630 = vunpack.c.l.b16 %v2530
    %v2631 = vunpack.c.l.b16 %v2531
    %v2632 = vunpack.c.l.b16 %v2532
    %v2633 = vunpack.c.l.b16 %v2533
    %v2634 = vunpack.c.l.b16 %v2534
    %v2635 = vunpack.c.l.b16 %v2535
    %v2636 = vunpack.c.l.b16 %v2536
    %v2637 = vunpack.c.l.b16 %v2537
    %v2638 = vunpack.c.l.b16 %v2538
    %v2639 = vunpack.c.l.b16 %v2539
    %v2640 = vunpack.c.l.b16 %v2540
    %v2641 = vpack.c.b16 %v2594, %v2593
    %v2642 = vpack.c.b16 %v2596, %v2595
    %v2643 = vpack.c.b16 %v2598, %v2597
    %v2644 = vpack.c.b16 %v2600, %v2599
    %v2645 = vpack.c.b16 %v2602, %v2601
    %v2646 = vpack.c.b16 %v2604, %v2603
    %v2647 = vpack.c.b16 %v2606, %v2605
    %v2648 = vpack.c.b16 %v2608, %v2607
    %v2649 = vpack.c.b16 %v2610, %v2609
    %v2650 = vpack.c.b16 %v2612, %v2611
    %v2651 = vpack.c.b16 %v2614, %v2613
    %v2652 = vpack.c.b16 %v2616, %v2615
    %v2653 = vpack.c.b16 %v2618, %v2617
    %v2654 = vpack.c.b16 %v2620, %v2619
    %v2655 = vpack.c.b16 %v2622, %v2621
    %v2656 = vpack.c.b16 %v2624, %v2623
    %v2657 = vpack.c.b16 %v2626, %v2625
    %v2658 = vpack.c.b16 %v2628, %v2627
    %v2659 = vpack.c.b16 %v2630, %v2629
    %v2660 = vpack.c.b16 %v2632, %v2631
    %v2661 = vpack.c.b16 %v2634, %v2633
    %v2662 = vpack.c.b16 %v2636, %v2635
    %v2663 = vpack.c.b16 %v2638, %v2637
    %v2664 = vpack.c.b16 %v2640, %v2639
    %2689 = vmatpush.bf16.msra.mxu0 %v2648
    %2690 = vmatpush.bf16.msra.mxu0 %v2647
    %2691 = vmatpush.bf16.msra.mxu0 %v2646
    %2692 = vmatpush.bf16.msra.mxu0 %v2645
    %2693 = vmatpush.bf16.msra.mxu0 %v2644
    %2694 = vmatpush.bf16.msra.mxu0 %v2643
    %2695 = vmatpush.bf16.msra.mxu0 %v2642
    %2696 = vmatpush.bf16.msra.mxu0 %v2641
    %2697 = vmatmul.bf16.gmra.mxu0 %v2469
    %v2698 = vpop.f32.mrf.mxu0
    %v2699 = vadd.f32 %v2543, %v2698
    %v2700 = vpop.f32.mrf.mxu0
    %v2701 = vadd.f32 %v2543, %v2700
    %2702 = vmatmul.bf16.gmra.mxu0 %v2472
    %v2703 = vpop.f32.mrf.mxu0
    %v2704 = vadd.f32 %v2543, %v2703
    %v2705 = vpop.f32.mrf.mxu0
    %v2706 = vadd.f32 %v2543, %v2705
    %2707 = vmatmul.bf16.gmra.mxu0 %v2475
    %v2708 = vpop.f32.mrf.mxu0
    %v2709 = vadd.f32 %v2543, %v2708
    %v2710 = vpop.f32.mrf.mxu0
    %v2711 = vadd.f32 %v2543, %v2710
    %2712 = vmatmul.bf16.gmra.mxu0 %v2478
    %v2713 = vpop.f32.mrf.mxu0
    %v2714 = vadd.f32 %v2543, %v2713
    %v2715 = vpop.f32.mrf.mxu0
    %v2716 = vadd.f32 %v2543, %v2715
    %2717 = vmatmul.bf16.gmra.mxu0 %v2481
    %v2718 = vpop.f32.mrf.mxu0
    %v2719 = vadd.f32 %v2543, %v2718
    %v2720 = vpop.f32.mrf.mxu0
    %v2721 = vadd.f32 %v2543, %v2720
    %2722 = vmatmul.bf16.gmra.mxu0 %v2484
    %v2723 = vpop.f32.mrf.mxu0
    %v2724 = vadd.f32 %v2543, %v2723
    %v2725 = vpop.f32.mrf.mxu0
    %v2726 = vadd.f32 %v2543, %v2725
    %2727 = vmatmul.bf16.gmra.mxu0 %v2487
    %v2728 = vpop.f32.mrf.mxu0
    %v2729 = vadd.f32 %v2543, %v2728
    %v2730 = vpop.f32.mrf.mxu0
    %v2731 = vadd.f32 %v2543, %v2730
    %2732 = vmatmul.bf16.gmra.mxu0 %v2490
    %v2733 = vpop.f32.mrf.mxu0
    %v2734 = vadd.f32 %v2543, %v2733
    %v2735 = vpop.f32.mrf.mxu0
    %v2736 = vadd.f32 %v2543, %v2735
    %2737 = vdwg.mxu0
    %2738 = vmatpush.bf16.msra.mxu0 %v2656
    %2739 = vmatpush.bf16.msra.mxu0 %v2655
    %2740 = vmatpush.bf16.msra.mxu0 %v2654
    %2741 = vmatpush.bf16.msra.mxu0 %v2653
    %2742 = vmatpush.bf16.msra.mxu0 %v2652
    %2743 = vmatpush.bf16.msra.mxu0 %v2651
    %2744 = vmatpush.bf16.msra.mxu0 %v2650
    %2745 = vmatpush.bf16.msra.mxu0 %v2649
    %2746 = vmatmul.bf16.gmra.mxu0 %v2470
    %v2747 = vpop.f32.mrf.mxu0
    %v2748 = vadd.f32 %v2699, %v2747
    %v2749 = vpop.f32.mrf.mxu0
    %v2750 = vadd.f32 %v2701, %v2749
    %2751 = vmatmul.bf16.gmra.mxu0 %v2473
    %v2752 = vpop.f32.mrf.mxu0
    %v2753 = vadd.f32 %v2704, %v2752
    %v2754 = vpop.f32.mrf.mxu0
    %v2755 = vadd.f32 %v2706, %v2754
    %2756 = vmatmul.bf16.gmra.mxu0 %v2476
    %v2757 = vpop.f32.mrf.mxu0
    %v2758 = vadd.f32 %v2709, %v2757
    %v2759 = vpop.f32.mrf.mxu0
    %v2760 = vadd.f32 %v2711, %v2759
    %2761 = vmatmul.bf16.gmra.mxu0 %v2479
    %v2762 = vpop.f32.mrf.mxu0
    %v2763 = vadd.f32 %v2714, %v2762
    %v2764 = vpop.f32.mrf.mxu0
    %v2765 = vadd.f32 %v2716, %v2764
    %2766 = vmatmul.bf16.gmra.mxu0 %v2482
    %v2767 = vpop.f32.mrf.mxu0
    %v2768 = vadd.f32 %v2719, %v2767
    %v2769 = vpop.f32.mrf.mxu0
    %v2770 = vadd.f32 %v2721, %v2769
    %2771 = vmatmul.bf16.gmra.mxu0 %v2485
    %v2772 = vpop.f32.mrf.mxu0
    %v2773 = vadd.f32 %v2724, %v2772
    %v2774 = vpop.f32.mrf.mxu0
    %v2775 = vadd.f32 %v2726, %v2774
    %2776 = vmatmul.bf16.gmra.mxu0 %v2488
    %v2777 = vpop.f32.mrf.mxu0
    %v2778 = vadd.f32 %v2729, %v2777
    %v2779 = vpop.f32.mrf.mxu0
    %v2780 = vadd.f32 %v2731, %v2779
    %2781 = vmatmul.bf16.gmra.mxu0 %v2491
    %v2782 = vpop.f32.mrf.mxu0
    %v2783 = vadd.f32 %v2734, %v2782
    %v2784 = vpop.f32.mrf.mxu0
    %v2785 = vadd.f32 %v2736, %v2784
    %2786 = vdwg.mxu0
    %2787 = vmatpush.bf16.msra.mxu0 %v2664
    %2788 = vmatpush.bf16.msra.mxu0 %v2663
    %2789 = vmatpush.bf16.msra.mxu0 %v2662
    %2790 = vmatpush.bf16.msra.mxu0 %v2661
    %2791 = vmatpush.bf16.msra.mxu0 %v2660
    %2792 = vmatpush.bf16.msra.mxu0 %v2659
    %2793 = vmatpush.bf16.msra.mxu0 %v2658
    %2794 = vmatpush.bf16.msra.mxu0 %v2657
    %2795 = vmatmul.bf16.gmra.mxu0 %v2471
    %v2796 = vpop.f32.mrf.mxu0
    %v2797 = vadd.f32 %v2748, %v2796
    %v2798 = vpop.f32.mrf.mxu0
    %v2799 = vadd.f32 %v2750, %v2798
    %2800 = vmatmul.bf16.gmra.mxu0 %v2474
    %v2801 = vpop.f32.mrf.mxu0
    %v2802 = vadd.f32 %v2753, %v2801
    %v2803 = vpop.f32.mrf.mxu0
    %v2804 = vadd.f32 %v2755, %v2803
    %2805 = vmatmul.bf16.gmra.mxu0 %v2477
    %v2806 = vpop.f32.mrf.mxu0
    %v2807 = vadd.f32 %v2758, %v2806
    %v2808 = vpop.f32.mrf.mxu0
    %v2809 = vadd.f32 %v2760, %v2808
    %2810 = vmatmul.bf16.gmra.mxu0 %v2480
    %v2811 = vpop.f32.mrf.mxu0
    %v2812 = vadd.f32 %v2763, %v2811
    %v2813 = vpop.f32.mrf.mxu0
    %v2814 = vadd.f32 %v2765, %v2813
    %2815 = vmatmul.bf16.gmra.mxu0 %v2483
    %v2816 = vpop.f32.mrf.mxu0
    %v2817 = vadd.f32 %v2768, %v2816
    %v2818 = vpop.f32.mrf.mxu0
    %v2819 = vadd.f32 %v2770, %v2818
    %2820 = vmatmul.bf16.gmra.mxu0 %v2486
    %v2821 = vpop.f32.mrf.mxu0
    %v2822 = vadd.f32 %v2773, %v2821
    %v2823 = vpop.f32.mrf.mxu0
    %v2824 = vadd.f32 %v2775, %v2823
    %2825 = vmatmul.bf16.gmra.mxu0 %v2489
    %v2826 = vpop.f32.mrf.mxu0
    %v2827 = vadd.f32 %v2778, %v2826
    %v2828 = vpop.f32.mrf.mxu0
    %v2829 = vadd.f32 %v2780, %v2828
    %2830 = vmatmul.bf16.gmra.mxu0 %v2492
    %v2831 = vpop.f32.mrf.mxu0
    %v2832 = vadd.f32 %v2783, %v2831
    %v2833 = vpop.f32.mrf.mxu0
    %v2834 = vadd.f32 %v2785, %v2833
    %2835 = vdwg.mxu0
    %v2836 = vld [vmem:[#allocation3] sm:$0xff]
    %v2837 = vld [vmem:[%s1] sm:$0x1]
    %v2838 = vperm.slane %v2837, 0
    %vm2839 = vcmp.eq.s32.totalorder %v2836, %v2838
    %v2840 = vsel %vm2839, 1, 0
    %v2841 = vcvt.s32.f32 %v2840
    %v2842 = vpack.c.bf16 %v2841, %v2841
    %v2843 = vld [vmem:[#allocation2] sm:$0xff]
    %v2844 = vpack.c.bf16 %v2799, %v2797
    %v2845 = vpack.c.bf16 %v2804, %v2802
    %v2846 = vpack.c.bf16 %v2809, %v2807
    %v2847 = vpack.c.bf16 %v2814, %v2812
    %v2848 = vpack.c.bf16 %v2819, %v2817
    %v2849 = vpack.c.bf16 %v2824, %v2822
    %v2850 = vpack.c.bf16 %v2829, %v2827
    %v2851 = vpack.c.bf16 %v2834, %v2832
    %2852 = vmatpush.bf16.msra.mxu0 %v2851
    %2853 = vmatpush.bf16.msra.mxu0 %v2850
    %2854 = vmatpush.bf16.msra.mxu0 %v2849
    %2855 = vmatpush.bf16.msra.mxu0 %v2848
    %2856 = vmatpush.bf16.msra.mxu0 %v2847
    %2857 = vmatpush.bf16.msra.mxu0 %v2846
    %2858 = vmatpush.bf16.msra.mxu0 %v2845
    %2859 = vmatpush.bf16.msra.mxu0 %v2844
    %2860 = vmatmul.bf16.gmra.mxu0 %v2842
    %v2861 = vpop.f32.mrf.mxu0
    %v2862 = vadd.f32 0.0, %v2861
    %v2863 = vpop.f32.mrf.mxu0
    %2864 = vdwg.mxu0
    %v2865 = vadd.f32 %v2843, %v2862
    %2866 = vst [vmem:[#allocation2] sm:$0xff] %v2865
    // Predicated region
    $region102: #{tpu_custom_call.1} parent=1 // pred_check
      %p2867 = pneg %p155
    $region103: #{tpu_custom_call.1} parent=1 // pred_check_branch
      %2869 = sbr.rel (%p2867) target = $region105
    $region104: #{tpu_custom_call.1} parent=1 // pred_region
      %v2870 = vld [vmem:[%s2] sm:$0xff]
      %v2871 = vld [vmem:[%s11] sm:$0xff]
      %v2872 = vld [vmem:[#allocation2] sm:$0xff]
      %v2873 = vld [vmem:[#allocation10] sm:$0xff]
      %v2874 = vld [vmem:[#allocation10 + $0x8] sm:$0xff]
      %v2875 = vld [vmem:[#allocation10 + $0x10] sm:$0xff]
      %v2876 = vld [vmem:[#allocation10 + $0x18] sm:$0xff]
      %v2877 = vld [vmem:[#allocation10 + $0x20] sm:$0xff]
      %v2878 = vld [vmem:[#allocation10 + $0x28] sm:$0xff]
      %v2879 = vld [vmem:[#allocation10 + $0x30] sm:$0xff]
      %v2880 = vld [vmem:[#allocation10 + $0x38] sm:$0xff]
      %v2881 = vld [vmem:[#allocation10 + $0x40] sm:$0xff]
      %v2882 = vld [vmem:[#allocation10 + $0x48] sm:$0xff]
      %v2883 = vld [vmem:[#allocation10 + $0x50] sm:$0xff]
      %v2884 = vld [vmem:[#allocation10 + $0x58] sm:$0xff]
      %v2885 = vld [vmem:[#allocation10 + $0x60] sm:$0xff]
      %v2886 = vld [vmem:[#allocation10 + $0x68] sm:$0xff]
      %v2887 = vld [vmem:[#allocation10 + $0x70] sm:$0xff]
      %v2888 = vld [vmem:[#allocation10 + $0x78] sm:$0xff]
      %2889 = vmatpush.msra.mxu0 %v2888
      %2890 = vmatpush.msra.mxu0 %v2887
      %2891 = vmatpush.msra.mxu0 %v2886
      %2892 = vmatpush.msra.mxu0 %v2885
      %2893 = vmatpush.msra.mxu0 %v2884
      %2894 = vmatpush.msra.mxu0 %v2883
      %2895 = vmatpush.msra.mxu0 %v2882
      %2896 = vmatpush.msra.mxu0 %v2881
      %2897 = vmatpush.msra.mxu0 %v2880
      %2898 = vmatpush.msra.mxu0 %v2879
      %2899 = vmatpush.msra.mxu0 %v2878
      %2900 = vmatpush.msra.mxu0 %v2877
      %2901 = vmatpush.msra.mxu0 %v2876
      %2902 = vmatpush.msra.mxu0 %v2875
      %2903 = vmatpush.msra.mxu0 %v2874
      %2904 = vmatpush.msra.mxu0 %v2873
      %2905 = vmatmul.f32.gmra.mxu0 %v2872
      %v2906 = vpop.f32.mrf.mxu0
      %v2907 = vadd.f32 0.0, %v2906
      %2908 = vdwg.mxu0
      %v2910 = vsel %vm237, %v2870, 0
      %2912 = vmatpush.msra.mxu0 0.0
      %2913 = vmatpush.msra.mxu0 0.0
      %2914 = vmatpush.msra.mxu0 0.0
      %2915 = vmatpush.msra.mxu0 0.0
      %2916 = vmatpush.msra.mxu0 0.0
      %2917 = vmatpush.msra.mxu0 0.0
      %2918 = vmatpush.msra.mxu0 0.0
      %2919 = vmatpush.msra.mxu0 0.0
      %2920 = vmatpush.msra.mxu0 0.0
      %2921 = vmatpush.msra.mxu0 0.0
      %2922 = vmatpush.msra.mxu0 0.0
      %2923 = vmatpush.msra.mxu0 0.0
      %2924 = vmatpush.msra.mxu0 0.0
      %2925 = vmatpush.msra.mxu0 0.0
      %2926 = vmatpush.msra.mxu0 0.0
      %2927 = vmatpush.msra.mxu0 %v2871
      %2928 = vmatmul.f32.gmra.mxu0 %v2910
      %v2929 = vpop.f32.mrf.mxu0
      %v2930 = vadd.f32 %v2907, %v2929
      %2931 = vdwg.mxu0
      %v2932 = vld [vmem:[%s13] sm:$0x1]
      %v2934 = vperm.slane %v2932, 0
      %v2936 = vadd.f32 %v2930, %v2934
      %v2937 = vmax.f32 %v2936, 0.0
      %v2938 = vld [vmem:[#allocation12] sm:$0xff]
      %v2939 = vld [vmem:[#allocation12 + $0x8] sm:$0xff]
      %v2940 = vld [vmem:[#allocation12 + $0x10] sm:$0xff]
      %v2941 = vld [vmem:[#allocation12 + $0x18] sm:$0xff]
      %v2942 = vld [vmem:[#allocation12 + $0x20] sm:$0xff]
      %v2943 = vld [vmem:[#allocation12 + $0x28] sm:$0xff]
      %v2944 = vld [vmem:[#allocation12 + $0x30] sm:$0xff]
      %v2945 = vld [vmem:[#allocation12 + $0x38] sm:$0xff]
      %v2946 = vld [vmem:[#allocation12 + $0x40] sm:$0xff]
      %v2947 = vld [vmem:[#allocation12 + $0x48] sm:$0xff]
      %v2948 = vld [vmem:[#allocation12 + $0x50] sm:$0xff]
      %v2949 = vld [vmem:[#allocation12 + $0x58] sm:$0xff]
      %v2950 = vld [vmem:[#allocation12 + $0x60] sm:$0xff]
      %v2951 = vld [vmem:[#allocation12 + $0x68] sm:$0xff]
      %v2952 = vld [vmem:[#allocation12 + $0x70] sm:$0xff]
      %v2953 = vld [vmem:[#allocation12 + $0x78] sm:$0xff]
      %v2954 = vld [vmem:[%s15] sm:$0x1]
      %v2956 = vperm.slane %v2954, 0
      %2958 = vmatpush.msra.mxu0 %v2953
      %2959 = vmatpush.msra.mxu0 %v2952
      %2960 = vmatpush.msra.mxu0 %v2951
      %2961 = vmatpush.msra.mxu0 %v2950
      %2962 = vmatpush.msra.mxu0 %v2949
      %2963 = vmatpush.msra.mxu0 %v2948
      %2964 = vmatpush.msra.mxu0 %v2947
      %2965 = vmatpush.msra.mxu0 %v2946
      %2966 = vmatpush.msra.mxu0 %v2945
      %2967 = vmatpush.msra.mxu0 %v2944
      %2968 = vmatpush.msra.mxu0 %v2943
      %2969 = vmatpush.msra.mxu0 %v2942
      %2970 = vmatpush.msra.mxu0 %v2941
      %2971 = vmatpush.msra.mxu0 %v2940
      %2972 = vmatpush.msra.mxu0 %v2939
      %2973 = vmatpush.msra.mxu0 %v2938
      %2974 = vmatmul.f32.gmra.mxu0 %v2937
      %v2975 = vpop.f32.mrf.mxu0
      %v2976 = vadd.f32 %v2956, %v2975
      %2977 = vdwg.mxu0
      %v2978 = vmax.f32 %v2976, 0.0
      %v2979 = vld [vmem:[#allocation13] sm:$0xff]
      %v2980 = vld [vmem:[#allocation13 + $0x8] sm:$0xff]
      %v2981 = vld [vmem:[#allocation13 + $0x10] sm:$0xff]
      %v2982 = vld [vmem:[#allocation13 + $0x18] sm:$0xff]
      %v2983 = vld [vmem:[#allocation13 + $0x20] sm:$0xff]
      %v2984 = vld [vmem:[#allocation13 + $0x28] sm:$0xff]
      %v2985 = vld [vmem:[#allocation13 + $0x30] sm:$0xff]
      %v2986 = vld [vmem:[#allocation13 + $0x38] sm:$0xff]
      %v2987 = vld [vmem:[#allocation13 + $0x40] sm:$0xff]
      %v2988 = vld [vmem:[#allocation13 + $0x48] sm:$0xff]
      %v2989 = vld [vmem:[#allocation13 + $0x50] sm:$0xff]
      %v2990 = vld [vmem:[#allocation13 + $0x58] sm:$0xff]
      %v2991 = vld [vmem:[#allocation13 + $0x60] sm:$0xff]
      %v2992 = vld [vmem:[#allocation13 + $0x68] sm:$0xff]
      %v2993 = vld [vmem:[#allocation13 + $0x70] sm:$0xff]
      %v2994 = vld [vmem:[#allocation13 + $0x78] sm:$0xff]
      %v2995 = vld [vmem:[%s17] sm:$0x1]
      %v2997 = vperm.slane %v2995, 0
      %2999 = vmatpush.msra.mxu0 %v2994
      %3000 = vmatpush.msra.mxu0 %v2993
      %3001 = vmatpush.msra.mxu0 %v2992
      %3002 = vmatpush.msra.mxu0 %v2991
      %3003 = vmatpush.msra.mxu0 %v2990
      %3004 = vmatpush.msra.mxu0 %v2989
      %3005 = vmatpush.msra.mxu0 %v2988
      %3006 = vmatpush.msra.mxu0 %v2987
      %3007 = vmatpush.msra.mxu0 %v2986
      %3008 = vmatpush.msra.mxu0 %v2985
      %3009 = vmatpush.msra.mxu0 %v2984
      %3010 = vmatpush.msra.mxu0 %v2983
      %3011 = vmatpush.msra.mxu0 %v2982
      %3012 = vmatpush.msra.mxu0 %v2981
      %3013 = vmatpush.msra.mxu0 %v2980
      %3014 = vmatpush.msra.mxu0 %v2979
      %3015 = vmatmul.f32.gmra.mxu0 %v2978
      %v3016 = vpop.f32.mrf.mxu0
      %v3017 = vadd.f32 %v2997, %v3016
      %3018 = vdwg.mxu0
      %3019 = vst [vmem:[#allocation15] sm:$0xff] %v3017
    $region105: #{tpu_custom_call.1} parent=1 // pred_fallthru
      _
    // Predicated region
    $region106: #{tpu_custom_call.1} parent=1 // pred_check
      _
    $region107: #{tpu_custom_call.1} parent=1 // pred_check_branch
      %3021 = sbr.rel (0) target = $region109
    $region108: #{tpu_custom_call.1} parent=1 // pred_region
      %3023 = vsyncadd [#allocation6], 0
      %s3025 = sshll.u32 [#allocation15], 4
      %s3026 = int_to_ptr.vmem [resolvable:$true] %s3025
      %s3027 = sshll.u32 %s18, 4
      %s3028 = int_to_ptr.hbm [resolvable:$true] %s3027
      %3030 = dma.vmem_to_hbm [thread:$0]  %s3026, 128, %s3028, [#allocation6]
    $region109: #{tpu_custom_call.1} parent=1 // pred_fallthru
      _
    // Predicated region
    $region110: #{tpu_custom_call.1} parent=1 // pred_check
      _
    $region111: #{tpu_custom_call.1} parent=1 // pred_check_branch
      %3032 = sbr.rel (0) target = $region113
    $region112: #{tpu_custom_call.1} parent=1 // pred_region
      %3034 = dma.done [#allocation6], 128
    $region113: #{tpu_custom_call.1} parent=1 // pred_fallthru
      _
    %3035 = vsyncpa [#allocation5], 1
    %3036 = vsyncpa [#allocation8], 1
    %3037 = vsyncpa [#allocation11], 1
    %3038 = vsyncpa [#allocation14], 1
    %3039 = vsyncpa [#allocation6], 1

</llo_original>
